<compile_context>
chip_gen: v7x
topology: tpu7x:2x2x1
jax: 0.10.0
libtpu: 0.0.40
codegen_flags: <defaults>
</compile_context>

<pallas_src>
import functools
import numpy as np
import jax
import jax.numpy as jnp
from jax.experimental import pallas as pl
from jax.experimental.pallas import tpu as pltpu


def _round_up(x, m):
    return ((x + m - 1) // m) * m


# ----------------------------------------------------------------------------- #
# Fused conv-stack Pallas kernel
# ----------------------------------------------------------------------------- #
def _fused_stack_kernel(*refs, n_layers, offs, acts, band_start, m_c, neg_slope):
    """One grid step = one sample.  All layers computed back-to-back in VMEM.

    refs layout: [x, mask, (w_0, b_0), ..., (w_{L-1}, b_{L-1}),
                  feat_0, ..., feat_{L-1}, buf_a, buf_b]
      x      : (1, Cin0_pad, Lx)  bf16   flattened, halo-padded raw input
      mask   : (1, Mc)            f32    1.0 on valid time columns, 0.0 on halo
      w_l    : (n_taps_l, Cout_pad_l, Cin_pad_l) bf16  per-tap weight matrices
      b_l    : (Cout_pad_l, 1)    f32
      feat_l : (1, Cout_pad_l, Mc) f32   layer output band (post-activation)
      buf_*  : (CC_pad, La)       bf16   ping-pong inter-layer activations
    """
    x_ref, mask_ref = refs[0], refs[1]
    w_refs = [refs[2 + 2 * i] for i in range(n_layers)]
    b_refs = [refs[2 + 2 * i + 1] for i in range(n_layers)]
    feat_refs = [refs[2 + 2 * n_layers + i] for i in range(n_layers)]
    buf_a = refs[2 + 3 * n_layers]
    buf_b = refs[2 + 3 * n_layers + 1]

    mask = mask_ref[...]                                        # (1, Mc) f32
    # Zero the halo rows/cols once per step; only the valid band is ever written.
    buf_a[...] = jnp.zeros(buf_a.shape, buf_a.dtype)
    buf_b[...] = jnp.zeros(buf_b.shape, buf_b.dtype)

    bufs = (buf_a, buf_b)
    src = None                                                  # layer 0 reads x_ref
    for li in range(n_layers):
        w_ref, b_ref, f_ref = w_refs[li], b_refs[li], feat_refs[li]
        cout = w_ref.shape[1]
        acc = jnp.zeros((cout, m_c), jnp.float32)
        for ti, off in enumerate(offs[li]):                     # static tap plan
            if li == 0:
                a = x_ref[0, :, off:off + m_c]                  # (Cin0_pad, Mc) bf16
            else:
                a = src[:, off:off + m_c]                       # (CC_pad, Mc)  bf16
            acc = acc + jnp.dot(w_ref[ti], a,
                                preferred_element_type=jnp.float32)
        acc = acc + b_ref[...]                                  # bias (f32)
        if acts[li]:
            acc = jnp.where(acc >= 0.0, acc, neg_slope * acc)   # LeakyReLU
        acc = acc * mask                                        # re-zero time halo
        f_ref[0] = acc                                          # feat writeback (f32)
        if li < n_layers - 1:                                   # feed next layer
            dst = bufs[li % 2]
            dst[:, band_start:band_start + m_c] = acc.astype(dst.dtype)
            src = dst


# ----------------------------------------------------------------------------- #
# Static per-layer tap plans (weights folded per tap + flattened VMEM offsets)
# ----------------------------------------------------------------------------- #
def _build_plans(params, F, T):
    layers = params["layers"]
    PW = max(lp["padding"][1] for lp in layers)        # max time halo
    PH = max(lp["padding"][0] for lp in layers) + 1    # max freq halo (+1 guard)
    Tp = T + 2 * PW
    Mc = F * Tp                                        # computed band per layer
    La = (F + 2 * PH) * Tp                             # inter-layer buffer length

    out_layers = []

    # ---- layer 0: harmonic conv = lowered (1,Kh) conv, shifts folded into taps --
    lp0 = layers[0]
    w0 = np.asarray(lp0["w"], np.float32)              # (CC, Cin*Kh, 1, Kh)
    b0 = np.asarray(lp0["b"], np.float32)
    CC, Kh = w0.shape[0], w0.shape[3]
    Cin = w0.shape[1] // Kh
    CC_pad = _round_up(CC, 8)
    Cin0_pad = _round_up(Cin, 8)
    p_w0 = lp0["padding"][1]

    pieces = []                                        # (int shift, lerp weight, fk)
    for fk, s in enumerate(lp0["shifts"]):
        lo = int(np.floor(s))
        frac = float(s) - lo
        cand = [(lo, 1.0)] if frac == 0.0 else [(lo, 1.0 - frac), (lo + 1, frac)]
        for s_int, wgt in cand:
            if wgt != 0.0 and abs(s_int) < F:          # fully out-of-range -> zeros
                pieces.append((int(s_int), float(wgt), fk))
    PfF = 1 + max([s for s, _, _ in pieces if s > 0], default=0)   # front freq pad
    PfB = 1 + max([-s for s, _, _ in pieces if s < 0], default=0)  # back  freq pad
    Lx = (PfF + F + PfB) * Tp

    taps, offs = [], []
    for s_int, wgt, fk in pieces:
        for kw in range(Kh):
            m = np.zeros((CC_pad, Cin0_pad), np.float32)
            m[:CC, :Cin] = wgt * w0[:, fk * Cin:(fk + 1) * Cin, 0, kw]
            taps.append(m)
            offs.append((PfF - s_int) * Tp + (kw - p_w0))
    if not taps:                                       # degenerate: bias-only layer
        taps.append(np.zeros((CC_pad, Cin0_pad), np.float32))
        offs.append(PfF * Tp)
    bpad = np.zeros((CC_pad, 1), np.float32)
    bpad[:CC, 0] = b0
    out_layers.append(dict(w=np.stack(taps), b=bpad, offs=tuple(int(o) for o in offs),
                           act=True, cout=CC, cout_pad=CC_pad))

    # ---- hidden / last layers: KxK (dilated) same-padding convs ----------------
    for lp in layers[1:]:
        w = np.asarray(lp["w"], np.float32)            # (Cout, Cin, K, K)
        b = np.asarray(lp["b"], np.float32)
        Cout, Cin_l, K1, K2 = w.shape
        Cout_pad = _round_up(Cout, 8)
        assert _round_up(Cin_l, 8) == CC_pad
        ph_, pw_ = lp["padding"]
        dh, dw = lp["dilation"]
        taps, offs = [], []
        for kh in range(K1):
            for kw in range(K2):
                m = np.zeros((Cout_pad, CC_pad), np.float32)
                m[:Cout, :Cin_l] = w[:, :, kh, kw]
                taps.append(m)
                offs.append(PH * Tp + (kh * dh - ph_) * Tp + (kw * dw - pw_))
        bpad = np.zeros((Cout_pad, 1), np.float32)
        bpad[:Cout, 0] = b
        out_layers.append(dict(w=np.stack(taps), b=bpad,
                               offs=tuple(int(o) for o in offs),
                               act=(lp["kind"] != "last"),
                               cout=Cout, cout_pad=Cout_pad))

    return dict(F=F, T=T, PW=PW, PH=PH, Tp=Tp, Mc=Mc, La=La, Lx=Lx,
                PfF=PfF, PfB=PfB, Cin0_pad=Cin0_pad, CC_pad=CC_pad,
                layers=out_layers)


def _fused_conv_stack(h, plan, neg_slope):
    """h: (N, Cin, F, T) f32 -> list of per-layer feat bands (N, Cout_pad, Mc) f32."""
    N = h.shape[0]
    F, T, PW = plan["F"], plan["T"], plan["PW"]
    PfF, PfB = plan["PfF"], plan["PfB"]
    Tp, Mc, La, Lx = plan["Tp"], plan["Mc"], plan["La"], plan["Lx"]
    Cin0_pad, CC_pad = plan["Cin0_pad"], plan["CC_pad"]
    lps = plan["layers"]
    nl = len(lps)

    # Flattened, zero-halo-padded, bf16 input buffer (freq pad covers the shifts,
    # time pad covers the first layer's 'same' padding).
    xb = jnp.pad(h, ((0, 0), (0, Cin0_pad - h.shape[1]), (PfF, PfB), (PW, PW)))
    xb = xb.reshape(N, Cin0_pad, Lx).astype(jnp.bfloat16)

    col = np.arange(Mc) % Tp
    mask = jnp.asarray(((col >= PW) & (col < PW + T))
                       .astype(np.float32).reshape(1, Mc))

    in_specs = [pl.BlockSpec((1, Cin0_pad, Lx), lambda n: (n, 0, 0)),   # streamed
                pl.BlockSpec((1, Mc), lambda n: (0, 0))]                # resident
    args = [xb, mask]
    for lp in lps:
        w = jnp.asarray(lp["w"], jnp.bfloat16)
        b = jnp.asarray(lp["b"], jnp.float32)
        in_specs.append(pl.BlockSpec(w.shape, lambda n: (0, 0, 0)))     # resident
        in_specs.append(pl.BlockSpec(b.shape, lambda n: (0, 0)))        # resident
        args += [w, b]

    out_shapes = tuple(jax.ShapeDtypeStruct((N, lp["cout_pad"], Mc), jnp.float32)
                       for lp in lps)
    out_specs = tuple(pl.BlockSpec((1, lp["cout_pad"], Mc), lambda n: (n, 0, 0))
                      for lp in lps)

    kernel = functools.partial(
        _fused_stack_kernel,
        n_layers=nl,
        offs=tuple(lp["offs"] for lp in lps),
        acts=tuple(lp["act"] for lp in lps),
        band_start=plan["PH"] * Tp,
        m_c=Mc,
        neg_slope=neg_slope)

    outs = pl.pallas_call(
        kernel,
        grid=(N,),
        in_specs=in_specs,
        out_specs=out_specs,
        out_shape=out_shapes,
        scratch_shapes=[pltpu.VMEM((CC_pad, La), jnp.bfloat16),
                        pltpu.VMEM((CC_pad, La), jnp.bfloat16)],
        compiler_params=pltpu.CompilerParams(
            dimension_semantics=("parallel",),
            # actual usage is ~1-2 MiB here; 32 MiB fits the scoped default on
            # v5e/v6e and v7x's 64 MiB physical VMEM with plenty of headroom.
            vmem_limit_bytes=32 * 1024 * 1024),
    )(*args)
    return outs


# ----------------------------------------------------------------------------- #
# Plain-JAX glue: STFT + shift table
# ----------------------------------------------------------------------------- #
def stft_torch_like(x, n_fft, hop, win_length):
    """Matches torch.stft(center=True, pad_mode='reflect', hann(periodic),
    return_complex=True) for win_length == n_fft.  x: (N, L) -> (N, F, T) complex."""
    pad = n_fft // 2
    xp = jnp.pad(x, ((0, 0), (pad, pad)), mode="reflect")
    win = 0.5 * (1.0 - jnp.cos(2.0 * jnp.pi * jnp.arange(win_length) / win_length))
    n_frames = 1 + (xp.shape[1] - n_fft) // hop
    idx = hop * jnp.arange(n_frames)[:, None] + jnp.arange(n_fft)[None, :]
    frames = xp[:, idx] * win[None, None, :].astype(x.dtype)          # (N, T, n_fft)
    spec = jnp.fft.rfft(frames, axis=-1)                              # (N, T, F)
    return jnp.transpose(spec, (0, 2, 1))                             # (N, F, T)


def make_log_shift(anchor, f_kernel_size, out_log_scale=1000.0, in_log_scale=0.001,
                   radix=None):
    np_shift = (np.arange(f_kernel_size) + 1) / anchor
    if radix is None:
        log_shift = out_log_scale * np.log(in_log_scale * np_shift)
    else:
        log_shift = out_log_scale * np.log(in_log_scale * np_shift) / np.log(radix)
    log_shift -= log_shift[anchor - 1]
    return -log_shift


# ----------------------------------------------------------------------------- #
# Parameter init (deterministic) and forward pass
# ----------------------------------------------------------------------------- #
def init_params(key, cfg):
    layers = []
    conv_in = cfg["in_channels"]
    Kh, Kc, CC = cfg["kernel_size_h"], cfg["kernel_size_c"], cfg["conv_channels"]
    keys = jax.random.split(key, 2 * cfg["num_layers"])
    ki = 0
    for i in range(cfg["num_layers"] - 1):
        if i == 0:
            pad = (Kh - 1) // 2   # freq padding forced to 0 in the harmonic conv
            # lowered_weight: (Cout, Cin * Kh, 1, Kh); lowered channel = fk*Cin + cin
            w = jax.random.normal(keys[ki], (CC, conv_in * Kh, 1, Kh), jnp.float32) * 0.05
            ki += 1
            b = jax.random.normal(keys[ki], (CC,), jnp.float32) * 0.01
            ki += 1
            shifts = make_log_shift(cfg["anchor"], Kh)
            layers.append(dict(kind="harmonic", w=w, b=b, padding=(0, pad),
                               dilation=(1, 1),
                               shifts=tuple(float(s) for s in shifts)))
        else:
            dil = i if cfg["dilation_factor"] == 1 else cfg["dilation_factor"] ** i
            conv_in = CC
            pad = (Kc - 1) // 2 * dil
            w = jax.random.normal(keys[ki], (CC, conv_in, Kc, Kc), jnp.float32) * 0.05
            ki += 1
            b = jax.random.normal(keys[ki], (CC,), jnp.float32) * 0.01
            ki += 1
            layers.append(dict(kind="hidden", w=w, b=b, padding=(pad, pad),
                               dilation=(dil, dil)))
    pad = (Kc - 1) // 2
    w = jax.random.normal(keys[ki], (cfg["out_channels"], conv_in, Kc, Kc), jnp.float32) * 0.05
    ki += 1
    b = jax.random.normal(keys[ki], (cfg["out_channels"],), jnp.float32) * 0.01
    layers.append(dict(kind="last", w=w, b=b, padding=(pad, pad), dilation=(1, 1)))
    return dict(layers=layers)


def harmonic_discriminator_forward(x, params, cfg):
    """x: (N, 1, L) float32.  Returns ([flat], [feats]) with feats in NCHW."""
    neg = 0.2  # LeakyReLU negative_slope
    spec = stft_torch_like(x[:, 0, :], cfg["fft_size"], cfg["hop_length"],
                           cfg["win_length"])                          # (N, F, T) complex
    h = jnp.stack([jnp.real(spec), jnp.imag(spec)], axis=1).astype(jnp.float32)
    N, _, F, T = h.shape

    plan = _build_plans(params, F, T)
    bands = _fused_conv_stack(h, plan, neg)                            # per-layer (N,Cp,Mc)

    Tp, PW = plan["Tp"], plan["PW"]
    feats = []
    for band, lp in zip(bands, plan["layers"]):
        f = band.reshape(N, lp["cout_pad"], F, Tp)[:, :lp["cout"], :, PW:PW + T]
        if lp["act"]:
            feats.append(f)   # inplace LeakyReLU aliases the conv feature in PyTorch
            feats.append(f)
        else:
            feats.append(f)

    x_flat = feats[-1].reshape(N, -1)  # torch.flatten(x, 1, -1), NCHW order
    return [x_flat], [feats]


# ----------------------------------------------------------------------------- #
if __name__ == "__main__":
    cfg = dict(
        fft_size=64, hop_length=32, win_length=64,      # small STFT: F=33
        in_channels=2, out_channels=1,
        kernel_size_h=7, anchor=7, kernel_size_c=3,
        num_layers=4, conv_channels=16, dilation_factor=1,
    )
    key = jax.random.PRNGKey(0)
    k_params, k_x = jax.random.split(key)
    params = init_params(k_params, cfg)

    # audio input (batch=2, 1 channel, 256 samples) -> STFT features (2, 2, 33, 9)
    x = jax.random.normal(k_x, (2, 1, 256), dtype=jnp.float32)

    outs, feats = harmonic_discriminator_forward(x, params, cfg)
    jax.block_until_ready((outs, feats))

    assert outs[0].shape == (2, 33 * 9), outs[0].shape
    assert len(feats[0]) == 2 * (cfg["num_layers"] - 1) + 1
    assert feats[0][0].shape == (2, cfg["conv_channels"], 33, 9)
    assert bool(jnp.all(jnp.isfinite(outs[0])))
    print("KERNEL_OK")
</pallas_src>

<mosaic_0001>
module attributes {stable_mosaic.version = 11 : i64} {
  func.func @_fused_stack_kernel(%arg0: i32, %arg1: memref<1x8x525xbf16, #tpu.memory_space<vmem>>, %arg2: memref<1x495xf32, #tpu.memory_space<vmem>>, %arg3: memref<7x16x8xbf16, #tpu.memory_space<vmem>>, %arg4: memref<16x1xf32, #tpu.memory_space<vmem>>, %arg5: memref<9x16x16xbf16, #tpu.memory_space<vmem>>, %arg6: memref<16x1xf32, #tpu.memory_space<vmem>>, %arg7: memref<9x16x16xbf16, #tpu.memory_space<vmem>>, %arg8: memref<16x1xf32, #tpu.memory_space<vmem>>, %arg9: memref<9x8x16xbf16, #tpu.memory_space<vmem>>, %arg10: memref<8x1xf32, #tpu.memory_space<vmem>>, %arg11: memref<1x16x495xf32, #tpu.memory_space<vmem>>, %arg12: memref<1x16x495xf32, #tpu.memory_space<vmem>>, %arg13: memref<1x16x495xf32, #tpu.memory_space<vmem>>, %arg14: memref<1x8x495xf32, #tpu.memory_space<vmem>>, %arg15: memref<16x585xbf16, #tpu.memory_space<vmem>>, %arg16: memref<16x585xbf16, #tpu.memory_space<vmem>>) attributes {dimension_semantics = [#tpu.dimension_semantics<parallel>], iteration_bounds = array<i64: 2>, scalar_prefetch = 0 : i64, scratch_operands = 2 : i64, tpu.core_type = #tpu.core_type<tc>, window_params = [{transform_indices = @transform_0, window_bounds = array<i64: 1, 8, 525>}, {pipeline_mode = #tpu.pipeline_mode<synchronous>, transform_indices = @transform_1, window_bounds = array<i64: 1, 495>}, {pipeline_mode = #tpu.pipeline_mode<synchronous>, transform_indices = @transform_2, window_bounds = array<i64: 7, 16, 8>}, {pipeline_mode = #tpu.pipeline_mode<synchronous>, transform_indices = @transform_3, window_bounds = array<i64: 16, 1>}, {pipeline_mode = #tpu.pipeline_mode<synchronous>, transform_indices = @transform_4, window_bounds = array<i64: 9, 16, 16>}, {pipeline_mode = #tpu.pipeline_mode<synchronous>, transform_indices = @transform_5, window_bounds = array<i64: 16, 1>}, {pipeline_mode = #tpu.pipeline_mode<synchronous>, transform_indices = @transform_6, window_bounds = array<i64: 9, 16, 16>}, {pipeline_mode = #tpu.pipeline_mode<synchronous>, transform_indices = @transform_7, window_bounds = array<i64: 16, 1>}, {pipeline_mode = #tpu.pipeline_mode<synchronous>, transform_indices = @transform_8, window_bounds = array<i64: 9, 8, 16>}, {pipeline_mode = #tpu.pipeline_mode<synchronous>, transform_indices = @transform_9, window_bounds = array<i64: 8, 1>}, {transform_indices = @transform_10, window_bounds = array<i64: 1, 16, 495>}, {transform_indices = @transform_11, window_bounds = array<i64: 1, 16, 495>}, {transform_indices = @transform_12, window_bounds = array<i64: 1, 16, 495>}, {transform_indices = @transform_13, window_bounds = array<i64: 1, 8, 495>}]} {
    %c0 = arith.constant 0 : index
    %c0_0 = arith.constant 0 : index
    %0 = vector.load %arg2[%c0, %c0_0] : memref<1x495xf32, #tpu.memory_space<vmem>>, vector<1x495xf32>
    %cst = arith.constant 0.000000e+00 : bf16
    %1 = vector.broadcast %cst : bf16 to vector<16x585xbf16>
    %c0_1 = arith.constant 0 : index
    %c0_2 = arith.constant 0 : index
    %2 = vector.load %arg15[%c0_1, %c0_2] : memref<16x585xbf16, #tpu.memory_space<vmem>>, vector<16x585xbf16>
    tpu.vector_store %arg15[%c0_1, %c0_2], %1 {strides = array<i32>} : memref<16x585xbf16, #tpu.memory_space<vmem>>, vector<16x585xbf16>,
    %cst_3 = arith.constant 0.000000e+00 : bf16
    %3 = vector.broadcast %cst_3 : bf16 to vector<16x585xbf16>
    %c0_4 = arith.constant 0 : index
    %c0_5 = arith.constant 0 : index
    %4 = vector.load %arg16[%c0_4, %c0_5] : memref<16x585xbf16, #tpu.memory_space<vmem>>, vector<16x585xbf16>
    tpu.vector_store %arg16[%c0_4, %c0_5], %3 {strides = array<i32>} : memref<16x585xbf16, #tpu.memory_space<vmem>>, vector<16x585xbf16>,
    %cst_6 = arith.constant 0.000000e+00 : f32
    %5 = vector.broadcast %cst_6 : f32 to vector<16x495xf32>
    %c0_7 = arith.constant 0 : index
    %c0_8 = arith.constant 0 : index
    %c12 = arith.constant 12 : index
    %6 = vector.load %arg1[%c0_7, %c0_8, %c12] : memref<1x8x525xbf16, #tpu.memory_space<vmem>>, vector<1x8x495xbf16>
    %7 = vector.shape_cast %6 : vector<1x8x495xbf16> to vector<8x495xbf16>
    %c0_9 = arith.constant 0 : index
    %c0_10 = arith.constant 0 : index
    %c0_11 = arith.constant 0 : index
    %8 = vector.load %arg3[%c0_9, %c0_10, %c0_11] : memref<7x16x8xbf16, #tpu.memory_space<vmem>>, vector<1x16x8xbf16>
    %9 = vector.shape_cast %8 : vector<1x16x8xbf16> to vector<16x8xbf16>
    %cst_12 = arith.constant dense<0.000000e+00> : vector<16x495xf32>
    %10 = tpu.matmul %9, %7, %cst_12 {dimension_numbers = #tpu.dot_dimension_numbers<[1], [0], [0], [1], [0, 0, 1, 1], [], []>} : vector<16x8xbf16>, vector<8x495xbf16>, vector<16x495xf32> -> vector<16x495xf32>
    %11 = arith.addf %5, %10 : vector<16x495xf32>
    %c0_13 = arith.constant 0 : index
    %c0_14 = arith.constant 0 : index
    %c13 = arith.constant 13 : index
    %12 = vector.load %arg1[%c0_13, %c0_14, %c13] : memref<1x8x525xbf16, #tpu.memory_space<vmem>>, vector<1x8x495xbf16>
    %13 = vector.shape_cast %12 : vector<1x8x495xbf16> to vector<8x495xbf16>
    %c1 = arith.constant 1 : index
    %c0_15 = arith.constant 0 : index
    %c0_16 = arith.constant 0 : index
    %14 = vector.load %arg3[%c1, %c0_15, %c0_16] : memref<7x16x8xbf16, #tpu.memory_space<vmem>>, vector<1x16x8xbf16>
    %15 = vector.shape_cast %14 : vector<1x16x8xbf16> to vector<16x8xbf16>
    %cst_17 = arith.constant dense<0.000000e+00> : vector<16x495xf32>
    %16 = tpu.matmul %15, %13, %cst_17 {dimension_numbers = #tpu.dot_dimension_numbers<[1], [0], [0], [1], [0, 0, 1, 1], [], []>} : vector<16x8xbf16>, vector<8x495xbf16>, vector<16x495xf32> -> vector<16x495xf32>
    %17 = arith.addf %11, %16 : vector<16x495xf32>
    %c0_18 = arith.constant 0 : index
    %c0_19 = arith.constant 0 : index
    %c14 = arith.constant 14 : index
    %18 = vector.load %arg1[%c0_18, %c0_19, %c14] : memref<1x8x525xbf16, #tpu.memory_space<vmem>>, vector<1x8x495xbf16>
    %19 = vector.shape_cast %18 : vector<1x8x495xbf16> to vector<8x495xbf16>
    %c2 = arith.constant 2 : index
    %c0_20 = arith.constant 0 : index
    %c0_21 = arith.constant 0 : index
    %20 = vector.load %arg3[%c2, %c0_20, %c0_21] : memref<7x16x8xbf16, #tpu.memory_space<vmem>>, vector<1x16x8xbf16>
    %21 = vector.shape_cast %20 : vector<1x16x8xbf16> to vector<16x8xbf16>
    %cst_22 = arith.constant dense<0.000000e+00> : vector<16x495xf32>
    %22 = tpu.matmul %21, %19, %cst_22 {dimension_numbers = #tpu.dot_dimension_numbers<[1], [0], [0], [1], [0, 0, 1, 1], [], []>} : vector<16x8xbf16>, vector<8x495xbf16>, vector<16x495xf32> -> vector<16x495xf32>
    %23 = arith.addf %17, %22 : vector<16x495xf32>
    %c0_23 = arith.constant 0 : index
    %c0_24 = arith.constant 0 : index
    %c15 = arith.constant 15 : index
    %24 = vector.load %arg1[%c0_23, %c0_24, %c15] : memref<1x8x525xbf16, #tpu.memory_space<vmem>>, vector<1x8x495xbf16>
    %25 = vector.shape_cast %24 : vector<1x8x495xbf16> to vector<8x495xbf16>
    %c3 = arith.constant 3 : index
    %c0_25 = arith.constant 0 : index
    %c0_26 = arith.constant 0 : index
    %26 = vector.load %arg3[%c3, %c0_25, %c0_26] : memref<7x16x8xbf16, #tpu.memory_space<vmem>>, vector<1x16x8xbf16>
    %27 = vector.shape_cast %26 : vector<1x16x8xbf16> to vector<16x8xbf16>
    %cst_27 = arith.constant dense<0.000000e+00> : vector<16x495xf32>
    %28 = tpu.matmul %27, %25, %cst_27 {dimension_numbers = #tpu.dot_dimension_numbers<[1], [0], [0], [1], [0, 0, 1, 1], [], []>} : vector<16x8xbf16>, vector<8x495xbf16>, vector<16x495xf32> -> vector<16x495xf32>
    %29 = arith.addf %23, %28 : vector<16x495xf32>
    %c0_28 = arith.constant 0 : index
    %c0_29 = arith.constant 0 : index
    %c16 = arith.constant 16 : index
    %30 = vector.load %arg1[%c0_28, %c0_29, %c16] : memref<1x8x525xbf16, #tpu.memory_space<vmem>>, vector<1x8x495xbf16>
    %31 = vector.shape_cast %30 : vector<1x8x495xbf16> to vector<8x495xbf16>
    %c4 = arith.constant 4 : index
    %c0_30 = arith.constant 0 : index
    %c0_31 = arith.constant 0 : index
    %32 = vector.load %arg3[%c4, %c0_30, %c0_31] : memref<7x16x8xbf16, #tpu.memory_space<vmem>>, vector<1x16x8xbf16>
    %33 = vector.shape_cast %32 : vector<1x16x8xbf16> to vector<16x8xbf16>
    %cst_32 = arith.constant dense<0.000000e+00> : vector<16x495xf32>
    %34 = tpu.matmul %33, %31, %cst_32 {dimension_numbers = #tpu.dot_dimension_numbers<[1], [0], [0], [1], [0, 0, 1, 1], [], []>} : vector<16x8xbf16>, vector<8x495xbf16>, vector<16x495xf32> -> vector<16x495xf32>
    %35 = arith.addf %29, %34 : vector<16x495xf32>
    %c0_33 = arith.constant 0 : index
    %c0_34 = arith.constant 0 : index
    %c17 = arith.constant 17 : index
    %36 = vector.load %arg1[%c0_33, %c0_34, %c17] : memref<1x8x525xbf16, #tpu.memory_space<vmem>>, vector<1x8x495xbf16>
    %37 = vector.shape_cast %36 : vector<1x8x495xbf16> to vector<8x495xbf16>
    %c5 = arith.constant 5 : index
    %c0_35 = arith.constant 0 : index
    %c0_36 = arith.constant 0 : index
    %38 = vector.load %arg3[%c5, %c0_35, %c0_36] : memref<7x16x8xbf16, #tpu.memory_space<vmem>>, vector<1x16x8xbf16>
    %39 = vector.shape_cast %38 : vector<1x16x8xbf16> to vector<16x8xbf16>
    %cst_37 = arith.constant dense<0.000000e+00> : vector<16x495xf32>
    %40 = tpu.matmul %39, %37, %cst_37 {dimension_numbers = #tpu.dot_dimension_numbers<[1], [0], [0], [1], [0, 0, 1, 1], [], []>} : vector<16x8xbf16>, vector<8x495xbf16>, vector<16x495xf32> -> vector<16x495xf32>
    %41 = arith.addf %35, %40 : vector<16x495xf32>
    %c0_38 = arith.constant 0 : index
    %c0_39 = arith.constant 0 : index
    %c18 = arith.constant 18 : index
    %42 = vector.load %arg1[%c0_38, %c0_39, %c18] : memref<1x8x525xbf16, #tpu.memory_space<vmem>>, vector<1x8x495xbf16>
    %43 = vector.shape_cast %42 : vector<1x8x495xbf16> to vector<8x495xbf16>
    %c6 = arith.constant 6 : index
    %c0_40 = arith.constant 0 : index
    %c0_41 = arith.constant 0 : index
    %44 = vector.load %arg3[%c6, %c0_40, %c0_41] : memref<7x16x8xbf16, #tpu.memory_space<vmem>>, vector<1x16x8xbf16>
    %45 = vector.shape_cast %44 : vector<1x16x8xbf16> to vector<16x8xbf16>
    %cst_42 = arith.constant dense<0.000000e+00> : vector<16x495xf32>
    %46 = tpu.matmul %45, %43, %cst_42 {dimension_numbers = #tpu.dot_dimension_numbers<[1], [0], [0], [1], [0, 0, 1, 1], [], []>} : vector<16x8xbf16>, vector<8x495xbf16>, vector<16x495xf32> -> vector<16x495xf32>
    %47 = arith.addf %41, %46 : vector<16x495xf32>
    %c0_43 = arith.constant 0 : index
    %c0_44 = arith.constant 0 : index
    %48 = vector.load %arg4[%c0_43, %c0_44] : memref<16x1xf32, #tpu.memory_space<vmem>>, vector<16x1xf32>
    %49 = vector.broadcast %48 : vector<16x1xf32> to vector<16x495xf32>
    %50 = arith.addf %47, %49 : vector<16x495xf32>
    %cst_45 = arith.constant 0.000000e+00 : f32
    %51 = vector.broadcast %cst_45 : f32 to vector<16x495xf32>
    %52 = arith.cmpf oge, %50, %51 : vector<16x495xf32>
    %cst_46 = arith.constant 2.000000e-01 : f32
    %53 = vector.broadcast %cst_46 : f32 to vector<16x495xf32>
    %54 = arith.mulf %53, %50 : vector<16x495xf32>
    %55 = arith.select %52, %50, %54 : vector<16x495xi1>, vector<16x495xf32>
    %56 = vector.broadcast %0 : vector<1x495xf32> to vector<16x495xf32>
    %57 = arith.mulf %55, %56 : vector<16x495xf32>
    %c0_47 = arith.constant 0 : index
    %c0_48 = arith.constant 0 : index
    %c0_49 = arith.constant 0 : index
    %58 = vector.load %arg11[%c0_47, %c0_48, %c0_49] : memref<1x16x495xf32, #tpu.memory_space<vmem>>, vector<1x16x495xf32>
    %59 = vector.shape_cast %58 : vector<1x16x495xf32> to vector<16x495xf32>
    %60 = vector.shape_cast %57 : vector<16x495xf32> to vector<1x16x495xf32>
    tpu.vector_store %arg11[%c0_47, %c0_48, %c0_49], %60 {strides = array<i32>} : memref<1x16x495xf32, #tpu.memory_space<vmem>>, vector<1x16x495xf32>,
    %61 = arith.truncf %57 : vector<16x495xf32> to vector<16x495xbf16>
    %c0_50 = arith.constant 0 : index
    %c45 = arith.constant 45 : index
    %62 = vector.load %arg15[%c0_50, %c45] : memref<16x585xbf16, #tpu.memory_space<vmem>>, vector<16x495xbf16>
    tpu.vector_store %arg15[%c0_50, %c45], %61 {strides = array<i32>} : memref<16x585xbf16, #tpu.memory_space<vmem>>, vector<16x495xbf16>,
    %cst_51 = arith.constant 0.000000e+00 : f32
    %63 = vector.broadcast %cst_51 : f32 to vector<16x495xf32>
    %c0_52 = arith.constant 0 : index
    %c29 = arith.constant 29 : index
    %64 = vector.load %arg15[%c0_52, %c29] : memref<16x585xbf16, #tpu.memory_space<vmem>>, vector<16x495xbf16>
    %c0_53 = arith.constant 0 : index
    %c0_54 = arith.constant 0 : index
    %c0_55 = arith.constant 0 : index
    %65 = vector.load %arg5[%c0_53, %c0_54, %c0_55] : memref<9x16x16xbf16, #tpu.memory_space<vmem>>, vector<1x16x16xbf16>
    %66 = vector.shape_cast %65 : vector<1x16x16xbf16> to vector<16x16xbf16>
    %cst_56 = arith.constant dense<0.000000e+00> : vector<16x495xf32>
    %67 = tpu.matmul %66, %64, %cst_56 {dimension_numbers = #tpu.dot_dimension_numbers<[1], [0], [0], [1], [0, 0, 1, 1], [], []>} : vector<16x16xbf16>, vector<16x495xbf16>, vector<16x495xf32> -> vector<16x495xf32>
    %68 = arith.addf %63, %67 : vector<16x495xf32>
    %c0_57 = arith.constant 0 : index
    %c30 = arith.constant 30 : index
    %69 = vector.load %arg15[%c0_57, %c30] : memref<16x585xbf16, #tpu.memory_space<vmem>>, vector<16x495xbf16>
    %c1_58 = arith.constant 1 : index
    %c0_59 = arith.constant 0 : index
    %c0_60 = arith.constant 0 : index
    %70 = vector.load %arg5[%c1_58, %c0_59, %c0_60] : memref<9x16x16xbf16, #tpu.memory_space<vmem>>, vector<1x16x16xbf16>
    %71 = vector.shape_cast %70 : vector<1x16x16xbf16> to vector<16x16xbf16>
    %cst_61 = arith.constant dense<0.000000e+00> : vector<16x495xf32>
    %72 = tpu.matmul %71, %69, %cst_61 {dimension_numbers = #tpu.dot_dimension_numbers<[1], [0], [0], [1], [0, 0, 1, 1], [], []>} : vector<16x16xbf16>, vector<16x495xbf16>, vector<16x495xf32> -> vector<16x495xf32>
    %73 = arith.addf %68, %72 : vector<16x495xf32>
    %c0_62 = arith.constant 0 : index
    %c31 = arith.constant 31 : index
    %74 = vector.load %arg15[%c0_62, %c31] : memref<16x585xbf16, #tpu.memory_space<vmem>>, vector<16x495xbf16>
    %c2_63 = arith.constant 2 : index
    %c0_64 = arith.constant 0 : index
    %c0_65 = arith.constant 0 : index
    %75 = vector.load %arg5[%c2_63, %c0_64, %c0_65] : memref<9x16x16xbf16, #tpu.memory_space<vmem>>, vector<1x16x16xbf16>
    %76 = vector.shape_cast %75 : vector<1x16x16xbf16> to vector<16x16xbf16>
    %cst_66 = arith.constant dense<0.000000e+00> : vector<16x495xf32>
    %77 = tpu.matmul %76, %74, %cst_66 {dimension_numbers = #tpu.dot_dimension_numbers<[1], [0], [0], [1], [0, 0, 1, 1], [], []>} : vector<16x16xbf16>, vector<16x495xbf16>, vector<16x495xf32> -> vector<16x495xf32>
    %78 = arith.addf %73, %77 : vector<16x495xf32>
    %c0_67 = arith.constant 0 : index
    %c44 = arith.constant 44 : index
    %79 = vector.load %arg15[%c0_67, %c44] : memref<16x585xbf16, #tpu.memory_space<vmem>>, vector<16x495xbf16>
    %c3_68 = arith.constant 3 : index
    %c0_69 = arith.constant 0 : index
    %c0_70 = arith.constant 0 : index
    %80 = vector.load %arg5[%c3_68, %c0_69, %c0_70] : memref<9x16x16xbf16, #tpu.memory_space<vmem>>, vector<1x16x16xbf16>
    %81 = vector.shape_cast %80 : vector<1x16x16xbf16> to vector<16x16xbf16>
    %cst_71 = arith.constant dense<0.000000e+00> : vector<16x495xf32>
    %82 = tpu.matmul %81, %79, %cst_71 {dimension_numbers = #tpu.dot_dimension_numbers<[1], [0], [0], [1], [0, 0, 1, 1], [], []>} : vector<16x16xbf16>, vector<16x495xbf16>, vector<16x495xf32> -> vector<16x495xf32>
    %83 = arith.addf %78, %82 : vector<16x495xf32>
    %c0_72 = arith.constant 0 : index
    %c45_73 = arith.constant 45 : index
    %84 = vector.load %arg15[%c0_72, %c45_73] : memref<16x585xbf16, #tpu.memory_space<vmem>>, vector<16x495xbf16>
    %c4_74 = arith.constant 4 : index
    %c0_75 = arith.constant 0 : index
    %c0_76 = arith.constant 0 : index
    %85 = vector.load %arg5[%c4_74, %c0_75, %c0_76] : memref<9x16x16xbf16, #tpu.memory_space<vmem>>, vector<1x16x16xbf16>
    %86 = vector.shape_cast %85 : vector<1x16x16xbf16> to vector<16x16xbf16>
    %cst_77 = arith.constant dense<0.000000e+00> : vector<16x495xf32>
    %87 = tpu.matmul %86, %84, %cst_77 {dimension_numbers = #tpu.dot_dimension_numbers<[1], [0], [0], [1], [0, 0, 1, 1], [], []>} : vector<16x16xbf16>, vector<16x495xbf16>, vector<16x495xf32> -> vector<16x495xf32>
    %88 = arith.addf %83, %87 : vector<16x495xf32>
    %c0_78 = arith.constant 0 : index
    %c46 = arith.constant 46 : index
    %89 = vector.load %arg15[%c0_78, %c46] : memref<16x585xbf16, #tpu.memory_space<vmem>>, vector<16x495xbf16>
    %c5_79 = arith.constant 5 : index
    %c0_80 = arith.constant 0 : index
    %c0_81 = arith.constant 0 : index
    %90 = vector.load %arg5[%c5_79, %c0_80, %c0_81] : memref<9x16x16xbf16, #tpu.memory_space<vmem>>, vector<1x16x16xbf16>
    %91 = vector.shape_cast %90 : vector<1x16x16xbf16> to vector<16x16xbf16>
    %cst_82 = arith.constant dense<0.000000e+00> : vector<16x495xf32>
    %92 = tpu.matmul %91, %89, %cst_82 {dimension_numbers = #tpu.dot_dimension_numbers<[1], [0], [0], [1], [0, 0, 1, 1], [], []>} : vector<16x16xbf16>, vector<16x495xbf16>, vector<16x495xf32> -> vector<16x495xf32>
    %93 = arith.addf %88, %92 : vector<16x495xf32>
    %c0_83 = arith.constant 0 : index
    %c59 = arith.constant 59 : index
    %94 = vector.load %arg15[%c0_83, %c59] : memref<16x585xbf16, #tpu.memory_space<vmem>>, vector<16x495xbf16>
    %c6_84 = arith.constant 6 : index
    %c0_85 = arith.constant 0 : index
    %c0_86 = arith.constant 0 : index
    %95 = vector.load %arg5[%c6_84, %c0_85, %c0_86] : memref<9x16x16xbf16, #tpu.memory_space<vmem>>, vector<1x16x16xbf16>
    %96 = vector.shape_cast %95 : vector<1x16x16xbf16> to vector<16x16xbf16>
    %cst_87 = arith.constant dense<0.000000e+00> : vector<16x495xf32>
    %97 = tpu.matmul %96, %94, %cst_87 {dimension_numbers = #tpu.dot_dimension_numbers<[1], [0], [0], [1], [0, 0, 1, 1], [], []>} : vector<16x16xbf16>, vector<16x495xbf16>, vector<16x495xf32> -> vector<16x495xf32>
    %98 = arith.addf %93, %97 : vector<16x495xf32>
    %c0_88 = arith.constant 0 : index
    %c60 = arith.constant 60 : index
    %99 = vector.load %arg15[%c0_88, %c60] : memref<16x585xbf16, #tpu.memory_space<vmem>>, vector<16x495xbf16>
    %c7 = arith.constant 7 : index
    %c0_89 = arith.constant 0 : index
    %c0_90 = arith.constant 0 : index
    %100 = vector.load %arg5[%c7, %c0_89, %c0_90] : memref<9x16x16xbf16, #tpu.memory_space<vmem>>, vector<1x16x16xbf16>
    %101 = vector.shape_cast %100 : vector<1x16x16xbf16> to vector<16x16xbf16>
    %cst_91 = arith.constant dense<0.000000e+00> : vector<16x495xf32>
    %102 = tpu.matmul %101, %99, %cst_91 {dimension_numbers = #tpu.dot_dimension_numbers<[1], [0], [0], [1], [0, 0, 1, 1], [], []>} : vector<16x16xbf16>, vector<16x495xbf16>, vector<16x495xf32> -> vector<16x495xf32>
    %103 = arith.addf %98, %102 : vector<16x495xf32>
    %c0_92 = arith.constant 0 : index
    %c61 = arith.constant 61 : index
    %104 = vector.load %arg15[%c0_92, %c61] : memref<16x585xbf16, #tpu.memory_space<vmem>>, vector<16x495xbf16>
    %c8 = arith.constant 8 : index
    %c0_93 = arith.constant 0 : index
    %c0_94 = arith.constant 0 : index
    %105 = vector.load %arg5[%c8, %c0_93, %c0_94] : memref<9x16x16xbf16, #tpu.memory_space<vmem>>, vector<1x16x16xbf16>
    %106 = vector.shape_cast %105 : vector<1x16x16xbf16> to vector<16x16xbf16>
    %cst_95 = arith.constant dense<0.000000e+00> : vector<16x495xf32>
    %107 = tpu.matmul %106, %104, %cst_95 {dimension_numbers = #tpu.dot_dimension_numbers<[1], [0], [0], [1], [0, 0, 1, 1], [], []>} : vector<16x16xbf16>, vector<16x495xbf16>, vector<16x495xf32> -> vector<16x495xf32>
    %108 = arith.addf %103, %107 : vector<16x495xf32>
    %c0_96 = arith.constant 0 : index
    %c0_97 = arith.constant 0 : index
    %109 = vector.load %arg6[%c0_96, %c0_97] : memref<16x1xf32, #tpu.memory_space<vmem>>, vector<16x1xf32>
    %110 = vector.broadcast %109 : vector<16x1xf32> to vector<16x495xf32>
    %111 = arith.addf %108, %110 : vector<16x495xf32>
    %cst_98 = arith.constant 0.000000e+00 : f32
    %112 = vector.broadcast %cst_98 : f32 to vector<16x495xf32>
    %113 = arith.cmpf oge, %111, %112 : vector<16x495xf32>
    %cst_99 = arith.constant 2.000000e-01 : f32
    %114 = vector.broadcast %cst_99 : f32 to vector<16x495xf32>
    %115 = arith.mulf %114, %111 : vector<16x495xf32>
    %116 = arith.select %113, %111, %115 : vector<16x495xi1>, vector<16x495xf32>
    %117 = vector.broadcast %0 : vector<1x495xf32> to vector<16x495xf32>
    %118 = arith.mulf %116, %117 : vector<16x495xf32>
    %c0_100 = arith.constant 0 : index
    %c0_101 = arith.constant 0 : index
    %c0_102 = arith.constant 0 : index
    %119 = vector.load %arg12[%c0_100, %c0_101, %c0_102] : memref<1x16x495xf32, #tpu.memory_space<vmem>>, vector<1x16x495xf32>
    %120 = vector.shape_cast %119 : vector<1x16x495xf32> to vector<16x495xf32>
    %121 = vector.shape_cast %118 : vector<16x495xf32> to vector<1x16x495xf32>
    tpu.vector_store %arg12[%c0_100, %c0_101, %c0_102], %121 {strides = array<i32>} : memref<1x16x495xf32, #tpu.memory_space<vmem>>, vector<1x16x495xf32>,
    %122 = arith.truncf %118 : vector<16x495xf32> to vector<16x495xbf16>
    %c0_103 = arith.constant 0 : index
    %c45_104 = arith.constant 45 : index
    %123 = vector.load %arg16[%c0_103, %c45_104] : memref<16x585xbf16, #tpu.memory_space<vmem>>, vector<16x495xbf16>
    tpu.vector_store %arg16[%c0_103, %c45_104], %122 {strides = array<i32>} : memref<16x585xbf16, #tpu.memory_space<vmem>>, vector<16x495xbf16>,
    %cst_105 = arith.constant 0.000000e+00 : f32
    %124 = vector.broadcast %cst_105 : f32 to vector<16x495xf32>
    %c0_106 = arith.constant 0 : index
    %c13_107 = arith.constant 13 : index
    %125 = vector.load %arg16[%c0_106, %c13_107] : memref<16x585xbf16, #tpu.memory_space<vmem>>, vector<16x495xbf16>
    %c0_108 = arith.constant 0 : index
    %c0_109 = arith.constant 0 : index
    %c0_110 = arith.constant 0 : index
    %126 = vector.load %arg7[%c0_108, %c0_109, %c0_110] : memref<9x16x16xbf16, #tpu.memory_space<vmem>>, vector<1x16x16xbf16>
    %127 = vector.shape_cast %126 : vector<1x16x16xbf16> to vector<16x16xbf16>
    %cst_111 = arith.constant dense<0.000000e+00> : vector<16x495xf32>
    %128 = tpu.matmul %127, %125, %cst_111 {dimension_numbers = #tpu.dot_dimension_numbers<[1], [0], [0], [1], [0, 0, 1, 1], [], []>} : vector<16x16xbf16>, vector<16x495xbf16>, vector<16x495xf32> -> vector<16x495xf32>
    %129 = arith.addf %124, %128 : vector<16x495xf32>
    %c0_112 = arith.constant 0 : index
    %c15_113 = arith.constant 15 : index
    %130 = vector.load %arg16[%c0_112, %c15_113] : memref<16x585xbf16, #tpu.memory_space<vmem>>, vector<16x495xbf16>
    %c1_114 = arith.constant 1 : index
    %c0_115 = arith.constant 0 : index
    %c0_116 = arith.constant 0 : index
    %131 = vector.load %arg7[%c1_114, %c0_115, %c0_116] : memref<9x16x16xbf16, #tpu.memory_space<vmem>>, vector<1x16x16xbf16>
    %132 = vector.shape_cast %131 : vector<1x16x16xbf16> to vector<16x16xbf16>
    %cst_117 = arith.constant dense<0.000000e+00> : vector<16x495xf32>
    %133 = tpu.matmul %132, %130, %cst_117 {dimension_numbers = #tpu.dot_dimension_numbers<[1], [0], [0], [1], [0, 0, 1, 1], [], []>} : vector<16x16xbf16>, vector<16x495xbf16>, vector<16x495xf32> -> vector<16x495xf32>
    %134 = arith.addf %129, %133 : vector<16x495xf32>
    %c0_118 = arith.constant 0 : index
    %c17_119 = arith.constant 17 : index
    %135 = vector.load %arg16[%c0_118, %c17_119] : memref<16x585xbf16, #tpu.memory_space<vmem>>, vector<16x495xbf16>
    %c2_120 = arith.constant 2 : index
    %c0_121 = arith.constant 0 : index
    %c0_122 = arith.constant 0 : index
    %136 = vector.load %arg7[%c2_120, %c0_121, %c0_122] : memref<9x16x16xbf16, #tpu.memory_space<vmem>>, vector<1x16x16xbf16>
    %137 = vector.shape_cast %136 : vector<1x16x16xbf16> to vector<16x16xbf16>
    %cst_123 = arith.constant dense<0.000000e+00> : vector<16x495xf32>
    %138 = tpu.matmul %137, %135, %cst_123 {dimension_numbers = #tpu.dot_dimension_numbers<[1], [0], [0], [1], [0, 0, 1, 1], [], []>} : vector<16x16xbf16>, vector<16x495xbf16>, vector<16x495xf32> -> vector<16x495xf32>
    %139 = arith.addf %134, %138 : vector<16x495xf32>
    %c0_124 = arith.constant 0 : index
    %c43 = arith.constant 43 : index
    %140 = vector.load %arg16[%c0_124, %c43] : memref<16x585xbf16, #tpu.memory_space<vmem>>, vector<16x495xbf16>
    %c3_125 = arith.constant 3 : index
    %c0_126 = arith.constant 0 : index
    %c0_127 = arith.constant 0 : index
    %141 = vector.load %arg7[%c3_125, %c0_126, %c0_127] : memref<9x16x16xbf16, #tpu.memory_space<vmem>>, vector<1x16x16xbf16>
    %142 = vector.shape_cast %141 : vector<1x16x16xbf16> to vector<16x16xbf16>
    %cst_128 = arith.constant dense<0.000000e+00> : vector<16x495xf32>
    %143 = tpu.matmul %142, %140, %cst_128 {dimension_numbers = #tpu.dot_dimension_numbers<[1], [0], [0], [1], [0, 0, 1, 1], [], []>} : vector<16x16xbf16>, vector<16x495xbf16>, vector<16x495xf32> -> vector<16x495xf32>
    %144 = arith.addf %139, %143 : vector<16x495xf32>
    %c0_129 = arith.constant 0 : index
    %c45_130 = arith.constant 45 : index
    %145 = vector.load %arg16[%c0_129, %c45_130] : memref<16x585xbf16, #tpu.memory_space<vmem>>, vector<16x495xbf16>
    %c4_131 = arith.constant 4 : index
    %c0_132 = arith.constant 0 : index
    %c0_133 = arith.constant 0 : index
    %146 = vector.load %arg7[%c4_131, %c0_132, %c0_133] : memref<9x16x16xbf16, #tpu.memory_space<vmem>>, vector<1x16x16xbf16>
    %147 = vector.shape_cast %146 : vector<1x16x16xbf16> to vector<16x16xbf16>
    %cst_134 = arith.constant dense<0.000000e+00> : vector<16x495xf32>
    %148 = tpu.matmul %147, %145, %cst_134 {dimension_numbers = #tpu.dot_dimension_numbers<[1], [0], [0], [1], [0, 0, 1, 1], [], []>} : vector<16x16xbf16>, vector<16x495xbf16>, vector<16x495xf32> -> vector<16x495xf32>
    %149 = arith.addf %144, %148 : vector<16x495xf32>
    %c0_135 = arith.constant 0 : index
    %c47 = arith.constant 47 : index
    %150 = vector.load %arg16[%c0_135, %c47] : memref<16x585xbf16, #tpu.memory_space<vmem>>, vector<16x495xbf16>
    %c5_136 = arith.constant 5 : index
    %c0_137 = arith.constant 0 : index
    %c0_138 = arith.constant 0 : index
    %151 = vector.load %arg7[%c5_136, %c0_137, %c0_138] : memref<9x16x16xbf16, #tpu.memory_space<vmem>>, vector<1x16x16xbf16>
    %152 = vector.shape_cast %151 : vector<1x16x16xbf16> to vector<16x16xbf16>
    %cst_139 = arith.constant dense<0.000000e+00> : vector<16x495xf32>
    %153 = tpu.matmul %152, %150, %cst_139 {dimension_numbers = #tpu.dot_dimension_numbers<[1], [0], [0], [1], [0, 0, 1, 1], [], []>} : vector<16x16xbf16>, vector<16x495xbf16>, vector<16x495xf32> -> vector<16x495xf32>
    %154 = arith.addf %149, %153 : vector<16x495xf32>
    %c0_140 = arith.constant 0 : index
    %c73 = arith.constant 73 : index
    %155 = vector.load %arg16[%c0_140, %c73] : memref<16x585xbf16, #tpu.memory_space<vmem>>, vector<16x495xbf16>
    %c6_141 = arith.constant 6 : index
    %c0_142 = arith.constant 0 : index
    %c0_143 = arith.constant 0 : index
    %156 = vector.load %arg7[%c6_141, %c0_142, %c0_143] : memref<9x16x16xbf16, #tpu.memory_space<vmem>>, vector<1x16x16xbf16>
    %157 = vector.shape_cast %156 : vector<1x16x16xbf16> to vector<16x16xbf16>
    %cst_144 = arith.constant dense<0.000000e+00> : vector<16x495xf32>
    %158 = tpu.matmul %157, %155, %cst_144 {dimension_numbers = #tpu.dot_dimension_numbers<[1], [0], [0], [1], [0, 0, 1, 1], [], []>} : vector<16x16xbf16>, vector<16x495xbf16>, vector<16x495xf32> -> vector<16x495xf32>
    %159 = arith.addf %154, %158 : vector<16x495xf32>
    %c0_145 = arith.constant 0 : index
    %c75 = arith.constant 75 : index
    %160 = vector.load %arg16[%c0_145, %c75] : memref<16x585xbf16, #tpu.memory_space<vmem>>, vector<16x495xbf16>
    %c7_146 = arith.constant 7 : index
    %c0_147 = arith.constant 0 : index
    %c0_148 = arith.constant 0 : index
    %161 = vector.load %arg7[%c7_146, %c0_147, %c0_148] : memref<9x16x16xbf16, #tpu.memory_space<vmem>>, vector<1x16x16xbf16>
    %162 = vector.shape_cast %161 : vector<1x16x16xbf16> to vector<16x16xbf16>
    %cst_149 = arith.constant dense<0.000000e+00> : vector<16x495xf32>
    %163 = tpu.matmul %162, %160, %cst_149 {dimension_numbers = #tpu.dot_dimension_numbers<[1], [0], [0], [1], [0, 0, 1, 1], [], []>} : vector<16x16xbf16>, vector<16x495xbf16>, vector<16x495xf32> -> vector<16x495xf32>
    %164 = arith.addf %159, %163 : vector<16x495xf32>
    %c0_150 = arith.constant 0 : index
    %c77 = arith.constant 77 : index
    %165 = vector.load %arg16[%c0_150, %c77] : memref<16x585xbf16, #tpu.memory_space<vmem>>, vector<16x495xbf16>
    %c8_151 = arith.constant 8 : index
    %c0_152 = arith.constant 0 : index
    %c0_153 = arith.constant 0 : index
    %166 = vector.load %arg7[%c8_151, %c0_152, %c0_153] : memref<9x16x16xbf16, #tpu.memory_space<vmem>>, vector<1x16x16xbf16>
    %167 = vector.shape_cast %166 : vector<1x16x16xbf16> to vector<16x16xbf16>
    %cst_154 = arith.constant dense<0.000000e+00> : vector<16x495xf32>
    %168 = tpu.matmul %167, %165, %cst_154 {dimension_numbers = #tpu.dot_dimension_numbers<[1], [0], [0], [1], [0, 0, 1, 1], [], []>} : vector<16x16xbf16>, vector<16x495xbf16>, vector<16x495xf32> -> vector<16x495xf32>
    %169 = arith.addf %164, %168 : vector<16x495xf32>
    %c0_155 = arith.constant 0 : index
    %c0_156 = arith.constant 0 : index
    %170 = vector.load %arg8[%c0_155, %c0_156] : memref<16x1xf32, #tpu.memory_space<vmem>>, vector<16x1xf32>
    %171 = vector.broadcast %170 : vector<16x1xf32> to vector<16x495xf32>
    %172 = arith.addf %169, %171 : vector<16x495xf32>
    %cst_157 = arith.constant 0.000000e+00 : f32
    %173 = vector.broadcast %cst_157 : f32 to vector<16x495xf32>
    %174 = arith.cmpf oge, %172, %173 : vector<16x495xf32>
    %cst_158 = arith.constant 2.000000e-01 : f32
    %175 = vector.broadcast %cst_158 : f32 to vector<16x495xf32>
    %176 = arith.mulf %175, %172 : vector<16x495xf32>
    %177 = arith.select %174, %172, %176 : vector<16x495xi1>, vector<16x495xf32>
    %178 = vector.broadcast %0 : vector<1x495xf32> to vector<16x495xf32>
    %179 = arith.mulf %177, %178 : vector<16x495xf32>
    %c0_159 = arith.constant 0 : index
    %c0_160 = arith.constant 0 : index
    %c0_161 = arith.constant 0 : index
    %180 = vector.load %arg13[%c0_159, %c0_160, %c0_161] : memref<1x16x495xf32, #tpu.memory_space<vmem>>, vector<1x16x495xf32>
    %181 = vector.shape_cast %180 : vector<1x16x495xf32> to vector<16x495xf32>
    %182 = vector.shape_cast %179 : vector<16x495xf32> to vector<1x16x495xf32>
    tpu.vector_store %arg13[%c0_159, %c0_160, %c0_161], %182 {strides = array<i32>} : memref<1x16x495xf32, #tpu.memory_space<vmem>>, vector<1x16x495xf32>,
    %183 = arith.truncf %179 : vector<16x495xf32> to vector<16x495xbf16>
    %c0_162 = arith.constant 0 : index
    %c45_163 = arith.constant 45 : index
    %184 = vector.load %arg15[%c0_162, %c45_163] : memref<16x585xbf16, #tpu.memory_space<vmem>>, vector<16x495xbf16>
    tpu.vector_store %arg15[%c0_162, %c45_163], %183 {strides = array<i32>} : memref<16x585xbf16, #tpu.memory_space<vmem>>, vector<16x495xbf16>,
    %cst_164 = arith.constant 0.000000e+00 : f32
    %185 = vector.broadcast %cst_164 : f32 to vector<8x495xf32>
    %c0_165 = arith.constant 0 : index
    %c29_166 = arith.constant 29 : index
    %186 = vector.load %arg15[%c0_165, %c29_166] : memref<16x585xbf16, #tpu.memory_space<vmem>>, vector<16x495xbf16>
    %c0_167 = arith.constant 0 : index
    %c0_168 = arith.constant 0 : index
    %c0_169 = arith.constant 0 : index
    %187 = vector.load %arg9[%c0_167, %c0_168, %c0_169] : memref<9x8x16xbf16, #tpu.memory_space<vmem>>, vector<1x8x16xbf16>
    %188 = vector.shape_cast %187 : vector<1x8x16xbf16> to vector<8x16xbf16>
    %cst_170 = arith.constant dense<0.000000e+00> : vector<8x495xf32>
    %189 = tpu.matmul %188, %186, %cst_170 {dimension_numbers = #tpu.dot_dimension_numbers<[1], [0], [0], [1], [0, 0, 1, 1], [], []>} : vector<8x16xbf16>, vector<16x495xbf16>, vector<8x495xf32> -> vector<8x495xf32>
    %190 = arith.addf %185, %189 : vector<8x495xf32>
    %c0_171 = arith.constant 0 : index
    %c30_172 = arith.constant 30 : index
    %191 = vector.load %arg15[%c0_171, %c30_172] : memref<16x585xbf16, #tpu.memory_space<vmem>>, vector<16x495xbf16>
    %c1_173 = arith.constant 1 : index
    %c0_174 = arith.constant 0 : index
    %c0_175 = arith.constant 0 : index
    %192 = vector.load %arg9[%c1_173, %c0_174, %c0_175] : memref<9x8x16xbf16, #tpu.memory_space<vmem>>, vector<1x8x16xbf16>
    %193 = vector.shape_cast %192 : vector<1x8x16xbf16> to vector<8x16xbf16>
    %cst_176 = arith.constant dense<0.000000e+00> : vector<8x495xf32>
    %194 = tpu.matmul %193, %191, %cst_176 {dimension_numbers = #tpu.dot_dimension_numbers<[1], [0], [0], [1], [0, 0, 1, 1], [], []>} : vector<8x16xbf16>, vector<16x495xbf16>, vector<8x495xf32> -> vector<8x495xf32>
    %195 = arith.addf %190, %194 : vector<8x495xf32>
    %c0_177 = arith.constant 0 : index
    %c31_178 = arith.constant 31 : index
    %196 = vector.load %arg15[%c0_177, %c31_178] : memref<16x585xbf16, #tpu.memory_space<vmem>>, vector<16x495xbf16>
    %c2_179 = arith.constant 2 : index
    %c0_180 = arith.constant 0 : index
    %c0_181 = arith.constant 0 : index
    %197 = vector.load %arg9[%c2_179, %c0_180, %c0_181] : memref<9x8x16xbf16, #tpu.memory_space<vmem>>, vector<1x8x16xbf16>
    %198 = vector.shape_cast %197 : vector<1x8x16xbf16> to vector<8x16xbf16>
    %cst_182 = arith.constant dense<0.000000e+00> : vector<8x495xf32>
    %199 = tpu.matmul %198, %196, %cst_182 {dimension_numbers = #tpu.dot_dimension_numbers<[1], [0], [0], [1], [0, 0, 1, 1], [], []>} : vector<8x16xbf16>, vector<16x495xbf16>, vector<8x495xf32> -> vector<8x495xf32>
    %200 = arith.addf %195, %199 : vector<8x495xf32>
    %c0_183 = arith.constant 0 : index
    %c44_184 = arith.constant 44 : index
    %201 = vector.load %arg15[%c0_183, %c44_184] : memref<16x585xbf16, #tpu.memory_space<vmem>>, vector<16x495xbf16>
    %c3_185 = arith.constant 3 : index
    %c0_186 = arith.constant 0 : index
    %c0_187 = arith.constant 0 : index
    %202 = vector.load %arg9[%c3_185, %c0_186, %c0_187] : memref<9x8x16xbf16, #tpu.memory_space<vmem>>, vector<1x8x16xbf16>
    %203 = vector.shape_cast %202 : vector<1x8x16xbf16> to vector<8x16xbf16>
    %cst_188 = arith.constant dense<0.000000e+00> : vector<8x495xf32>
    %204 = tpu.matmul %203, %201, %cst_188 {dimension_numbers = #tpu.dot_dimension_numbers<[1], [0], [0], [1], [0, 0, 1, 1], [], []>} : vector<8x16xbf16>, vector<16x495xbf16>, vector<8x495xf32> -> vector<8x495xf32>
    %205 = arith.addf %200, %204 : vector<8x495xf32>
    %c0_189 = arith.constant 0 : index
    %c45_190 = arith.constant 45 : index
    %206 = vector.load %arg15[%c0_189, %c45_190] : memref<16x585xbf16, #tpu.memory_space<vmem>>, vector<16x495xbf16>
    %c4_191 = arith.constant 4 : index
    %c0_192 = arith.constant 0 : index
    %c0_193 = arith.constant 0 : index
    %207 = vector.load %arg9[%c4_191, %c0_192, %c0_193] : memref<9x8x16xbf16, #tpu.memory_space<vmem>>, vector<1x8x16xbf16>
    %208 = vector.shape_cast %207 : vector<1x8x16xbf16> to vector<8x16xbf16>
    %cst_194 = arith.constant dense<0.000000e+00> : vector<8x495xf32>
    %209 = tpu.matmul %208, %206, %cst_194 {dimension_numbers = #tpu.dot_dimension_numbers<[1], [0], [0], [1], [0, 0, 1, 1], [], []>} : vector<8x16xbf16>, vector<16x495xbf16>, vector<8x495xf32> -> vector<8x495xf32>
    %210 = arith.addf %205, %209 : vector<8x495xf32>
    %c0_195 = arith.constant 0 : index
    %c46_196 = arith.constant 46 : index
    %211 = vector.load %arg15[%c0_195, %c46_196] : memref<16x585xbf16, #tpu.memory_space<vmem>>, vector<16x495xbf16>
    %c5_197 = arith.constant 5 : index
    %c0_198 = arith.constant 0 : index
    %c0_199 = arith.constant 0 : index
    %212 = vector.load %arg9[%c5_197, %c0_198, %c0_199] : memref<9x8x16xbf16, #tpu.memory_space<vmem>>, vector<1x8x16xbf16>
    %213 = vector.shape_cast %212 : vector<1x8x16xbf16> to vector<8x16xbf16>
    %cst_200 = arith.constant dense<0.000000e+00> : vector<8x495xf32>
    %214 = tpu.matmul %213, %211, %cst_200 {dimension_numbers = #tpu.dot_dimension_numbers<[1], [0], [0], [1], [0, 0, 1, 1], [], []>} : vector<8x16xbf16>, vector<16x495xbf16>, vector<8x495xf32> -> vector<8x495xf32>
    %215 = arith.addf %210, %214 : vector<8x495xf32>
    %c0_201 = arith.constant 0 : index
    %c59_202 = arith.constant 59 : index
    %216 = vector.load %arg15[%c0_201, %c59_202] : memref<16x585xbf16, #tpu.memory_space<vmem>>, vector<16x495xbf16>
    %c6_203 = arith.constant 6 : index
    %c0_204 = arith.constant 0 : index
    %c0_205 = arith.constant 0 : index
    %217 = vector.load %arg9[%c6_203, %c0_204, %c0_205] : memref<9x8x16xbf16, #tpu.memory_space<vmem>>, vector<1x8x16xbf16>
    %218 = vector.shape_cast %217 : vector<1x8x16xbf16> to vector<8x16xbf16>
    %cst_206 = arith.constant dense<0.000000e+00> : vector<8x495xf32>
    %219 = tpu.matmul %218, %216, %cst_206 {dimension_numbers = #tpu.dot_dimension_numbers<[1], [0], [0], [1], [0, 0, 1, 1], [], []>} : vector<8x16xbf16>, vector<16x495xbf16>, vector<8x495xf32> -> vector<8x495xf32>
    %220 = arith.addf %215, %219 : vector<8x495xf32>
    %c0_207 = arith.constant 0 : index
    %c60_208 = arith.constant 60 : index
    %221 = vector.load %arg15[%c0_207, %c60_208] : memref<16x585xbf16, #tpu.memory_space<vmem>>, vector<16x495xbf16>
    %c7_209 = arith.constant 7 : index
    %c0_210 = arith.constant 0 : index
    %c0_211 = arith.constant 0 : index
    %222 = vector.load %arg9[%c7_209, %c0_210, %c0_211] : memref<9x8x16xbf16, #tpu.memory_space<vmem>>, vector<1x8x16xbf16>
    %223 = vector.shape_cast %222 : vector<1x8x16xbf16> to vector<8x16xbf16>
    %cst_212 = arith.constant dense<0.000000e+00> : vector<8x495xf32>
    %224 = tpu.matmul %223, %221, %cst_212 {dimension_numbers = #tpu.dot_dimension_numbers<[1], [0], [0], [1], [0, 0, 1, 1], [], []>} : vector<8x16xbf16>, vector<16x495xbf16>, vector<8x495xf32> -> vector<8x495xf32>
    %225 = arith.addf %220, %224 : vector<8x495xf32>
    %c0_213 = arith.constant 0 : index
    %c61_214 = arith.constant 61 : index
    %226 = vector.load %arg15[%c0_213, %c61_214] : memref<16x585xbf16, #tpu.memory_space<vmem>>, vector<16x495xbf16>
    %c8_215 = arith.constant 8 : index
    %c0_216 = arith.constant 0 : index
    %c0_217 = arith.constant 0 : index
    %227 = vector.load %arg9[%c8_215, %c0_216, %c0_217] : memref<9x8x16xbf16, #tpu.memory_space<vmem>>, vector<1x8x16xbf16>
    %228 = vector.shape_cast %227 : vector<1x8x16xbf16> to vector<8x16xbf16>
    %cst_218 = arith.constant dense<0.000000e+00> : vector<8x495xf32>
    %229 = tpu.matmul %228, %226, %cst_218 {dimension_numbers = #tpu.dot_dimension_numbers<[1], [0], [0], [1], [0, 0, 1, 1], [], []>} : vector<8x16xbf16>, vector<16x495xbf16>, vector<8x495xf32> -> vector<8x495xf32>
    %230 = arith.addf %225, %229 : vector<8x495xf32>
    %c0_219 = arith.constant 0 : index
    %c0_220 = arith.constant 0 : index
    %231 = vector.load %arg10[%c0_219, %c0_220] : memref<8x1xf32, #tpu.memory_space<vmem>>, vector<8x1xf32>
    %232 = vector.broadcast %231 : vector<8x1xf32> to vector<8x495xf32>
    %233 = arith.addf %230, %232 : vector<8x495xf32>
    %234 = vector.broadcast %0 : vector<1x495xf32> to vector<8x495xf32>
    %235 = arith.mulf %233, %234 : vector<8x495xf32>
    %c0_221 = arith.constant 0 : index
    %c0_222 = arith.constant 0 : index
    %c0_223 = arith.constant 0 : index
    %236 = vector.load %arg14[%c0_221, %c0_222, %c0_223] : memref<1x8x495xf32, #tpu.memory_space<vmem>>, vector<1x8x495xf32>
    %237 = vector.shape_cast %236 : vector<1x8x495xf32> to vector<8x495xf32>
    %238 = vector.shape_cast %235 : vector<8x495xf32> to vector<1x8x495xf32>
    tpu.vector_store %arg14[%c0_221, %c0_222, %c0_223], %238 {strides = array<i32>} : memref<1x8x495xf32, #tpu.memory_space<vmem>>, vector<1x8x495xf32>,
    return
  }
  func.func @transform_0(%arg0: i32) -> (i32, i32, i32) {
    %c0_i32 = arith.constant 0 : i32
    %c0_i32_0 = arith.constant 0 : i32
    %c0_i32_1 = arith.constant 0 : i32
    return %arg0, %c0_i32, %c0_i32_0 : i32, i32, i32
  }
  func.func @transform_1(%arg0: i32) -> (i32, i32) {
    %c0_i32 = arith.constant 0 : i32
    %c0_i32_0 = arith.constant 0 : i32
    %c0_i32_1 = arith.constant 0 : i32
    return %c0_i32, %c0_i32_0 : i32, i32
  }
  func.func @transform_2(%arg0: i32) -> (i32, i32, i32) {
    %c0_i32 = arith.constant 0 : i32
    %c0_i32_0 = arith.constant 0 : i32
    %c0_i32_1 = arith.constant 0 : i32
    %c0_i32_2 = arith.constant 0 : i32
    return %c0_i32, %c0_i32_0, %c0_i32_1 : i32, i32, i32
  }
  func.func @transform_3(%arg0: i32) -> (i32, i32) {
    %c0_i32 = arith.constant 0 : i32
    %c0_i32_0 = arith.constant 0 : i32
    %c0_i32_1 = arith.constant 0 : i32
    return %c0_i32, %c0_i32_0 : i32, i32
  }
  func.func @transform_4(%arg0: i32) -> (i32, i32, i32) {
    %c0_i32 = arith.constant 0 : i32
    %c0_i32_0 = arith.constant 0 : i32
    %c0_i32_1 = arith.constant 0 : i32
    %c0_i32_2 = arith.constant 0 : i32
    return %c0_i32, %c0_i32_0, %c0_i32_1 : i32, i32, i32
  }
  func.func @transform_5(%arg0: i32) -> (i32, i32) {
    %c0_i32 = arith.constant 0 : i32
    %c0_i32_0 = arith.constant 0 : i32
    %c0_i32_1 = arith.constant 0 : i32
    return %c0_i32, %c0_i32_0 : i32, i32
  }
  func.func @transform_6(%arg0: i32) -> (i32, i32, i32) {
    %c0_i32 = arith.constant 0 : i32
    %c0_i32_0 = arith.constant 0 : i32
    %c0_i32_1 = arith.constant 0 : i32
    %c0_i32_2 = arith.constant 0 : i32
    return %c0_i32, %c0_i32_0, %c0_i32_1 : i32, i32, i32
  }
  func.func @transform_7(%arg0: i32) -> (i32, i32) {
    %c0_i32 = arith.constant 0 : i32
    %c0_i32_0 = arith.constant 0 : i32
    %c0_i32_1 = arith.constant 0 : i32
    return %c0_i32, %c0_i32_0 : i32, i32
  }
  func.func @transform_8(%arg0: i32) -> (i32, i32, i32) {
    %c0_i32 = arith.constant 0 : i32
    %c0_i32_0 = arith.constant 0 : i32
    %c0_i32_1 = arith.constant 0 : i32
    %c0_i32_2 = arith.constant 0 : i32
    return %c0_i32, %c0_i32_0, %c0_i32_1 : i32, i32, i32
  }
  func.func @transform_9(%arg0: i32) -> (i32, i32) {
    %c0_i32 = arith.constant 0 : i32
    %c0_i32_0 = arith.constant 0 : i32
    %c0_i32_1 = arith.constant 0 : i32
    return %c0_i32, %c0_i32_0 : i32, i32
  }
  func.func @transform_10(%arg0: i32) -> (i32, i32, i32) {
    %c0_i32 = arith.constant 0 : i32
    %c0_i32_0 = arith.constant 0 : i32
    %c0_i32_1 = arith.constant 0 : i32
    return %arg0, %c0_i32, %c0_i32_0 : i32, i32, i32
  }
  func.func @transform_11(%arg0: i32) -> (i32, i32, i32) {
    %c0_i32 = arith.constant 0 : i32
    %c0_i32_0 = arith.constant 0 : i32
    %c0_i32_1 = arith.constant 0 : i32
    return %arg0, %c0_i32, %c0_i32_0 : i32, i32, i32
  }
  func.func @transform_12(%arg0: i32) -> (i32, i32, i32) {
    %c0_i32 = arith.constant 0 : i32
    %c0_i32_0 = arith.constant 0 : i32
    %c0_i32_1 = arith.constant 0 : i32
    return %arg0, %c0_i32, %c0_i32_0 : i32, i32, i32
  }
  func.func @transform_13(%arg0: i32) -> (i32, i32, i32) {
    %c0_i32 = arith.constant 0 : i32
    %c0_i32_0 = arith.constant 0 : i32
    %c0_i32_1 = arith.constant 0 : i32
    return %arg0, %c0_i32, %c0_i32_0 : i32, i32, i32
  }
}

</mosaic_0001>

<llo_original>
// kernel: tpu_custom_call.1
$region0: #{tpu_custom_call.1}
  #allocation0 [shape = 'u32[]', space=smem, size = 0x4, offset = 0x4, fixed_abs, tag = 'smem constant byte address 0x4 - core index']
  #allocation1 [shape = 'u32[144,128]{1,0:T(1,128)}', space=vmem, size = 0x12000, scoped, tag = 'internal scratch']
  #allocation2 [shape = 'bf16[16,585]{1,0:T(16,128)(2,1)}', space=vmem, size = 0x5000, scoped, tag = 'scratch operand']
  #allocation3 [shape = 'bf16[16,585]{1,0:T(16,128)(2,1)}', space=vmem, size = 0x5000, scoped, tag = 'scratch operand']
  %s0 = inlined_call_operand.hbm [shape: bf16[2,8,525], index: 0, kind: input, shape index: {}]
  %s1 = inlined_call_operand.hbm [shape: f32[1,495], index: 1, kind: input, shape index: {}]
  %s2 = inlined_call_operand.vmem [shape: bf16[7,16,8], index: 2, kind: input, shape index: {}]
  %s3 = inlined_call_operand.vmem [shape: f32[16,1], index: 3, kind: input, shape index: {}]
  %s4 = inlined_call_operand.vmem [shape: bf16[9,16,16], index: 4, kind: input, shape index: {}]
  %s5 = inlined_call_operand.vmem [shape: f32[16,1], index: 5, kind: input, shape index: {}]
  %s6 = inlined_call_operand.vmem [shape: bf16[9,16,16], index: 6, kind: input, shape index: {}]
  %s7 = inlined_call_operand.vmem [shape: f32[16,1], index: 7, kind: input, shape index: {}]
  %s8 = inlined_call_operand.hbm [shape: bf16[9,8,16], index: 8, kind: input, shape index: {}]
  %s9 = inlined_call_operand.vmem [shape: f32[8,1], index: 9, kind: input, shape index: {}]
  %s10 = inlined_call_operand.hbm [shape: f32[2,16,495], index: 10, kind: output, shape index: {0}]
  %s11 = inlined_call_operand.hbm [shape: f32[2,16,495], index: 11, kind: output, shape index: {1}]
  %s12 = inlined_call_operand.hbm [shape: f32[2,16,495], index: 12, kind: output, shape index: {2}]
  %s13 = inlined_call_operand.hbm [shape: f32[2,8,495], index: 13, kind: output, shape index: {3}]
  %14 = xla_tuple %s10, %s11, %s12, %s13
  %s15 = sld [smem:[#allocation0]]
  $region109: #{tpu_custom_call.1} parent=0
    _
  %s17 = ssub.s32 1, %s15
  %s18 = scalar_select 0, %s17, %s15
  $region1: #{tpu_custom_call.1} parent=0
    #allocation4 [shape = 'u8[20480]{0}', space=vmem, size = 0x5000, scoped, tag = 'input window, operand 0']
    #allocation5 [shape = 's32[2]{0}', space=sflag, size = 0x8, scoped, tag = 'scoped memory for tpu_custom_call.1']
    #allocation6 [shape = 's32[2]{0}', space=sflag, size = 0x8, scoped, tag = 'scoped memory for tpu_custom_call.1']
    #allocation7 [shape = 'u8[2048]{0}', space=vmem, size = 0x800, scoped, tag = 'input window, operand 1, single buffered']
    #allocation8 [shape = 's32[1]{0}', space=sflag, size = 0x4, scoped, tag = 'scoped memory for tpu_custom_call.1']
    #allocation9 [shape = 'u8[18432]{0}', space=vmem, size = 0x4800, scoped, tag = 'input window, operand 8, single buffered']
    #allocation10 [shape = 'u8[65536]{0}', space=vmem, size = 0x10000, scoped, tag = 'output window, operand 0']
    #allocation11 [shape = 'u8[65536]{0}', space=vmem, size = 0x10000, scoped, tag = 'output window, operand 1']
    #allocation12 [shape = 's32[2]{0}', space=sflag, size = 0x8, scoped, tag = 'scoped memory for tpu_custom_call.1']
    #allocation13 [shape = 'u8[65536]{0}', space=vmem, size = 0x10000, scoped, tag = 'output window, operand 2']
    #allocation14 [shape = 'u8[32768]{0}', space=vmem, size = 0x8000, scoped, tag = 'output window, operand 3']
    #allocation15 [shape = 's32[2]{0}', space=sflag, size = 0x8, scoped, tag = 'scoped memory for tpu_custom_call.1']
    %19 = vsyncpa [#allocation5], 0
    %s20 = scalar_lea.sflag [#allocation5], 1
    %21 = vsyncpa %s20, 0
    %22 = vsyncpa [#allocation8], 0
    %23 = vsyncpa [#allocation6], 0
    %s24 = scalar_lea.sflag [#allocation6], 1
    %25 = vsyncpa %s24, 0
    %26 = vsyncpa [#allocation12], 0
    %s27 = scalar_lea.sflag [#allocation12], 1
    %28 = vsyncpa %s27, 0
    %29 = vsyncpa [#allocation15], 0
    %s30 = scalar_lea.sflag [#allocation15], 1
    %31 = vsyncpa %s30, 0
    loop: start=0, step=1, limit=4
    $region2: #{tpu_custom_call.1} parent=1 // loop_pre_header
      _
    $region3: #{tpu_custom_call.1} parent=1 // loop_header
      %s33 = sphi 0, %s37
      %p34 = scmp.ge.s32.totalorder %s33, 4
      %s43 = sphi 0, %s45
      %s46 = sphi 0, %s43
      %s47 = sphi 0, %s46
      %s63 = sphi 0, %s47
      %s67 = sphi 0, %s67
      %s69 = sphi 0, %s67
      %s70 = sphi 0, %s69
      %s84 = sphi 0, %s70
      %s88 = sphi 0, %s88
      %s90 = sphi 0, %s88
      %s91 = sphi 0, %s90
      %s105 = sphi 0, %s91
      %s109 = sphi 0, %s109
      %s111 = sphi 0, %s109
      %s112 = sphi 0, %s111
      %s126 = sphi 0, %s112
      %s130 = sphi 0, %s130
      %s132 = sphi 0, %s130
      %s133 = sphi 0, %s132
      %s147 = sphi 0, %s133
      %s151 = sphi 0, %s151
      %s153 = sphi 0, %s151
      %s154 = sphi 0, %s153
      %s168 = sphi 0, %s154
      %s172 = sphi 0, %s172
      %s174 = sphi 0, %s172
      %s175 = sphi 0, %s174
      %s189 = sphi 0, %s175
      %s193 = sphi 0, %s193
      %s195 = sphi 0, %s193
      %s196 = sphi 0, %s195
      %s210 = sphi 0, %s196
      %s214 = sphi 0, %s214
      %s216 = sphi 0, %s214
      %s217 = sphi 0, %s216
      %s231 = sphi 0, %s217
      %s235 = sphi 0, %s235
      %s237 = sphi 0, %s235
      %s238 = sphi 0, %s237
      %s252 = sphi 0, %s238
      %s258 = sphi 0, %s260
      %s261 = sphi 0, %s258
      %s262 = sphi 0, %s261
      %s278 = sphi 0, %s262
      %s284 = sphi 0, %s286
      %s287 = sphi 0, %s284
      %s288 = sphi 0, %s287
      %s304 = sphi 0, %s288
      %s310 = sphi 0, %s312
      %s313 = sphi 0, %s310
      %s314 = sphi 0, %s313
      %s330 = sphi 0, %s314
      %s336 = sphi 0, %s338
      %s339 = sphi 0, %s336
      %s340 = sphi 0, %s339
      %s356 = sphi 0, %s340
    $region4: #{tpu_custom_call.1} parent=1 // loop_header_branch
      %36 = sbr.rel (%p34) target = $region8
    $region5: #{tpu_custom_call.1} parent=1 // loop_body
      %s38 = ssub.s32 %s33, 1
      %s39 = ssub.s32 %s33, 2
      %s40 = sadd.s32 %s33, 1
      %s41 = ssub.s32 %s33, %s40
      %p42 = scmp.eq.s32.totalorder %s41, 0
      %s44 = sadd.s32 %s43, 1
      %s45 = scalar_select %p42, %s43, %s44
      %p48 = pneg %p42
      %p49 = scmp.eq.s32.totalorder %s33, 1
      %p50 = por %p48, %p49
      %p51 = scmp.ne.s32.totalorder %s43, %s46
      %p52 = scmp.eq.s32.totalorder %s33, 0
      %p53 = por %p51, %p52
      %p54 = scmp.ne.s32.totalorder %s43, %s46
      %p55 = scmp.eq.s32.totalorder %s38, 1
      %p56 = por %p54, %p55
      %p57 = scmp.ne.s32.totalorder %s46, %s47
      %p58 = scmp.eq.s32.totalorder %s38, 0
      %p59 = por %p57, %p58
      %p60 = scmp.ne.s32.totalorder %s46, %s47
      %p61 = scmp.eq.s32.totalorder %s39, 1
      %p62 = por %p60, %p61
      %p64 = scmp.ne.s32.totalorder %s47, %s63
      %p65 = scmp.eq.s32.totalorder %s39, 0
      %p66 = por %p64, %p65
      %s68 = sadd.s32 %s67, 1
      %p71 = scmp.eq.s32.totalorder %s33, 1
      %p72 = scmp.ne.s32.totalorder %s67, %s69
      %p73 = scmp.eq.s32.totalorder %s33, 0
      %p74 = por %p72, %p73
      %p75 = scmp.ne.s32.totalorder %s67, %s69
      %p76 = scmp.eq.s32.totalorder %s38, 1
      %p77 = por %p75, %p76
      %p78 = scmp.ne.s32.totalorder %s69, %s70
      %p79 = scmp.eq.s32.totalorder %s38, 0
      %p80 = por %p78, %p79
      %p81 = scmp.ne.s32.totalorder %s69, %s70
      %p82 = scmp.eq.s32.totalorder %s39, 1
      %p83 = por %p81, %p82
      %p85 = scmp.ne.s32.totalorder %s70, %s84
      %p86 = scmp.eq.s32.totalorder %s39, 0
      %p87 = por %p85, %p86
      %s89 = sadd.s32 %s88, 1
      %p92 = scmp.eq.s32.totalorder %s33, 1
      %p93 = scmp.ne.s32.totalorder %s88, %s90
      %p94 = scmp.eq.s32.totalorder %s33, 0
      %p95 = por %p93, %p94
      %p96 = scmp.ne.s32.totalorder %s88, %s90
      %p97 = scmp.eq.s32.totalorder %s38, 1
      %p98 = por %p96, %p97
      %p99 = scmp.ne.s32.totalorder %s90, %s91
      %p100 = scmp.eq.s32.totalorder %s38, 0
      %p101 = por %p99, %p100
      %p102 = scmp.ne.s32.totalorder %s90, %s91
      %p103 = scmp.eq.s32.totalorder %s39, 1
      %p104 = por %p102, %p103
      %p106 = scmp.ne.s32.totalorder %s91, %s105
      %p107 = scmp.eq.s32.totalorder %s39, 0
      %p108 = por %p106, %p107
      %s110 = sadd.s32 %s109, 1
      %p113 = scmp.eq.s32.totalorder %s33, 1
      %p114 = scmp.ne.s32.totalorder %s109, %s111
      %p115 = scmp.eq.s32.totalorder %s33, 0
      %p116 = por %p114, %p115
      %p117 = scmp.ne.s32.totalorder %s109, %s111
      %p118 = scmp.eq.s32.totalorder %s38, 1
      %p119 = por %p117, %p118
      %p120 = scmp.ne.s32.totalorder %s111, %s112
      %p121 = scmp.eq.s32.totalorder %s38, 0
      %p122 = por %p120, %p121
      %p123 = scmp.ne.s32.totalorder %s111, %s112
      %p124 = scmp.eq.s32.totalorder %s39, 1
      %p125 = por %p123, %p124
      %p127 = scmp.ne.s32.totalorder %s112, %s126
      %p128 = scmp.eq.s32.totalorder %s39, 0
      %p129 = por %p127, %p128
      %s131 = sadd.s32 %s130, 1
      %p134 = scmp.eq.s32.totalorder %s33, 1
      %p135 = scmp.ne.s32.totalorder %s130, %s132
      %p136 = scmp.eq.s32.totalorder %s33, 0
      %p137 = por %p135, %p136
      %p138 = scmp.ne.s32.totalorder %s130, %s132
      %p139 = scmp.eq.s32.totalorder %s38, 1
      %p140 = por %p138, %p139
      %p141 = scmp.ne.s32.totalorder %s132, %s133
      %p142 = scmp.eq.s32.totalorder %s38, 0
      %p143 = por %p141, %p142
      %p144 = scmp.ne.s32.totalorder %s132, %s133
      %p145 = scmp.eq.s32.totalorder %s39, 1
      %p146 = por %p144, %p145
      %p148 = scmp.ne.s32.totalorder %s133, %s147
      %p149 = scmp.eq.s32.totalorder %s39, 0
      %p150 = por %p148, %p149
      %s152 = sadd.s32 %s151, 1
      %p155 = scmp.eq.s32.totalorder %s33, 1
      %p156 = scmp.ne.s32.totalorder %s151, %s153
      %p157 = scmp.eq.s32.totalorder %s33, 0
      %p158 = por %p156, %p157
      %p159 = scmp.ne.s32.totalorder %s151, %s153
      %p160 = scmp.eq.s32.totalorder %s38, 1
      %p161 = por %p159, %p160
      %p162 = scmp.ne.s32.totalorder %s153, %s154
      %p163 = scmp.eq.s32.totalorder %s38, 0
      %p164 = por %p162, %p163
      %p165 = scmp.ne.s32.totalorder %s153, %s154
      %p166 = scmp.eq.s32.totalorder %s39, 1
      %p167 = por %p165, %p166
      %p169 = scmp.ne.s32.totalorder %s154, %s168
      %p170 = scmp.eq.s32.totalorder %s39, 0
      %p171 = por %p169, %p170
      %s173 = sadd.s32 %s172, 1
      %p176 = scmp.eq.s32.totalorder %s33, 1
      %p177 = scmp.ne.s32.totalorder %s172, %s174
      %p178 = scmp.eq.s32.totalorder %s33, 0
      %p179 = por %p177, %p178
      %p180 = scmp.ne.s32.totalorder %s172, %s174
      %p181 = scmp.eq.s32.totalorder %s38, 1
      %p182 = por %p180, %p181
      %p183 = scmp.ne.s32.totalorder %s174, %s175
      %p184 = scmp.eq.s32.totalorder %s38, 0
      %p185 = por %p183, %p184
      %p186 = scmp.ne.s32.totalorder %s174, %s175
      %p187 = scmp.eq.s32.totalorder %s39, 1
      %p188 = por %p186, %p187
      %p190 = scmp.ne.s32.totalorder %s175, %s189
      %p191 = scmp.eq.s32.totalorder %s39, 0
      %p192 = por %p190, %p191
      %s194 = sadd.s32 %s193, 1
      %p197 = scmp.eq.s32.totalorder %s33, 1
      %p198 = scmp.ne.s32.totalorder %s193, %s195
      %p199 = scmp.eq.s32.totalorder %s33, 0
      %p200 = por %p198, %p199
      %p201 = scmp.ne.s32.totalorder %s193, %s195
      %p202 = scmp.eq.s32.totalorder %s38, 1
      %p203 = por %p201, %p202
      %p204 = scmp.ne.s32.totalorder %s195, %s196
      %p205 = scmp.eq.s32.totalorder %s38, 0
      %p206 = por %p204, %p205
      %p207 = scmp.ne.s32.totalorder %s195, %s196
      %p208 = scmp.eq.s32.totalorder %s39, 1
      %p209 = por %p207, %p208
      %p211 = scmp.ne.s32.totalorder %s196, %s210
      %p212 = scmp.eq.s32.totalorder %s39, 0
      %p213 = por %p211, %p212
      %s215 = sadd.s32 %s214, 1
      %p218 = scmp.eq.s32.totalorder %s33, 1
      %p219 = scmp.ne.s32.totalorder %s214, %s216
      %p220 = scmp.eq.s32.totalorder %s33, 0
      %p221 = por %p219, %p220
      %p222 = scmp.ne.s32.totalorder %s214, %s216
      %p223 = scmp.eq.s32.totalorder %s38, 1
      %p224 = por %p222, %p223
      %p225 = scmp.ne.s32.totalorder %s216, %s217
      %p226 = scmp.eq.s32.totalorder %s38, 0
      %p227 = por %p225, %p226
      %p228 = scmp.ne.s32.totalorder %s216, %s217
      %p229 = scmp.eq.s32.totalorder %s39, 1
      %p230 = por %p228, %p229
      %p232 = scmp.ne.s32.totalorder %s217, %s231
      %p233 = scmp.eq.s32.totalorder %s39, 0
      %p234 = por %p232, %p233
      %s236 = sadd.s32 %s235, 1
      %p239 = scmp.eq.s32.totalorder %s33, 1
      %p240 = scmp.ne.s32.totalorder %s235, %s237
      %p241 = scmp.eq.s32.totalorder %s33, 0
      %p242 = por %p240, %p241
      %p243 = scmp.ne.s32.totalorder %s235, %s237
      %p244 = scmp.eq.s32.totalorder %s38, 1
      %p245 = por %p243, %p244
      %p246 = scmp.ne.s32.totalorder %s237, %s238
      %p247 = scmp.eq.s32.totalorder %s38, 0
      %p248 = por %p246, %p247
      %p249 = scmp.ne.s32.totalorder %s237, %s238
      %p250 = scmp.eq.s32.totalorder %s39, 1
      %p251 = por %p249, %p250
      %p253 = scmp.ne.s32.totalorder %s238, %s252
      %p254 = scmp.eq.s32.totalorder %s39, 0
      %p255 = por %p253, %p254
      %s256 = ssub.s32 %s33, %s40
      %p257 = scmp.eq.s32.totalorder %s256, 0
      %s259 = sadd.s32 %s258, 1
      %s260 = scalar_select %p257, %s258, %s259
      %p263 = pneg %p257
      %p264 = scmp.eq.s32.totalorder %s33, 1
      %p265 = por %p263, %p264
      %p266 = scmp.ne.s32.totalorder %s258, %s261
      %p267 = scmp.eq.s32.totalorder %s33, 0
      %p268 = por %p266, %p267
      %p269 = scmp.ne.s32.totalorder %s258, %s261
      %p270 = scmp.eq.s32.totalorder %s38, 1
      %p271 = por %p269, %p270
      %p272 = scmp.ne.s32.totalorder %s261, %s262
      %p273 = scmp.eq.s32.totalorder %s38, 0
      %p274 = por %p272, %p273
      %p275 = scmp.ne.s32.totalorder %s261, %s262
      %p276 = scmp.eq.s32.totalorder %s39, 1
      %p277 = por %p275, %p276
      %p279 = scmp.ne.s32.totalorder %s262, %s278
      %p280 = scmp.eq.s32.totalorder %s39, 0
      %p281 = por %p279, %p280
      %s282 = ssub.s32 %s33, %s40
      %p283 = scmp.eq.s32.totalorder %s282, 0
      %s285 = sadd.s32 %s284, 1
      %s286 = scalar_select %p283, %s284, %s285
      %p289 = pneg %p283
      %p290 = scmp.eq.s32.totalorder %s33, 1
      %p291 = por %p289, %p290
      %p292 = scmp.ne.s32.totalorder %s284, %s287
      %p293 = scmp.eq.s32.totalorder %s33, 0
      %p294 = por %p292, %p293
      %p295 = scmp.ne.s32.totalorder %s284, %s287
      %p296 = scmp.eq.s32.totalorder %s38, 1
      %p297 = por %p295, %p296
      %p298 = scmp.ne.s32.totalorder %s287, %s288
      %p299 = scmp.eq.s32.totalorder %s38, 0
      %p300 = por %p298, %p299
      %p301 = scmp.ne.s32.totalorder %s287, %s288
      %p302 = scmp.eq.s32.totalorder %s39, 1
      %p303 = por %p301, %p302
      %p305 = scmp.ne.s32.totalorder %s288, %s304
      %p306 = scmp.eq.s32.totalorder %s39, 0
      %p307 = por %p305, %p306
      %s308 = ssub.s32 %s33, %s40
      %p309 = scmp.eq.s32.totalorder %s308, 0
      %s311 = sadd.s32 %s310, 1
      %s312 = scalar_select %p309, %s310, %s311
      %p315 = pneg %p309
      %p316 = scmp.eq.s32.totalorder %s33, 1
      %p317 = por %p315, %p316
      %p318 = scmp.ne.s32.totalorder %s310, %s313
      %p319 = scmp.eq.s32.totalorder %s33, 0
      %p320 = por %p318, %p319
      %p321 = scmp.ne.s32.totalorder %s310, %s313
      %p322 = scmp.eq.s32.totalorder %s38, 1
      %p323 = por %p321, %p322
      %p324 = scmp.ne.s32.totalorder %s313, %s314
      %p325 = scmp.eq.s32.totalorder %s38, 0
      %p326 = por %p324, %p325
      %p327 = scmp.ne.s32.totalorder %s313, %s314
      %p328 = scmp.eq.s32.totalorder %s39, 1
      %p329 = por %p327, %p328
      %p331 = scmp.ne.s32.totalorder %s314, %s330
      %p332 = scmp.eq.s32.totalorder %s39, 0
      %p333 = por %p331, %p332
      %s334 = ssub.s32 %s33, %s40
      %p335 = scmp.eq.s32.totalorder %s334, 0
      %s337 = sadd.s32 %s336, 1
      %s338 = scalar_select %p335, %s336, %s337
      %p341 = pneg %p335
      %p342 = scmp.eq.s32.totalorder %s33, 1
      %p343 = por %p341, %p342
      %p344 = scmp.ne.s32.totalorder %s336, %s339
      %p345 = scmp.eq.s32.totalorder %s33, 0
      %p346 = por %p344, %p345
      %p347 = scmp.ne.s32.totalorder %s336, %s339
      %p348 = scmp.eq.s32.totalorder %s38, 1
      %p349 = por %p347, %p348
      %p350 = scmp.ne.s32.totalorder %s339, %s340
      %p351 = scmp.eq.s32.totalorder %s38, 0
      %p352 = por %p350, %p351
      %p353 = scmp.ne.s32.totalorder %s339, %s340
      %p354 = scmp.eq.s32.totalorder %s39, 1
      %p355 = por %p353, %p354
      %p357 = scmp.ne.s32.totalorder %s340, %s356
      %p358 = scmp.eq.s32.totalorder %s39, 0
      %p359 = por %p357, %p358
      %p360 = scmp.le.s32.totalorder 1, %s33
      %p361 = scmp.lt.s32.totalorder %s33, 3
      %p362 = pnand %p360, %p361
      %p363 = pneg %p362
      // Predicated region
      $region9: #{tpu_custom_call.1} parent=5 // pred_check
        _
      $region10: #{tpu_custom_call.1} parent=5 // pred_check_branch
        %365 = sbr.rel (%p362) target = $region12
      $region11: #{tpu_custom_call.1} parent=5 // pred_region
        %s366 = ssub.s32 %s33, 1
        // Predicated region
        $region13: #{tpu_custom_call.1} parent=11 // pred_check
          %p367 = pneg %p80
        $region14: #{tpu_custom_call.1} parent=11 // pred_check_branch
          %369 = sbr.rel (%p367) target = $region16
        $region15: #{tpu_custom_call.1} parent=11 // pred_region
          %s371 = ssub.s32 64, 64
          %372 = vsyncadd [#allocation8], %s371
          %s374 = sshll.u32 [#allocation7], 4
          %s375 = int_to_ptr.vmem [resolvable:$true] %s374
          %377 = dma.hbm_to_vmem [thread:$0]  %s1, 64, %s375, [#allocation8]
        $region16: #{tpu_custom_call.1} parent=11 // pred_fallthru
          _
        // Predicated region
        $region17: #{tpu_custom_call.1} parent=11 // pred_check
          %p378 = pneg %p101
        $region18: #{tpu_custom_call.1} parent=11 // pred_check_branch
          %380 = sbr.rel (%p378) target = $region20
        $region19: #{tpu_custom_call.1} parent=11 // pred_region
          _
        $region20: #{tpu_custom_call.1} parent=11 // pred_fallthru
          _
        // Predicated region
        $region21: #{tpu_custom_call.1} parent=11 // pred_check
          %p381 = pneg %p122
        $region22: #{tpu_custom_call.1} parent=11 // pred_check_branch
          %383 = sbr.rel (%p381) target = $region24
        $region23: #{tpu_custom_call.1} parent=11 // pred_region
          _
        $region24: #{tpu_custom_call.1} parent=11 // pred_fallthru
          _
        // Predicated region
        $region25: #{tpu_custom_call.1} parent=11 // pred_check
          %p384 = pneg %p143
        $region26: #{tpu_custom_call.1} parent=11 // pred_check_branch
          %386 = sbr.rel (%p384) target = $region28
        $region27: #{tpu_custom_call.1} parent=11 // pred_region
          _
        $region28: #{tpu_custom_call.1} parent=11 // pred_fallthru
          _
        // Predicated region
        $region29: #{tpu_custom_call.1} parent=11 // pred_check
          %p387 = pneg %p164
        $region30: #{tpu_custom_call.1} parent=11 // pred_check_branch
          %389 = sbr.rel (%p387) target = $region32
        $region31: #{tpu_custom_call.1} parent=11 // pred_region
          _
        $region32: #{tpu_custom_call.1} parent=11 // pred_fallthru
          _
        // Predicated region
        $region33: #{tpu_custom_call.1} parent=11 // pred_check
          %p390 = pneg %p185
        $region34: #{tpu_custom_call.1} parent=11 // pred_check_branch
          %392 = sbr.rel (%p390) target = $region36
        $region35: #{tpu_custom_call.1} parent=11 // pred_region
          _
        $region36: #{tpu_custom_call.1} parent=11 // pred_fallthru
          _
        // Predicated region
        $region37: #{tpu_custom_call.1} parent=11 // pred_check
          %p393 = pneg %p206
        $region38: #{tpu_custom_call.1} parent=11 // pred_check_branch
          %395 = sbr.rel (%p393) target = $region40
        $region39: #{tpu_custom_call.1} parent=11 // pred_region
          _
        $region40: #{tpu_custom_call.1} parent=11 // pred_fallthru
          _
        // Predicated region
        $region41: #{tpu_custom_call.1} parent=11 // pred_check
          %p396 = pneg %p227
        $region42: #{tpu_custom_call.1} parent=11 // pred_check_branch
          %398 = sbr.rel (%p396) target = $region44
        $region43: #{tpu_custom_call.1} parent=11 // pred_region
          %s400 = ssub.s32 576, 576
          %401 = vsyncadd [#allocation8], %s400
          %s402 = sshll.u32 [#allocation9], 4
          %s403 = int_to_ptr.vmem [resolvable:$true] %s402
          %408 = dma.hbm_to_vmem [thread:$0]  %s8, 576, %s403, [#allocation8], 64, 64, 4
        $region44: #{tpu_custom_call.1} parent=11 // pred_fallthru
          _
        // Predicated region
        $region45: #{tpu_custom_call.1} parent=11 // pred_check
          %p409 = pneg %p248
        $region46: #{tpu_custom_call.1} parent=11 // pred_check_branch
          %411 = sbr.rel (%p409) target = $region48
        $region47: #{tpu_custom_call.1} parent=11 // pred_region
          _
        $region48: #{tpu_custom_call.1} parent=11 // pred_fallthru
          _
      $region12: #{tpu_custom_call.1} parent=5 // pred_fallthru
        _
      %p412 = scmp.lt.s32.totalorder %s33, 2
      // Predicated region
      $region49: #{tpu_custom_call.1} parent=5 // pred_check
        %p413 = pneg %p412
      $region50: #{tpu_custom_call.1} parent=5 // pred_check_branch
        %415 = sbr.rel (%p413) target = $region52
      $region51: #{tpu_custom_call.1} parent=5 // pred_region
        // Predicated region
        $region53: #{tpu_custom_call.1} parent=51 // pred_check
          %p416 = pneg %p53
        $region54: #{tpu_custom_call.1} parent=51 // pred_check_branch
          %418 = sbr.rel (%p416) target = $region56
        $region55: #{tpu_custom_call.1} parent=51 // pred_region
          %s419 = sand.u32 %s43, 1
          %s420 = scalar_lea.sflag [#allocation5], %s419
          %s421 = sand.u32 %s43, 1
          %s422 = smul.addr %s421, 20
          %s423 = scalar_lea.vmem [#allocation4], %s422
          %s425 = ssub.s32 320, 320
          %426 = vsyncadd %s420, %s425
          %s427 = smul.addr %s33, 5
          %s428 = smul.addr %s427, 64
          %s429 = scalar_lea.hbm %s0, %s428
          %s431 = sshll.u32 %s423, 4
          %s432 = int_to_ptr.vmem [resolvable:$true] %s431
          %434 = dma.hbm_to_vmem [thread:$0]  %s429, 320, %s432, %s420
        $region56: #{tpu_custom_call.1} parent=51 // pred_fallthru
          _
      $region52: #{tpu_custom_call.1} parent=5 // pred_fallthru
        _
      %p435 = scmp.le.s32.totalorder 1, %s33
      %p436 = scmp.lt.s32.totalorder %s33, 3
      %p437 = pnand %p435, %p436
      %p438 = pneg %p437
      // Predicated region
      $region57: #{tpu_custom_call.1} parent=5 // pred_check
        _
      $region58: #{tpu_custom_call.1} parent=5 // pred_check_branch
        %440 = sbr.rel (%p437) target = $region60
      $region59: #{tpu_custom_call.1} parent=5 // pred_region
        %s441 = ssub.s32 %s33, 1
        %s442 = sand.u32 %s46, 1
        %s443 = scalar_lea.sflag [#allocation5], %s442
        %s444 = sand.u32 %s46, 1
        %s445 = smul.addr %s444, 20
        %s446 = scalar_lea.vmem [#allocation4], %s445
        // Predicated region
        $region61: #{tpu_custom_call.1} parent=59 // pred_check
          %p447 = pneg %p59
        $region62: #{tpu_custom_call.1} parent=59 // pred_check_branch
          %449 = sbr.rel (%p447) target = $region64
        $region63: #{tpu_custom_call.1} parent=59 // pred_region
          %450 = dma.done %s443, 320
        $region64: #{tpu_custom_call.1} parent=59 // pred_fallthru
          _
        // Predicated region
        $region65: #{tpu_custom_call.1} parent=59 // pred_check
          %p451 = pneg %p80
        $region66: #{tpu_custom_call.1} parent=59 // pred_check_branch
          %453 = sbr.rel (%p451) target = $region68
        $region67: #{tpu_custom_call.1} parent=59 // pred_region
          %454 = dma.done [#allocation8], 64
        $region68: #{tpu_custom_call.1} parent=59 // pred_fallthru
          _
        // Predicated region
        $region69: #{tpu_custom_call.1} parent=59 // pred_check
          %p455 = pneg %p227
        $region70: #{tpu_custom_call.1} parent=59 // pred_check_branch
          %457 = sbr.rel (%p455) target = $region72
        $region71: #{tpu_custom_call.1} parent=59 // pred_region
          %458 = dma.done [#allocation8], 576
        $region72: #{tpu_custom_call.1} parent=59 // pred_fallthru
          _
        %s459 = sand.u32 %s46, 1
        %s460 = scalar_lea.sflag [#allocation5], %s459
        %s461 = sand.u32 %s46, 1
        %s462 = smul.addr %s461, 20
        %s463 = scalar_lea.vmem [#allocation4], %s462
        %p464 = pneg %p59
        %p465 = pneg %p56
        %p466 = pneg %p80
        %p467 = pneg %p77
        %p468 = pneg %p101
        %p469 = pneg %p98
        %p470 = pneg %p122
        %p471 = pneg %p119
        %p472 = pneg %p143
        %p473 = pneg %p140
        %p474 = pneg %p164
        %p475 = pneg %p161
        %p476 = pneg %p185
        %p477 = pneg %p182
        %p478 = pneg %p206
        %p479 = pneg %p203
        %p480 = pneg %p227
        %p481 = pneg %p224
        %p482 = pneg %p248
        %p483 = pneg %p245
        %p484 = pneg %p274
        %p485 = pneg %p271
        %s486 = sand.u32 %s261, 1
        %s487 = scalar_lea.sflag [#allocation6], %s486
        %s488 = sand.u32 %s261, 1
        %s489 = smul.addr %s488, 64
        %s490 = scalar_lea.vmem [#allocation10], %s489
        %p491 = pneg %p300
        %p492 = pneg %p297
        %s493 = sand.u32 %s38, 1
        %s494 = scalar_lea.sflag [#allocation12], %s493
        %s495 = sand.u32 %s287, 1
        %s496 = smul.addr %s495, 64
        %s497 = scalar_lea.vmem [#allocation11], %s496
        %p498 = pneg %p326
        %p499 = pneg %p323
        %s500 = sand.u32 %s38, 1
        %s501 = scalar_lea.sflag [#allocation12], %s500
        %s502 = sand.u32 %s313, 1
        %s503 = smul.addr %s502, 64
        %s504 = scalar_lea.vmem [#allocation13], %s503
        %p505 = pneg %p352
        %p506 = pneg %p349
        %s507 = sand.u32 %s339, 1
        %s508 = scalar_lea.sflag [#allocation15], %s507
        %s509 = sand.u32 %s339, 1
        %s510 = smul.addr %s509, 32
        %s511 = scalar_lea.vmem [#allocation14], %s510
        %v513 = vld [vmem:[#allocation7] sm:$0xf]
        %514 = vst [vmem:[#allocation2] sm:$0xff] 0
        %515 = vst [vmem:[#allocation2 + $0x8] sm:$0xff] 0
        %516 = vst [vmem:[#allocation2 + $0x10] sm:$0xff] 0
        %517 = vst [vmem:[#allocation2 + $0x18] sm:$0xff] 0
        %vm518 = vcmask 596992
        %519 = vst.msk [vmem:[#allocation2 + $0x20] sm:$0xff] %vm518, 0
        %520 = vst [vmem:[#allocation3] sm:$0xff] 0
        %521 = vst [vmem:[#allocation3 + $0x8] sm:$0xff] 0
        %522 = vst [vmem:[#allocation3 + $0x10] sm:$0xff] 0
        %523 = vst [vmem:[#allocation3 + $0x18] sm:$0xff] 0
        %524 = vst.msk [vmem:[#allocation3 + $0x20] sm:$0xff] %vm518, 0
        %v525 = vld [vmem:[%s446] sm:$0xff]
        %v526 = vld [vmem:[%s446 + $0x8] sm:$0xff]
        %v527 = vld [vmem:[%s2] sm:$0xf]
        %v528 = vld [vmem:[%s2 + $0x4] sm:$0xf]
        %s529 = scalar_lea.vmem %s2, 8
        %v530 = vld [vmem:[%s529] sm:$0xf]
        %v531 = vld [vmem:[%s529 + $0x4] sm:$0xf]
        %v534 = vunpack.c.l.b16 %v530
        %v535 = vunpack.c.l.b16 %v531
        %v536 = vpack.c.b16 %v535, %v534
        %v539 = vunpack.c.l.b16 %v525
        %v540 = vunpack.c.h.b16 %v525
        %v541 = vunpack.c.l.b16 %v526
        %v542 = vunpack.c.h.b16 %v526
        %v543 = vpack.c.b16 %v539, %v539
        %v544 = vpack.c.b16 %v540, %v540
        %v545 = vpack.c.b16 %v541, %v541
        %v546 = vpack.c.b16 %v542, %v542
        %547 = vrot.lane.b32.xlu0 %v543, 115
        %v548 = vpop.permute.xlu0 %547
        %549 = vrot.lane.b32.xlu0 %v544, 115
        %v550 = vpop.permute.xlu0 %549
        %551 = vrot.lane.b32.xlu0 %v545, 115
        %v552 = vpop.permute.xlu0 %551
        %553 = vrot.lane.b32.xlu0 %v546, 115
        %v554 = vpop.permute.xlu0 %553
        %vm555 = vcmask 941056
        %v556 = vsel %vm555, %v548, %v550
        %v557 = vsel %vm555, %v550, %v552
        %v558 = vsel %vm555, %v552, %v554
        %vm559 = vcmask 64512
        %v561 = vsel %vm559, %v536, 0
        %vm563 = vcmask 1043456
        %v565 = vsel %vm563, %v556, 0
        %v568 = vsel %vm563, %v557, 0
        %v571 = vsel %vm563, %v558, 0
        %v574 = vsel %vm563, %v554, 0
        %576 = vmatprep.subr.bf16.mxu0 %v568
        %577 = vmatpush1.bf16.msra.mxu0 %v565
        %578 = vmatprep.subr.bf16.mxu0 0
        %579 = vmatpush1.bf16.msra.mxu0 0
        %580 = vmatprep.subr.bf16.mxu0 0
        %581 = vmatpush1.bf16.msra.mxu0 0
        %582 = vmatprep.subr.bf16.mxu0 0
        %583 = vmatpush1.bf16.msra.mxu0 0
        %584 = vmatprep.subr.bf16.mxu0 0
        %585 = vmatpush1.bf16.msra.mxu0 0
        %586 = vmatprep.subr.bf16.mxu0 0
        %587 = vmatpush1.bf16.msra.mxu0 0
        %588 = vmatprep.subr.bf16.mxu0 0
        %589 = vmatpush1.bf16.msra.mxu0 0
        %590 = vmatprep.subr.bf16.mxu0 0
        %591 = vmatpush1.bf16.msra.mxu0 0
        %592 = vmatprep.subr.bf16.mxu0 0
        %593 = vmatpush1.bf16.msra.mxu0 0
        %594 = vmatprep.subr.bf16.mxu0 0
        %595 = vmatpush1.bf16.msra.mxu0 0
        %596 = vmatprep.subr.bf16.mxu0 0
        %597 = vmatpush1.bf16.msra.mxu0 0
        %598 = vmatprep.subr.bf16.mxu0 0
        %599 = vmatpush1.bf16.msra.mxu0 0
        %600 = vmatprep.subr.bf16.mxu0 0
        %601 = vmatpush1.bf16.msra.mxu0 0
        %602 = vmatprep.subr.bf16.mxu0 0
        %603 = vmatpush1.bf16.msra.mxu0 0
        %604 = vmatprep.subr.bf16.mxu0 0
        %605 = vmatpush1.bf16.msra.mxu0 0
        %606 = vmatprep.subr.bf16.mxu0 0
        %607 = vmatpush1.bf16.msra.mxu0 0
        %608 = vmatprep.mubr.bf16.mxu0 0
        %609 = vmatmul.mubr.bf16.gmra.mrb[0].mxu0 %v561
        %v610 = vpop.f32.mrb[0].mxu0
        %v611 = vadd.f32 0.0, %v610
        %v612 = vpop.f32.mrb[0].mxu0
        %v613 = vadd.f32 0.0, %v612
        %v614 = vpop.f32.mrb[0].mxu0
        %v615 = vadd.f32 0.0, %v614
        %v616 = vpop.f32.mrb[0].mxu0
        %v617 = vadd.f32 0.0, %v616
        %618 = vdwg.mxu0
        %619 = vmatprep.subr.bf16.mxu0 %v574
        %620 = vmatpush1.bf16.msra.mxu0 %v571
        %621 = vmatprep.subr.bf16.mxu0 0
        %622 = vmatpush1.bf16.msra.mxu0 0
        %623 = vmatprep.subr.bf16.mxu0 0
        %624 = vmatpush1.bf16.msra.mxu0 0
        %625 = vmatprep.subr.bf16.mxu0 0
        %626 = vmatpush1.bf16.msra.mxu0 0
        %627 = vmatprep.subr.bf16.mxu0 0
        %628 = vmatpush1.bf16.msra.mxu0 0
        %629 = vmatprep.subr.bf16.mxu0 0
        %630 = vmatpush1.bf16.msra.mxu0 0
        %631 = vmatprep.subr.bf16.mxu0 0
        %632 = vmatpush1.bf16.msra.mxu0 0
        %633 = vmatprep.subr.bf16.mxu0 0
        %634 = vmatpush1.bf16.msra.mxu0 0
        %635 = vmatprep.subr.bf16.mxu0 0
        %636 = vmatpush1.bf16.msra.mxu0 0
        %637 = vmatprep.subr.bf16.mxu0 0
        %638 = vmatpush1.bf16.msra.mxu0 0
        %639 = vmatprep.subr.bf16.mxu0 0
        %640 = vmatpush1.bf16.msra.mxu0 0
        %641 = vmatprep.subr.bf16.mxu0 0
        %642 = vmatpush1.bf16.msra.mxu0 0
        %643 = vmatprep.subr.bf16.mxu0 0
        %644 = vmatpush1.bf16.msra.mxu0 0
        %645 = vmatprep.subr.bf16.mxu0 0
        %646 = vmatpush1.bf16.msra.mxu0 0
        %647 = vmatprep.subr.bf16.mxu0 0
        %648 = vmatpush1.bf16.msra.mxu0 0
        %649 = vmatprep.subr.bf16.mxu0 0
        %650 = vmatpush1.bf16.msra.mxu0 0
        %651 = vmatprep.mubr.bf16.mxu0 0
        %652 = vmatmul.mubr.bf16.gmra.mrb[0].mxu0 %v561
        %v653 = vpop.f32.mrb[0].mxu0
        %v654 = vadd.f32 0.0, %v653
        %v655 = vpop.f32.mrb[0].mxu0
        %v656 = vadd.f32 0.0, %v655
        %v657 = vpop.f32.mrb[0].mxu0
        %v658 = vadd.f32 0.0, %v657
        %v659 = vpop.f32.mrb[0].mxu0
        %v660 = vadd.f32 0.0, %v659
        %661 = vdwg.mxu0
        %v664 = vunpack.c.l.b16 %v527
        %v665 = vunpack.c.l.b16 %v528
        %v666 = vpack.c.b16 %v665, %v664
        %667 = vrot.lane.b32.xlu0 %v543, 116
        %v668 = vpop.permute.xlu0 %667
        %669 = vrot.lane.b32.xlu0 %v544, 116
        %v670 = vpop.permute.xlu0 %669
        %671 = vrot.lane.b32.xlu0 %v545, 116
        %v672 = vpop.permute.xlu0 %671
        %673 = vrot.lane.b32.xlu0 %v546, 116
        %v674 = vpop.permute.xlu0 %673
        %vm675 = vcmask 949248
        %v676 = vsel %vm675, %v668, %v670
        %v677 = vsel %vm675, %v670, %v672
        %v678 = vsel %vm675, %v672, %v674
        %v680 = vsel %vm559, %v666, 0
        %v683 = vsel %vm563, %v676, 0
        %v686 = vsel %vm563, %v677, 0
        %v689 = vsel %vm563, %v678, 0
        %v692 = vsel %vm563, %v674, 0
        %694 = vmatprep.subr.bf16.mxu0 %v686
        %695 = vmatpush1.bf16.msra.mxu0 %v683
        %696 = vmatprep.subr.bf16.mxu0 0
        %697 = vmatpush1.bf16.msra.mxu0 0
        %698 = vmatprep.subr.bf16.mxu0 0
        %699 = vmatpush1.bf16.msra.mxu0 0
        %700 = vmatprep.subr.bf16.mxu0 0
        %701 = vmatpush1.bf16.msra.mxu0 0
        %702 = vmatprep.subr.bf16.mxu0 0
        %703 = vmatpush1.bf16.msra.mxu0 0
        %704 = vmatprep.subr.bf16.mxu0 0
        %705 = vmatpush1.bf16.msra.mxu0 0
        %706 = vmatprep.subr.bf16.mxu0 0
        %707 = vmatpush1.bf16.msra.mxu0 0
        %708 = vmatprep.subr.bf16.mxu0 0
        %709 = vmatpush1.bf16.msra.mxu0 0
        %710 = vmatprep.subr.bf16.mxu0 0
        %711 = vmatpush1.bf16.msra.mxu0 0
        %712 = vmatprep.subr.bf16.mxu0 0
        %713 = vmatpush1.bf16.msra.mxu0 0
        %714 = vmatprep.subr.bf16.mxu0 0
        %715 = vmatpush1.bf16.msra.mxu0 0
        %716 = vmatprep.subr.bf16.mxu0 0
        %717 = vmatpush1.bf16.msra.mxu0 0
        %718 = vmatprep.subr.bf16.mxu0 0
        %719 = vmatpush1.bf16.msra.mxu0 0
        %720 = vmatprep.subr.bf16.mxu0 0
        %721 = vmatpush1.bf16.msra.mxu0 0
        %722 = vmatprep.subr.bf16.mxu0 0
        %723 = vmatpush1.bf16.msra.mxu0 0
        %724 = vmatprep.subr.bf16.mxu0 0
        %725 = vmatpush1.bf16.msra.mxu0 0
        %726 = vmatprep.mubr.bf16.mxu0 0
        %727 = vmatmul.mubr.bf16.gmra.mrb[0].mxu0 %v680
        %v728 = vpop.f32.mrb[0].mxu0
        %v729 = vadd.f32 %v611, %v728
        %v730 = vpop.f32.mrb[0].mxu0
        %v731 = vadd.f32 %v613, %v730
        %v732 = vpop.f32.mrb[0].mxu0
        %v733 = vadd.f32 %v615, %v732
        %v734 = vpop.f32.mrb[0].mxu0
        %v735 = vadd.f32 %v617, %v734
        %736 = vdwg.mxu0
        %737 = vmatprep.subr.bf16.mxu0 %v692
        %738 = vmatpush1.bf16.msra.mxu0 %v689
        %739 = vmatprep.subr.bf16.mxu0 0
        %740 = vmatpush1.bf16.msra.mxu0 0
        %741 = vmatprep.subr.bf16.mxu0 0
        %742 = vmatpush1.bf16.msra.mxu0 0
        %743 = vmatprep.subr.bf16.mxu0 0
        %744 = vmatpush1.bf16.msra.mxu0 0
        %745 = vmatprep.subr.bf16.mxu0 0
        %746 = vmatpush1.bf16.msra.mxu0 0
        %747 = vmatprep.subr.bf16.mxu0 0
        %748 = vmatpush1.bf16.msra.mxu0 0
        %749 = vmatprep.subr.bf16.mxu0 0
        %750 = vmatpush1.bf16.msra.mxu0 0
        %751 = vmatprep.subr.bf16.mxu0 0
        %752 = vmatpush1.bf16.msra.mxu0 0
        %753 = vmatprep.subr.bf16.mxu0 0
        %754 = vmatpush1.bf16.msra.mxu0 0
        %755 = vmatprep.subr.bf16.mxu0 0
        %756 = vmatpush1.bf16.msra.mxu0 0
        %757 = vmatprep.subr.bf16.mxu0 0
        %758 = vmatpush1.bf16.msra.mxu0 0
        %759 = vmatprep.subr.bf16.mxu0 0
        %760 = vmatpush1.bf16.msra.mxu0 0
        %761 = vmatprep.subr.bf16.mxu0 0
        %762 = vmatpush1.bf16.msra.mxu0 0
        %763 = vmatprep.subr.bf16.mxu0 0
        %764 = vmatpush1.bf16.msra.mxu0 0
        %765 = vmatprep.subr.bf16.mxu0 0
        %766 = vmatpush1.bf16.msra.mxu0 0
        %767 = vmatprep.subr.bf16.mxu0 0
        %768 = vmatpush1.bf16.msra.mxu0 0
        %769 = vmatprep.mubr.bf16.mxu0 0
        %770 = vmatmul.mubr.bf16.gmra.mrb[0].mxu0 %v680
        %v771 = vpop.f32.mrb[0].mxu0
        %v772 = vadd.f32 %v654, %v771
        %v773 = vpop.f32.mrb[0].mxu0
        %v774 = vadd.f32 %v656, %v773
        %v775 = vpop.f32.mrb[0].mxu0
        %v776 = vadd.f32 %v658, %v775
        %v777 = vpop.f32.mrb[0].mxu0
        %v778 = vadd.f32 %v660, %v777
        %779 = vdwg.mxu0
        %s780 = scalar_lea.vmem %s2, 16
        %v781 = vld [vmem:[%s780] sm:$0xf]
        %v782 = vld [vmem:[%s780 + $0x4] sm:$0xf]
        %v785 = vunpack.c.l.b16 %v781
        %v786 = vunpack.c.l.b16 %v782
        %v787 = vpack.c.b16 %v786, %v785
        %788 = vrot.lane.b32.xlu0 %v543, 114
        %v789 = vpop.permute.xlu0 %788
        %790 = vrot.lane.b32.xlu0 %v544, 114
        %v791 = vpop.permute.xlu0 %790
        %792 = vrot.lane.b32.xlu0 %v545, 114
        %v793 = vpop.permute.xlu0 %792
        %794 = vrot.lane.b32.xlu0 %v546, 114
        %v795 = vpop.permute.xlu0 %794
        %vm796 = vcmask 932864
        %v797 = vsel %vm796, %v789, %v791
        %v798 = vsel %vm796, %v791, %v793
        %v799 = vsel %vm796, %v793, %v795
        %v801 = vsel %vm559, %v787, 0
        %v804 = vsel %vm563, %v797, 0
        %v807 = vsel %vm563, %v798, 0
        %v810 = vsel %vm563, %v799, 0
        %v813 = vsel %vm563, %v795, 0
        %815 = vmatprep.subr.bf16.mxu0 %v807
        %816 = vmatpush1.bf16.msra.mxu0 %v804
        %817 = vmatprep.subr.bf16.mxu0 0
        %818 = vmatpush1.bf16.msra.mxu0 0
        %819 = vmatprep.subr.bf16.mxu0 0
        %820 = vmatpush1.bf16.msra.mxu0 0
        %821 = vmatprep.subr.bf16.mxu0 0
        %822 = vmatpush1.bf16.msra.mxu0 0
        %823 = vmatprep.subr.bf16.mxu0 0
        %824 = vmatpush1.bf16.msra.mxu0 0
        %825 = vmatprep.subr.bf16.mxu0 0
        %826 = vmatpush1.bf16.msra.mxu0 0
        %827 = vmatprep.subr.bf16.mxu0 0
        %828 = vmatpush1.bf16.msra.mxu0 0
        %829 = vmatprep.subr.bf16.mxu0 0
        %830 = vmatpush1.bf16.msra.mxu0 0
        %831 = vmatprep.subr.bf16.mxu0 0
        %832 = vmatpush1.bf16.msra.mxu0 0
        %833 = vmatprep.subr.bf16.mxu0 0
        %834 = vmatpush1.bf16.msra.mxu0 0
        %835 = vmatprep.subr.bf16.mxu0 0
        %836 = vmatpush1.bf16.msra.mxu0 0
        %837 = vmatprep.subr.bf16.mxu0 0
        %838 = vmatpush1.bf16.msra.mxu0 0
        %839 = vmatprep.subr.bf16.mxu0 0
        %840 = vmatpush1.bf16.msra.mxu0 0
        %841 = vmatprep.subr.bf16.mxu0 0
        %842 = vmatpush1.bf16.msra.mxu0 0
        %843 = vmatprep.subr.bf16.mxu0 0
        %844 = vmatpush1.bf16.msra.mxu0 0
        %845 = vmatprep.subr.bf16.mxu0 0
        %846 = vmatpush1.bf16.msra.mxu0 0
        %847 = vmatprep.mubr.bf16.mxu0 0
        %848 = vmatmul.mubr.bf16.gmra.mrb[0].mxu0 %v801
        %v849 = vpop.f32.mrb[0].mxu0
        %v850 = vadd.f32 0.0, %v849
        %v851 = vpop.f32.mrb[0].mxu0
        %v852 = vadd.f32 0.0, %v851
        %v853 = vpop.f32.mrb[0].mxu0
        %v854 = vadd.f32 0.0, %v853
        %v855 = vpop.f32.mrb[0].mxu0
        %v856 = vadd.f32 0.0, %v855
        %857 = vdwg.mxu0
        %858 = vmatprep.subr.bf16.mxu0 %v813
        %859 = vmatpush1.bf16.msra.mxu0 %v810
        %860 = vmatprep.subr.bf16.mxu0 0
        %861 = vmatpush1.bf16.msra.mxu0 0
        %862 = vmatprep.subr.bf16.mxu0 0
        %863 = vmatpush1.bf16.msra.mxu0 0
        %864 = vmatprep.subr.bf16.mxu0 0
        %865 = vmatpush1.bf16.msra.mxu0 0
        %866 = vmatprep.subr.bf16.mxu0 0
        %867 = vmatpush1.bf16.msra.mxu0 0
        %868 = vmatprep.subr.bf16.mxu0 0
        %869 = vmatpush1.bf16.msra.mxu0 0
        %870 = vmatprep.subr.bf16.mxu0 0
        %871 = vmatpush1.bf16.msra.mxu0 0
        %872 = vmatprep.subr.bf16.mxu0 0
        %873 = vmatpush1.bf16.msra.mxu0 0
        %874 = vmatprep.subr.bf16.mxu0 0
        %875 = vmatpush1.bf16.msra.mxu0 0
        %876 = vmatprep.subr.bf16.mxu0 0
        %877 = vmatpush1.bf16.msra.mxu0 0
        %878 = vmatprep.subr.bf16.mxu0 0
        %879 = vmatpush1.bf16.msra.mxu0 0
        %880 = vmatprep.subr.bf16.mxu0 0
        %881 = vmatpush1.bf16.msra.mxu0 0
        %882 = vmatprep.subr.bf16.mxu0 0
        %883 = vmatpush1.bf16.msra.mxu0 0
        %884 = vmatprep.subr.bf16.mxu0 0
        %885 = vmatpush1.bf16.msra.mxu0 0
        %886 = vmatprep.subr.bf16.mxu0 0
        %887 = vmatpush1.bf16.msra.mxu0 0
        %888 = vmatprep.subr.bf16.mxu0 0
        %889 = vmatpush1.bf16.msra.mxu0 0
        %890 = vmatprep.mubr.bf16.mxu0 0
        %891 = vmatmul.mubr.bf16.gmra.mrb[0].mxu0 %v801
        %v892 = vpop.f32.mrb[0].mxu0
        %v893 = vadd.f32 0.0, %v892
        %v894 = vpop.f32.mrb[0].mxu0
        %v895 = vadd.f32 0.0, %v894
        %v896 = vpop.f32.mrb[0].mxu0
        %v897 = vadd.f32 0.0, %v896
        %v898 = vpop.f32.mrb[0].mxu0
        %v899 = vadd.f32 0.0, %v898
        %900 = vdwg.mxu0
        %v901 = vadd.f32 %v729, %v850
        %v902 = vadd.f32 %v731, %v852
        %v903 = vadd.f32 %v772, %v893
        %v904 = vadd.f32 %v774, %v895
        %v905 = vadd.f32 %v733, %v854
        %v906 = vadd.f32 %v735, %v856
        %v907 = vadd.f32 %v776, %v897
        %v908 = vadd.f32 %v778, %v899
        %s909 = scalar_lea.vmem %s2, 24
        %v910 = vld [vmem:[%s909] sm:$0xf]
        %v911 = vld [vmem:[%s909 + $0x4] sm:$0xf]
        %v914 = vunpack.c.l.b16 %v910
        %v915 = vunpack.c.l.b16 %v911
        %v916 = vpack.c.b16 %v915, %v914
        %917 = vrot.lane.b32.xlu0 %v543, 113
        %v918 = vpop.permute.xlu0 %917
        %919 = vrot.lane.b32.xlu0 %v544, 113
        %v920 = vpop.permute.xlu0 %919
        %921 = vrot.lane.b32.xlu0 %v545, 113
        %v922 = vpop.permute.xlu0 %921
        %923 = vrot.lane.b32.xlu0 %v546, 113
        %v924 = vpop.permute.xlu0 %923
        %vm925 = vcmask 924672
        %v926 = vsel %vm925, %v918, %v920
        %v927 = vsel %vm925, %v920, %v922
        %v928 = vsel %vm925, %v922, %v924
        %v930 = vsel %vm559, %v916, 0
        %v933 = vsel %vm563, %v926, 0
        %v936 = vsel %vm563, %v927, 0
        %v939 = vsel %vm563, %v928, 0
        %v942 = vsel %vm563, %v924, 0
        %944 = vmatprep.subr.bf16.mxu0 %v936
        %945 = vmatpush1.bf16.msra.mxu0 %v933
        %946 = vmatprep.subr.bf16.mxu0 0
        %947 = vmatpush1.bf16.msra.mxu0 0
        %948 = vmatprep.subr.bf16.mxu0 0
        %949 = vmatpush1.bf16.msra.mxu0 0
        %950 = vmatprep.subr.bf16.mxu0 0
        %951 = vmatpush1.bf16.msra.mxu0 0
        %952 = vmatprep.subr.bf16.mxu0 0
        %953 = vmatpush1.bf16.msra.mxu0 0
        %954 = vmatprep.subr.bf16.mxu0 0
        %955 = vmatpush1.bf16.msra.mxu0 0
        %956 = vmatprep.subr.bf16.mxu0 0
        %957 = vmatpush1.bf16.msra.mxu0 0
        %958 = vmatprep.subr.bf16.mxu0 0
        %959 = vmatpush1.bf16.msra.mxu0 0
        %960 = vmatprep.subr.bf16.mxu0 0
        %961 = vmatpush1.bf16.msra.mxu0 0
        %962 = vmatprep.subr.bf16.mxu0 0
        %963 = vmatpush1.bf16.msra.mxu0 0
        %964 = vmatprep.subr.bf16.mxu0 0
        %965 = vmatpush1.bf16.msra.mxu0 0
        %966 = vmatprep.subr.bf16.mxu0 0
        %967 = vmatpush1.bf16.msra.mxu0 0
        %968 = vmatprep.subr.bf16.mxu0 0
        %969 = vmatpush1.bf16.msra.mxu0 0
        %970 = vmatprep.subr.bf16.mxu0 0
        %971 = vmatpush1.bf16.msra.mxu0 0
        %972 = vmatprep.subr.bf16.mxu0 0
        %973 = vmatpush1.bf16.msra.mxu0 0
        %974 = vmatprep.subr.bf16.mxu0 0
        %975 = vmatpush1.bf16.msra.mxu0 0
        %976 = vmatprep.mubr.bf16.mxu0 0
        %977 = vmatmul.mubr.bf16.gmra.mrb[0].mxu0 %v930
        %v978 = vpop.f32.mrb[0].mxu0
        %v979 = vadd.f32 0.0, %v978
        %v980 = vpop.f32.mrb[0].mxu0
        %v981 = vadd.f32 0.0, %v980
        %v982 = vpop.f32.mrb[0].mxu0
        %v983 = vadd.f32 0.0, %v982
        %v984 = vpop.f32.mrb[0].mxu0
        %v985 = vadd.f32 0.0, %v984
        %986 = vdwg.mxu0
        %987 = vmatprep.subr.bf16.mxu0 %v942
        %988 = vmatpush1.bf16.msra.mxu0 %v939
        %989 = vmatprep.subr.bf16.mxu0 0
        %990 = vmatpush1.bf16.msra.mxu0 0
        %991 = vmatprep.subr.bf16.mxu0 0
        %992 = vmatpush1.bf16.msra.mxu0 0
        %993 = vmatprep.subr.bf16.mxu0 0
        %994 = vmatpush1.bf16.msra.mxu0 0
        %995 = vmatprep.subr.bf16.mxu0 0
        %996 = vmatpush1.bf16.msra.mxu0 0
        %997 = vmatprep.subr.bf16.mxu0 0
        %998 = vmatpush1.bf16.msra.mxu0 0
        %999 = vmatprep.subr.bf16.mxu0 0
        %1000 = vmatpush1.bf16.msra.mxu0 0
        %1001 = vmatprep.subr.bf16.mxu0 0
        %1002 = vmatpush1.bf16.msra.mxu0 0
        %1003 = vmatprep.subr.bf16.mxu0 0
        %1004 = vmatpush1.bf16.msra.mxu0 0
        %1005 = vmatprep.subr.bf16.mxu0 0
        %1006 = vmatpush1.bf16.msra.mxu0 0
        %1007 = vmatprep.subr.bf16.mxu0 0
        %1008 = vmatpush1.bf16.msra.mxu0 0
        %1009 = vmatprep.subr.bf16.mxu0 0
        %1010 = vmatpush1.bf16.msra.mxu0 0
        %1011 = vmatprep.subr.bf16.mxu0 0
        %1012 = vmatpush1.bf16.msra.mxu0 0
        %1013 = vmatprep.subr.bf16.mxu0 0
        %1014 = vmatpush1.bf16.msra.mxu0 0
        %1015 = vmatprep.subr.bf16.mxu0 0
        %1016 = vmatpush1.bf16.msra.mxu0 0
        %1017 = vmatprep.subr.bf16.mxu0 0
        %1018 = vmatpush1.bf16.msra.mxu0 0
        %1019 = vmatprep.mubr.bf16.mxu0 0
        %1020 = vmatmul.mubr.bf16.gmra.mrb[0].mxu0 %v930
        %v1021 = vpop.f32.mrb[0].mxu0
        %v1022 = vadd.f32 0.0, %v1021
        %v1023 = vpop.f32.mrb[0].mxu0
        %v1024 = vadd.f32 0.0, %v1023
        %v1025 = vpop.f32.mrb[0].mxu0
        %v1026 = vadd.f32 0.0, %v1025
        %v1027 = vpop.f32.mrb[0].mxu0
        %v1028 = vadd.f32 0.0, %v1027
        %1029 = vdwg.mxu0
        %v1030 = vadd.f32 %v901, %v979
        %v1031 = vadd.f32 %v902, %v981
        %v1032 = vadd.f32 %v903, %v1022
        %v1033 = vadd.f32 %v904, %v1024
        %v1034 = vadd.f32 %v905, %v983
        %v1035 = vadd.f32 %v906, %v985
        %v1036 = vadd.f32 %v907, %v1026
        %v1037 = vadd.f32 %v908, %v1028
        %s1038 = scalar_lea.vmem %s2, 32
        %v1039 = vld [vmem:[%s1038] sm:$0xf]
        %v1040 = vld [vmem:[%s1038 + $0x4] sm:$0xf]
        %v1043 = vunpack.c.l.b16 %v1039
        %v1044 = vunpack.c.l.b16 %v1040
        %v1045 = vpack.c.b16 %v1044, %v1043
        %1046 = vrot.lane.b32.xlu0 %v543, 112
        %v1047 = vpop.permute.xlu0 %1046
        %1048 = vrot.lane.b32.xlu0 %v544, 112
        %v1049 = vpop.permute.xlu0 %1048
        %1050 = vrot.lane.b32.xlu0 %v545, 112
        %v1051 = vpop.permute.xlu0 %1050
        %1052 = vrot.lane.b32.xlu0 %v546, 112
        %v1053 = vpop.permute.xlu0 %1052
        %vm1054 = vcmask 916480
        %v1055 = vsel %vm1054, %v1047, %v1049
        %v1056 = vsel %vm1054, %v1049, %v1051
        %v1057 = vsel %vm1054, %v1051, %v1053
        %v1059 = vsel %vm559, %v1045, 0
        %v1062 = vsel %vm563, %v1055, 0
        %v1065 = vsel %vm563, %v1056, 0
        %v1068 = vsel %vm563, %v1057, 0
        %v1071 = vsel %vm563, %v1053, 0
        %1073 = vmatprep.subr.bf16.mxu0 %v1065
        %1074 = vmatpush1.bf16.msra.mxu0 %v1062
        %1075 = vmatprep.subr.bf16.mxu0 0
        %1076 = vmatpush1.bf16.msra.mxu0 0
        %1077 = vmatprep.subr.bf16.mxu0 0
        %1078 = vmatpush1.bf16.msra.mxu0 0
        %1079 = vmatprep.subr.bf16.mxu0 0
        %1080 = vmatpush1.bf16.msra.mxu0 0
        %1081 = vmatprep.subr.bf16.mxu0 0
        %1082 = vmatpush1.bf16.msra.mxu0 0
        %1083 = vmatprep.subr.bf16.mxu0 0
        %1084 = vmatpush1.bf16.msra.mxu0 0
        %1085 = vmatprep.subr.bf16.mxu0 0
        %1086 = vmatpush1.bf16.msra.mxu0 0
        %1087 = vmatprep.subr.bf16.mxu0 0
        %1088 = vmatpush1.bf16.msra.mxu0 0
        %1089 = vmatprep.subr.bf16.mxu0 0
        %1090 = vmatpush1.bf16.msra.mxu0 0
        %1091 = vmatprep.subr.bf16.mxu0 0
        %1092 = vmatpush1.bf16.msra.mxu0 0
        %1093 = vmatprep.subr.bf16.mxu0 0
        %1094 = vmatpush1.bf16.msra.mxu0 0
        %1095 = vmatprep.subr.bf16.mxu0 0
        %1096 = vmatpush1.bf16.msra.mxu0 0
        %1097 = vmatprep.subr.bf16.mxu0 0
        %1098 = vmatpush1.bf16.msra.mxu0 0
        %1099 = vmatprep.subr.bf16.mxu0 0
        %1100 = vmatpush1.bf16.msra.mxu0 0
        %1101 = vmatprep.subr.bf16.mxu0 0
        %1102 = vmatpush1.bf16.msra.mxu0 0
        %1103 = vmatprep.subr.bf16.mxu0 0
        %1104 = vmatpush1.bf16.msra.mxu0 0
        %1105 = vmatprep.mubr.bf16.mxu0 0
        %1106 = vmatmul.mubr.bf16.gmra.mrb[0].mxu0 %v1059
        %v1107 = vpop.f32.mrb[0].mxu0
        %v1108 = vadd.f32 0.0, %v1107
        %v1109 = vpop.f32.mrb[0].mxu0
        %v1110 = vadd.f32 0.0, %v1109
        %v1111 = vpop.f32.mrb[0].mxu0
        %v1112 = vadd.f32 0.0, %v1111
        %v1113 = vpop.f32.mrb[0].mxu0
        %v1114 = vadd.f32 0.0, %v1113
        %1115 = vdwg.mxu0
        %1116 = vmatprep.subr.bf16.mxu0 %v1071
        %1117 = vmatpush1.bf16.msra.mxu0 %v1068
        %1118 = vmatprep.subr.bf16.mxu0 0
        %1119 = vmatpush1.bf16.msra.mxu0 0
        %1120 = vmatprep.subr.bf16.mxu0 0
        %1121 = vmatpush1.bf16.msra.mxu0 0
        %1122 = vmatprep.subr.bf16.mxu0 0
        %1123 = vmatpush1.bf16.msra.mxu0 0
        %1124 = vmatprep.subr.bf16.mxu0 0
        %1125 = vmatpush1.bf16.msra.mxu0 0
        %1126 = vmatprep.subr.bf16.mxu0 0
        %1127 = vmatpush1.bf16.msra.mxu0 0
        %1128 = vmatprep.subr.bf16.mxu0 0
        %1129 = vmatpush1.bf16.msra.mxu0 0
        %1130 = vmatprep.subr.bf16.mxu0 0
        %1131 = vmatpush1.bf16.msra.mxu0 0
        %1132 = vmatprep.subr.bf16.mxu0 0
        %1133 = vmatpush1.bf16.msra.mxu0 0
        %1134 = vmatprep.subr.bf16.mxu0 0
        %1135 = vmatpush1.bf16.msra.mxu0 0
        %1136 = vmatprep.subr.bf16.mxu0 0
        %1137 = vmatpush1.bf16.msra.mxu0 0
        %1138 = vmatprep.subr.bf16.mxu0 0
        %1139 = vmatpush1.bf16.msra.mxu0 0
        %1140 = vmatprep.subr.bf16.mxu0 0
        %1141 = vmatpush1.bf16.msra.mxu0 0
        %1142 = vmatprep.subr.bf16.mxu0 0
        %1143 = vmatpush1.bf16.msra.mxu0 0
        %1144 = vmatprep.subr.bf16.mxu0 0
        %1145 = vmatpush1.bf16.msra.mxu0 0
        %1146 = vmatprep.subr.bf16.mxu0 0
        %1147 = vmatpush1.bf16.msra.mxu0 0
        %1148 = vmatprep.mubr.bf16.mxu0 0
        %1149 = vmatmul.mubr.bf16.gmra.mrb[0].mxu0 %v1059
        %v1150 = vpop.f32.mrb[0].mxu0
        %v1151 = vadd.f32 0.0, %v1150
        %v1152 = vpop.f32.mrb[0].mxu0
        %v1153 = vadd.f32 0.0, %v1152
        %v1154 = vpop.f32.mrb[0].mxu0
        %v1155 = vadd.f32 0.0, %v1154
        %v1156 = vpop.f32.mrb[0].mxu0
        %v1157 = vadd.f32 0.0, %v1156
        %1158 = vdwg.mxu0
        %v1159 = vadd.f32 %v1030, %v1108
        %v1160 = vadd.f32 %v1031, %v1110
        %v1161 = vadd.f32 %v1032, %v1151
        %v1162 = vadd.f32 %v1033, %v1153
        %v1163 = vadd.f32 %v1034, %v1112
        %v1164 = vadd.f32 %v1035, %v1114
        %v1165 = vadd.f32 %v1036, %v1155
        %v1166 = vadd.f32 %v1037, %v1157
        %s1167 = scalar_lea.vmem %s2, 40
        %v1168 = vld [vmem:[%s1167] sm:$0xf]
        %v1169 = vld [vmem:[%s1167 + $0x4] sm:$0xf]
        %v1172 = vunpack.c.l.b16 %v1168
        %v1173 = vunpack.c.l.b16 %v1169
        %v1174 = vpack.c.b16 %v1173, %v1172
        %1175 = vrot.lane.b32.xlu0 %v543, 111
        %v1176 = vpop.permute.xlu0 %1175
        %1177 = vrot.lane.b32.xlu0 %v544, 111
        %v1178 = vpop.permute.xlu0 %1177
        %1179 = vrot.lane.b32.xlu0 %v545, 111
        %v1180 = vpop.permute.xlu0 %1179
        %1181 = vrot.lane.b32.xlu0 %v546, 111
        %v1182 = vpop.permute.xlu0 %1181
        %vm1183 = vcmask 908288
        %v1184 = vsel %vm1183, %v1176, %v1178
        %v1185 = vsel %vm1183, %v1178, %v1180
        %v1186 = vsel %vm1183, %v1180, %v1182
        %v1188 = vsel %vm559, %v1174, 0
        %v1191 = vsel %vm563, %v1184, 0
        %v1194 = vsel %vm563, %v1185, 0
        %v1197 = vsel %vm563, %v1186, 0
        %v1200 = vsel %vm563, %v1182, 0
        %1202 = vmatprep.subr.bf16.mxu0 %v1194
        %1203 = vmatpush1.bf16.msra.mxu0 %v1191
        %1204 = vmatprep.subr.bf16.mxu0 0
        %1205 = vmatpush1.bf16.msra.mxu0 0
        %1206 = vmatprep.subr.bf16.mxu0 0
        %1207 = vmatpush1.bf16.msra.mxu0 0
        %1208 = vmatprep.subr.bf16.mxu0 0
        %1209 = vmatpush1.bf16.msra.mxu0 0
        %1210 = vmatprep.subr.bf16.mxu0 0
        %1211 = vmatpush1.bf16.msra.mxu0 0
        %1212 = vmatprep.subr.bf16.mxu0 0
        %1213 = vmatpush1.bf16.msra.mxu0 0
        %1214 = vmatprep.subr.bf16.mxu0 0
        %1215 = vmatpush1.bf16.msra.mxu0 0
        %1216 = vmatprep.subr.bf16.mxu0 0
        %1217 = vmatpush1.bf16.msra.mxu0 0
        %1218 = vmatprep.subr.bf16.mxu0 0
        %1219 = vmatpush1.bf16.msra.mxu0 0
        %1220 = vmatprep.subr.bf16.mxu0 0
        %1221 = vmatpush1.bf16.msra.mxu0 0
        %1222 = vmatprep.subr.bf16.mxu0 0
        %1223 = vmatpush1.bf16.msra.mxu0 0
        %1224 = vmatprep.subr.bf16.mxu0 0
        %1225 = vmatpush1.bf16.msra.mxu0 0
        %1226 = vmatprep.subr.bf16.mxu0 0
        %1227 = vmatpush1.bf16.msra.mxu0 0
        %1228 = vmatprep.subr.bf16.mxu0 0
        %1229 = vmatpush1.bf16.msra.mxu0 0
        %1230 = vmatprep.subr.bf16.mxu0 0
        %1231 = vmatpush1.bf16.msra.mxu0 0
        %1232 = vmatprep.subr.bf16.mxu0 0
        %1233 = vmatpush1.bf16.msra.mxu0 0
        %1234 = vmatprep.mubr.bf16.mxu0 0
        %1235 = vmatmul.mubr.bf16.gmra.mrb[0].mxu0 %v1188
        %v1236 = vpop.f32.mrb[0].mxu0
        %v1237 = vadd.f32 0.0, %v1236
        %v1238 = vpop.f32.mrb[0].mxu0
        %v1239 = vadd.f32 0.0, %v1238
        %v1240 = vpop.f32.mrb[0].mxu0
        %v1241 = vadd.f32 0.0, %v1240
        %v1242 = vpop.f32.mrb[0].mxu0
        %v1243 = vadd.f32 0.0, %v1242
        %1244 = vdwg.mxu0
        %1245 = vmatprep.subr.bf16.mxu0 %v1200
        %1246 = vmatpush1.bf16.msra.mxu0 %v1197
        %1247 = vmatprep.subr.bf16.mxu0 0
        %1248 = vmatpush1.bf16.msra.mxu0 0
        %1249 = vmatprep.subr.bf16.mxu0 0
        %1250 = vmatpush1.bf16.msra.mxu0 0
        %1251 = vmatprep.subr.bf16.mxu0 0
        %1252 = vmatpush1.bf16.msra.mxu0 0
        %1253 = vmatprep.subr.bf16.mxu0 0
        %1254 = vmatpush1.bf16.msra.mxu0 0
        %1255 = vmatprep.subr.bf16.mxu0 0
        %1256 = vmatpush1.bf16.msra.mxu0 0
        %1257 = vmatprep.subr.bf16.mxu0 0
        %1258 = vmatpush1.bf16.msra.mxu0 0
        %1259 = vmatprep.subr.bf16.mxu0 0
        %1260 = vmatpush1.bf16.msra.mxu0 0
        %1261 = vmatprep.subr.bf16.mxu0 0
        %1262 = vmatpush1.bf16.msra.mxu0 0
        %1263 = vmatprep.subr.bf16.mxu0 0
        %1264 = vmatpush1.bf16.msra.mxu0 0
        %1265 = vmatprep.subr.bf16.mxu0 0
        %1266 = vmatpush1.bf16.msra.mxu0 0
        %1267 = vmatprep.subr.bf16.mxu0 0
        %1268 = vmatpush1.bf16.msra.mxu0 0
        %1269 = vmatprep.subr.bf16.mxu0 0
        %1270 = vmatpush1.bf16.msra.mxu0 0
        %1271 = vmatprep.subr.bf16.mxu0 0
        %1272 = vmatpush1.bf16.msra.mxu0 0
        %1273 = vmatprep.subr.bf16.mxu0 0
        %1274 = vmatpush1.bf16.msra.mxu0 0
        %1275 = vmatprep.subr.bf16.mxu0 0
        %1276 = vmatpush1.bf16.msra.mxu0 0
        %1277 = vmatprep.mubr.bf16.mxu0 0
        %1278 = vmatmul.mubr.bf16.gmra.mrb[0].mxu0 %v1188
        %v1279 = vpop.f32.mrb[0].mxu0
        %v1280 = vadd.f32 0.0, %v1279
        %v1281 = vpop.f32.mrb[0].mxu0
        %v1282 = vadd.f32 0.0, %v1281
        %v1283 = vpop.f32.mrb[0].mxu0
        %v1284 = vadd.f32 0.0, %v1283
        %v1285 = vpop.f32.mrb[0].mxu0
        %v1286 = vadd.f32 0.0, %v1285
        %1287 = vdwg.mxu0
        %v1288 = vadd.f32 %v1159, %v1237
        %v1289 = vadd.f32 %v1160, %v1239
        %v1290 = vadd.f32 %v1161, %v1280
        %v1291 = vadd.f32 %v1162, %v1282
        %v1292 = vadd.f32 %v1163, %v1241
        %v1293 = vadd.f32 %v1164, %v1243
        %v1294 = vadd.f32 %v1165, %v1284
        %v1295 = vadd.f32 %v1166, %v1286
        %v1296 = vld [vmem:[%s446] sm:$0xff]
        %v1297 = vld [vmem:[%s446 + $0x8] sm:$0xff]
        %v1298 = vld [vmem:[%s446 + $0x10] sm:$0xf]
        %s1299 = scalar_lea.vmem %s2, 48
        %v1300 = vld [vmem:[%s1299] sm:$0xf]
        %v1301 = vld [vmem:[%s1299 + $0x4] sm:$0xf]
        %v1304 = vunpack.c.l.b16 %v1300
        %v1305 = vunpack.c.l.b16 %v1301
        %v1306 = vpack.c.b16 %v1305, %v1304
        %v1310 = vunpack.c.l.b16 %v1296
        %v1311 = vunpack.c.h.b16 %v1296
        %v1312 = vunpack.c.l.b16 %v1297
        %v1313 = vunpack.c.h.b16 %v1297
        %v1314 = vunpack.c.l.b16 %v1298
        %v1315 = vpack.c.b16 %v1310, %v1310
        %v1316 = vpack.c.b16 %v1311, %v1311
        %v1317 = vpack.c.b16 %v1312, %v1312
        %v1318 = vpack.c.b16 %v1313, %v1313
        %v1319 = vpack.c.b16 %v1314, %v1314
        %1320 = vrot.lane.b32.xlu0 %v1315, 110
        %v1321 = vpop.permute.xlu0 %1320
        %1322 = vrot.lane.b32.xlu0 %v1316, 110
        %v1323 = vpop.permute.xlu0 %1322
        %1324 = vrot.lane.b32.xlu0 %v1317, 110
        %v1325 = vpop.permute.xlu0 %1324
        %1326 = vrot.lane.b32.xlu0 %v1318, 110
        %v1327 = vpop.permute.xlu0 %1326
        %1328 = vrot.lane.b32.xlu0 %v1319, 110
        %v1329 = vpop.permute.xlu0 %1328
        %vm1330 = vcmask 900096
        %v1331 = vsel %vm1330, %v1321, %v1323
        %v1332 = vsel %vm1330, %v1323, %v1325
        %v1333 = vsel %vm1330, %v1325, %v1327
        %v1334 = vsel %vm1330, %v1327, %v1329
        %v1336 = vsel %vm559, %v1306, 0
        %v1339 = vsel %vm563, %v1331, 0
        %v1342 = vsel %vm563, %v1332, 0
        %v1345 = vsel %vm563, %v1333, 0
        %v1348 = vsel %vm563, %v1334, 0
        %1350 = vmatprep.subr.bf16.mxu0 %v1342
        %1351 = vmatpush1.bf16.msra.mxu0 %v1339
        %1352 = vmatprep.subr.bf16.mxu0 0
        %1353 = vmatpush1.bf16.msra.mxu0 0
        %1354 = vmatprep.subr.bf16.mxu0 0
        %1355 = vmatpush1.bf16.msra.mxu0 0
        %1356 = vmatprep.subr.bf16.mxu0 0
        %1357 = vmatpush1.bf16.msra.mxu0 0
        %1358 = vmatprep.subr.bf16.mxu0 0
        %1359 = vmatpush1.bf16.msra.mxu0 0
        %1360 = vmatprep.subr.bf16.mxu0 0
        %1361 = vmatpush1.bf16.msra.mxu0 0
        %1362 = vmatprep.subr.bf16.mxu0 0
        %1363 = vmatpush1.bf16.msra.mxu0 0
        %1364 = vmatprep.subr.bf16.mxu0 0
        %1365 = vmatpush1.bf16.msra.mxu0 0
        %1366 = vmatprep.subr.bf16.mxu0 0
        %1367 = vmatpush1.bf16.msra.mxu0 0
        %1368 = vmatprep.subr.bf16.mxu0 0
        %1369 = vmatpush1.bf16.msra.mxu0 0
        %1370 = vmatprep.subr.bf16.mxu0 0
        %1371 = vmatpush1.bf16.msra.mxu0 0
        %1372 = vmatprep.subr.bf16.mxu0 0
        %1373 = vmatpush1.bf16.msra.mxu0 0
        %1374 = vmatprep.subr.bf16.mxu0 0
        %1375 = vmatpush1.bf16.msra.mxu0 0
        %1376 = vmatprep.subr.bf16.mxu0 0
        %1377 = vmatpush1.bf16.msra.mxu0 0
        %1378 = vmatprep.subr.bf16.mxu0 0
        %1379 = vmatpush1.bf16.msra.mxu0 0
        %1380 = vmatprep.subr.bf16.mxu0 0
        %1381 = vmatpush1.bf16.msra.mxu0 0
        %1382 = vmatprep.mubr.bf16.mxu0 0
        %1383 = vmatmul.mubr.bf16.gmra.mrb[0].mxu0 %v1336
        %v1384 = vpop.f32.mrb[0].mxu0
        %v1385 = vadd.f32 0.0, %v1384
        %v1386 = vpop.f32.mrb[0].mxu0
        %v1387 = vadd.f32 0.0, %v1386
        %v1388 = vpop.f32.mrb[0].mxu0
        %v1389 = vadd.f32 0.0, %v1388
        %v1390 = vpop.f32.mrb[0].mxu0
        %v1391 = vadd.f32 0.0, %v1390
        %1392 = vdwg.mxu0
        %1393 = vmatprep.subr.bf16.mxu0 %v1348
        %1394 = vmatpush1.bf16.msra.mxu0 %v1345
        %1395 = vmatprep.subr.bf16.mxu0 0
        %1396 = vmatpush1.bf16.msra.mxu0 0
        %1397 = vmatprep.subr.bf16.mxu0 0
        %1398 = vmatpush1.bf16.msra.mxu0 0
        %1399 = vmatprep.subr.bf16.mxu0 0
        %1400 = vmatpush1.bf16.msra.mxu0 0
        %1401 = vmatprep.subr.bf16.mxu0 0
        %1402 = vmatpush1.bf16.msra.mxu0 0
        %1403 = vmatprep.subr.bf16.mxu0 0
        %1404 = vmatpush1.bf16.msra.mxu0 0
        %1405 = vmatprep.subr.bf16.mxu0 0
        %1406 = vmatpush1.bf16.msra.mxu0 0
        %1407 = vmatprep.subr.bf16.mxu0 0
        %1408 = vmatpush1.bf16.msra.mxu0 0
        %1409 = vmatprep.subr.bf16.mxu0 0
        %1410 = vmatpush1.bf16.msra.mxu0 0
        %1411 = vmatprep.subr.bf16.mxu0 0
        %1412 = vmatpush1.bf16.msra.mxu0 0
        %1413 = vmatprep.subr.bf16.mxu0 0
        %1414 = vmatpush1.bf16.msra.mxu0 0
        %1415 = vmatprep.subr.bf16.mxu0 0
        %1416 = vmatpush1.bf16.msra.mxu0 0
        %1417 = vmatprep.subr.bf16.mxu0 0
        %1418 = vmatpush1.bf16.msra.mxu0 0
        %1419 = vmatprep.subr.bf16.mxu0 0
        %1420 = vmatpush1.bf16.msra.mxu0 0
        %1421 = vmatprep.subr.bf16.mxu0 0
        %1422 = vmatpush1.bf16.msra.mxu0 0
        %1423 = vmatprep.subr.bf16.mxu0 0
        %1424 = vmatpush1.bf16.msra.mxu0 0
        %1425 = vmatprep.mubr.bf16.mxu0 0
        %1426 = vmatmul.mubr.bf16.gmra.mrb[0].mxu0 %v1336
        %v1427 = vpop.f32.mrb[0].mxu0
        %v1428 = vadd.f32 0.0, %v1427
        %v1429 = vpop.f32.mrb[0].mxu0
        %v1430 = vadd.f32 0.0, %v1429
        %v1431 = vpop.f32.mrb[0].mxu0
        %v1432 = vadd.f32 0.0, %v1431
        %v1433 = vpop.f32.mrb[0].mxu0
        %v1434 = vadd.f32 0.0, %v1433
        %1435 = vdwg.mxu0
        %v1436 = vadd.f32 %v1288, %v1385
        %v1437 = vadd.f32 %v1289, %v1387
        %v1438 = vadd.f32 %v1290, %v1428
        %v1439 = vadd.f32 %v1291, %v1430
        %v1440 = vadd.f32 %v1292, %v1389
        %v1441 = vadd.f32 %v1293, %v1391
        %v1442 = vadd.f32 %v1294, %v1432
        %v1443 = vadd.f32 %v1295, %v1434
        %v1444 = vld [vmem:[%s3] sm:$0xff]
        %v1445 = vld [vmem:[%s3 + $0x8] sm:$0xff]
        %1447 = vset.pattern.permute.xlu0 0
        %1448 = vperm.xlu0 %1447, %v1444
        %v1449 = vpop.permute.xlu0 %1448
        %1452 = vset.pattern.permute.xlu0 0
        %1453 = vperm.xlu0 %1452, %v1445
        %v1454 = vpop.permute.xlu0 %1453
        %v1456 = vadd.f32 %v1436, %v1449
        %v1457 = vadd.f32 %v1437, %v1449
        %v1458 = vadd.f32 %v1438, %v1449
        %v1459 = vadd.f32 %v1439, %v1449
        %v1460 = vadd.f32 %v1440, %v1454
        %v1461 = vadd.f32 %v1441, %v1454
        %v1462 = vadd.f32 %v1442, %v1454
        %v1463 = vadd.f32 %v1443, %v1454
        %vm1464 = vcmp.ge.f32.partialorder %v1456, 0.0
        %vm1465 = vcmp.ge.f32.partialorder %v1457, 0.0
        %vm1466 = vcmp.ge.f32.partialorder %v1458, 0.0
        %vm1467 = vcmp.ge.f32.partialorder %v1459, 0.0
        %vm1468 = vcmp.ge.f32.partialorder %v1460, 0.0
        %vm1469 = vcmp.ge.f32.partialorder %v1461, 0.0
        %vm1470 = vcmp.ge.f32.partialorder %v1462, 0.0
        %vm1471 = vcmp.ge.f32.partialorder %v1463, 0.0
        %v1472 = vmul.f32 %v1456, 0.2
        %v1473 = vmul.f32 %v1457, 0.2
        %v1474 = vmul.f32 %v1458, 0.2
        %v1475 = vmul.f32 %v1459, 0.2
        %v1476 = vmul.f32 %v1460, 0.2
        %v1477 = vmul.f32 %v1461, 0.2
        %v1478 = vmul.f32 %v1462, 0.2
        %v1479 = vmul.f32 %v1463, 0.2
        %v1480 = vsel %vm1464, %v1456, %v1472
        %v1481 = vsel %vm1465, %v1457, %v1473
        %v1482 = vsel %vm1466, %v1458, %v1474
        %v1483 = vsel %vm1467, %v1459, %v1475
        %v1484 = vsel %vm1468, %v1460, %v1476
        %v1485 = vsel %vm1469, %v1461, %v1477
        %v1486 = vsel %vm1470, %v1462, %v1478
        %v1487 = vsel %vm1471, %v1463, %v1479
        %v1489 = vlaneseq
        %v1490 = vshrl.u32 %v1489, 7
        %v1491 = vsub.s32 0, %v1490
        %v1492 = vrot.slane %v513, %v1491
        %v1493 = vlaneseq
        %v1494 = vshrl.u32 %v1493, 7
        %v1495 = vsub.s32 1, %v1494
        %v1496 = vrot.slane %v513, %v1495
        %v1497 = vlaneseq
        %v1498 = vshrl.u32 %v1497, 7
        %v1499 = vsub.s32 2, %v1498
        %v1500 = vrot.slane %v513, %v1499
        %v1501 = vlaneseq
        %v1502 = vshrl.u32 %v1501, 7
        %v1503 = vsub.s32 3, %v1502
        %v1504 = vrot.slane %v513, %v1503
        %v1509 = vmul.f32 %v1480, %v1492
        %v1510 = vmul.f32 %v1481, %v1496
        %v1511 = vmul.f32 %v1482, %v1500
        %v1512 = vmul.f32 %v1483, %v1504
        %v1513 = vmul.f32 %v1484, %v1492
        %v1514 = vmul.f32 %v1485, %v1496
        %v1515 = vmul.f32 %v1486, %v1500
        %v1516 = vmul.f32 %v1487, %v1504
        %1517 = vst [vmem:[%s490] sm:$0xff] %v1509
        %1518 = vst [vmem:[%s490 + $0x8] sm:$0xff] %v1510
        %1519 = vst [vmem:[%s490 + $0x10] sm:$0xff] %v1511
        %vm1520 = vcmask 908288
        %1521 = vst.msk [vmem:[%s490 + $0x18] sm:$0xff] %vm1520, %v1512
        %1522 = vst [vmem:[%s490 + $0x20] sm:$0xff] %v1513
        %1523 = vst [vmem:[%s490 + $0x28] sm:$0xff] %v1514
        %1524 = vst [vmem:[%s490 + $0x30] sm:$0xff] %v1515
        %1525 = vst.msk [vmem:[%s490 + $0x38] sm:$0xff] %vm1520, %v1516
        %v1526 = vpack.c.bf16 %v1513, %v1509
        %v1527 = vpack.c.bf16 %v1514, %v1510
        %v1528 = vpack.c.bf16 %v1515, %v1511
        %v1529 = vpack.c.bf16 %v1516, %v1512
        %1534 = vrot.lane.b32.xlu0 %v1526, 45
        %v1535 = vpop.permute.xlu0 %1534
        %1536 = vrot.lane.b32.xlu0 %v1527, 45
        %v1537 = vpop.permute.xlu0 %1536
        %1538 = vrot.lane.b32.xlu0 %v1528, 45
        %v1539 = vpop.permute.xlu0 %1538
        %1540 = vrot.lane.b32.xlu0 %v1529, 45
        %v1541 = vpop.permute.xlu0 %1540
        %vm1542 = vcmask 367616
        %v1543 = vsel %vm1542, %v1535, %v1537
        %v1544 = vsel %vm1542, %v1537, %v1539
        %v1545 = vsel %vm1542, %v1539, %v1541
        %vm1551 = vcmask 1047912
        %1552 = vst.msk [vmem:[#allocation2] sm:$0xff] %vm1551, %v1535
        %1553 = vst [vmem:[#allocation2 + $0x8] sm:$0xff] %v1543
        %1554 = vst [vmem:[#allocation2 + $0x10] sm:$0xff] %v1544
        %1555 = vst [vmem:[#allocation2 + $0x18] sm:$0xff] %v1545
        %vm1556 = vcmask 228352
        %1557 = vst.msk [vmem:[#allocation2 + $0x20] sm:$0xff] %vm1556, %v1541
        %v1558 = vld [vmem:[#allocation2] sm:$0xff]
        %v1559 = vld [vmem:[#allocation2 + $0x8] sm:$0xff]
        %v1560 = vld [vmem:[#allocation2 + $0x10] sm:$0xff]
        %v1561 = vld [vmem:[#allocation2 + $0x18] sm:$0xff]
        %v1562 = vld [vmem:[#allocation2 + $0x20] sm:$0xff]
        %v1563 = vld [vmem:[%s4] sm:$0xf]
        %v1564 = vld [vmem:[%s4 + $0x4] sm:$0xf]
        %s1565 = scalar_lea.vmem %s4, 8
        %v1566 = vld [vmem:[%s1565] sm:$0xf]
        %v1567 = vld [vmem:[%s1565 + $0x4] sm:$0xf]
        %v1570 = vunpack.c.l.b16 %v1566
        %v1571 = vunpack.c.l.b16 %v1567
        %v1572 = vpack.c.b16 %v1571, %v1570
        %1578 = vrot.lane.b32.xlu0 %v1558, 98
        %v1579 = vpop.permute.xlu0 %1578
        %1580 = vrot.lane.b32.xlu0 %v1559, 98
        %v1581 = vpop.permute.xlu0 %1580
        %1582 = vrot.lane.b32.xlu0 %v1560, 98
        %v1583 = vpop.permute.xlu0 %1582
        %1584 = vrot.lane.b32.xlu0 %v1561, 98
        %v1585 = vpop.permute.xlu0 %1584
        %1586 = vrot.lane.b32.xlu0 %v1562, 98
        %v1587 = vpop.permute.xlu0 %1586
        %vm1588 = vcmask 801792
        %v1589 = vsel %vm1588, %v1579, %v1581
        %v1590 = vsel %vm1588, %v1581, %v1583
        %v1591 = vsel %vm1588, %v1583, %v1585
        %v1592 = vsel %vm1588, %v1585, %v1587
        %vm1597 = vcmask 130048
        %v1599 = vsel %vm1597, %v1572, 0
        %1601 = vmatprep.subr.bf16.mxu0 %v1590
        %1602 = vmatpush1.bf16.msra.mxu0 %v1589
        %1603 = vmatprep.subr.bf16.mxu0 0
        %1604 = vmatpush1.bf16.msra.mxu0 0
        %1605 = vmatprep.subr.bf16.mxu0 0
        %1606 = vmatpush1.bf16.msra.mxu0 0
        %1607 = vmatprep.subr.bf16.mxu0 0
        %1608 = vmatpush1.bf16.msra.mxu0 0
        %1609 = vmatprep.subr.bf16.mxu0 0
        %1610 = vmatpush1.bf16.msra.mxu0 0
        %1611 = vmatprep.subr.bf16.mxu0 0
        %1612 = vmatpush1.bf16.msra.mxu0 0
        %1613 = vmatprep.subr.bf16.mxu0 0
        %1614 = vmatpush1.bf16.msra.mxu0 0
        %1615 = vmatprep.subr.bf16.mxu0 0
        %1616 = vmatpush1.bf16.msra.mxu0 0
        %1617 = vmatprep.subr.bf16.mxu0 0
        %1618 = vmatpush1.bf16.msra.mxu0 0
        %1619 = vmatprep.subr.bf16.mxu0 0
        %1620 = vmatpush1.bf16.msra.mxu0 0
        %1621 = vmatprep.subr.bf16.mxu0 0
        %1622 = vmatpush1.bf16.msra.mxu0 0
        %1623 = vmatprep.subr.bf16.mxu0 0
        %1624 = vmatpush1.bf16.msra.mxu0 0
        %1625 = vmatprep.subr.bf16.mxu0 0
        %1626 = vmatpush1.bf16.msra.mxu0 0
        %1627 = vmatprep.subr.bf16.mxu0 0
        %1628 = vmatpush1.bf16.msra.mxu0 0
        %1629 = vmatprep.subr.bf16.mxu0 0
        %1630 = vmatpush1.bf16.msra.mxu0 0
        %1631 = vmatprep.subr.bf16.mxu0 0
        %1632 = vmatpush1.bf16.msra.mxu0 0
        %1633 = vmatprep.mubr.bf16.mxu0 0
        %1634 = vmatmul.mubr.bf16.gmra.mrb[0].mxu0 %v1599
        %v1635 = vpop.f32.mrb[0].mxu0
        %v1636 = vadd.f32 0.0, %v1635
        %v1637 = vpop.f32.mrb[0].mxu0
        %v1638 = vadd.f32 0.0, %v1637
        %v1639 = vpop.f32.mrb[0].mxu0
        %v1640 = vadd.f32 0.0, %v1639
        %v1641 = vpop.f32.mrb[0].mxu0
        %v1642 = vadd.f32 0.0, %v1641
        %1643 = vdwg.mxu0
        %1644 = vmatprep.subr.bf16.mxu0 %v1592
        %1645 = vmatpush1.bf16.msra.mxu0 %v1591
        %1646 = vmatprep.subr.bf16.mxu0 0
        %1647 = vmatpush1.bf16.msra.mxu0 0
        %1648 = vmatprep.subr.bf16.mxu0 0
        %1649 = vmatpush1.bf16.msra.mxu0 0
        %1650 = vmatprep.subr.bf16.mxu0 0
        %1651 = vmatpush1.bf16.msra.mxu0 0
        %1652 = vmatprep.subr.bf16.mxu0 0
        %1653 = vmatpush1.bf16.msra.mxu0 0
        %1654 = vmatprep.subr.bf16.mxu0 0
        %1655 = vmatpush1.bf16.msra.mxu0 0
        %1656 = vmatprep.subr.bf16.mxu0 0
        %1657 = vmatpush1.bf16.msra.mxu0 0
        %1658 = vmatprep.subr.bf16.mxu0 0
        %1659 = vmatpush1.bf16.msra.mxu0 0
        %1660 = vmatprep.subr.bf16.mxu0 0
        %1661 = vmatpush1.bf16.msra.mxu0 0
        %1662 = vmatprep.subr.bf16.mxu0 0
        %1663 = vmatpush1.bf16.msra.mxu0 0
        %1664 = vmatprep.subr.bf16.mxu0 0
        %1665 = vmatpush1.bf16.msra.mxu0 0
        %1666 = vmatprep.subr.bf16.mxu0 0
        %1667 = vmatpush1.bf16.msra.mxu0 0
        %1668 = vmatprep.subr.bf16.mxu0 0
        %1669 = vmatpush1.bf16.msra.mxu0 0
        %1670 = vmatprep.subr.bf16.mxu0 0
        %1671 = vmatpush1.bf16.msra.mxu0 0
        %1672 = vmatprep.subr.bf16.mxu0 0
        %1673 = vmatpush1.bf16.msra.mxu0 0
        %1674 = vmatprep.subr.bf16.mxu0 0
        %1675 = vmatpush1.bf16.msra.mxu0 0
        %1676 = vmatprep.mubr.bf16.mxu0 0
        %1677 = vmatmul.mubr.bf16.gmra.mrb[0].mxu0 %v1599
        %v1678 = vpop.f32.mrb[0].mxu0
        %v1679 = vadd.f32 0.0, %v1678
        %v1680 = vpop.f32.mrb[0].mxu0
        %v1681 = vadd.f32 0.0, %v1680
        %v1682 = vpop.f32.mrb[0].mxu0
        %v1683 = vadd.f32 0.0, %v1682
        %v1684 = vpop.f32.mrb[0].mxu0
        %v1685 = vadd.f32 0.0, %v1684
        %1686 = vdwg.mxu0
        %v1689 = vunpack.c.l.b16 %v1563
        %v1690 = vunpack.c.l.b16 %v1564
        %v1691 = vpack.c.b16 %v1690, %v1689
        %1692 = vrot.lane.b32.xlu0 %v1558, 99
        %v1693 = vpop.permute.xlu0 %1692
        %1694 = vrot.lane.b32.xlu0 %v1559, 99
        %v1695 = vpop.permute.xlu0 %1694
        %1696 = vrot.lane.b32.xlu0 %v1560, 99
        %v1697 = vpop.permute.xlu0 %1696
        %1698 = vrot.lane.b32.xlu0 %v1561, 99
        %v1699 = vpop.permute.xlu0 %1698
        %1700 = vrot.lane.b32.xlu0 %v1562, 99
        %v1701 = vpop.permute.xlu0 %1700
        %vm1702 = vcmask 809984
        %v1703 = vsel %vm1702, %v1693, %v1695
        %v1704 = vsel %vm1702, %v1695, %v1697
        %v1705 = vsel %vm1702, %v1697, %v1699
        %v1706 = vsel %vm1702, %v1699, %v1701
        %v1712 = vsel %vm1597, %v1691, 0
        %1714 = vmatprep.subr.bf16.mxu0 %v1704
        %1715 = vmatpush1.bf16.msra.mxu0 %v1703
        %1716 = vmatprep.subr.bf16.mxu0 0
        %1717 = vmatpush1.bf16.msra.mxu0 0
        %1718 = vmatprep.subr.bf16.mxu0 0
        %1719 = vmatpush1.bf16.msra.mxu0 0
        %1720 = vmatprep.subr.bf16.mxu0 0
        %1721 = vmatpush1.bf16.msra.mxu0 0
        %1722 = vmatprep.subr.bf16.mxu0 0
        %1723 = vmatpush1.bf16.msra.mxu0 0
        %1724 = vmatprep.subr.bf16.mxu0 0
        %1725 = vmatpush1.bf16.msra.mxu0 0
        %1726 = vmatprep.subr.bf16.mxu0 0
        %1727 = vmatpush1.bf16.msra.mxu0 0
        %1728 = vmatprep.subr.bf16.mxu0 0
        %1729 = vmatpush1.bf16.msra.mxu0 0
        %1730 = vmatprep.subr.bf16.mxu0 0
        %1731 = vmatpush1.bf16.msra.mxu0 0
        %1732 = vmatprep.subr.bf16.mxu0 0
        %1733 = vmatpush1.bf16.msra.mxu0 0
        %1734 = vmatprep.subr.bf16.mxu0 0
        %1735 = vmatpush1.bf16.msra.mxu0 0
        %1736 = vmatprep.subr.bf16.mxu0 0
        %1737 = vmatpush1.bf16.msra.mxu0 0
        %1738 = vmatprep.subr.bf16.mxu0 0
        %1739 = vmatpush1.bf16.msra.mxu0 0
        %1740 = vmatprep.subr.bf16.mxu0 0
        %1741 = vmatpush1.bf16.msra.mxu0 0
        %1742 = vmatprep.subr.bf16.mxu0 0
        %1743 = vmatpush1.bf16.msra.mxu0 0
        %1744 = vmatprep.subr.bf16.mxu0 0
        %1745 = vmatpush1.bf16.msra.mxu0 0
        %1746 = vmatprep.mubr.bf16.mxu0 0
        %1747 = vmatmul.mubr.bf16.gmra.mrb[0].mxu0 %v1712
        %v1748 = vpop.f32.mrb[0].mxu0
        %v1749 = vadd.f32 %v1636, %v1748
        %v1750 = vpop.f32.mrb[0].mxu0
        %v1751 = vadd.f32 %v1638, %v1750
        %v1752 = vpop.f32.mrb[0].mxu0
        %v1753 = vadd.f32 %v1640, %v1752
        %v1754 = vpop.f32.mrb[0].mxu0
        %v1755 = vadd.f32 %v1642, %v1754
        %1756 = vdwg.mxu0
        %1757 = vmatprep.subr.bf16.mxu0 %v1706
        %1758 = vmatpush1.bf16.msra.mxu0 %v1705
        %1759 = vmatprep.subr.bf16.mxu0 0
        %1760 = vmatpush1.bf16.msra.mxu0 0
        %1761 = vmatprep.subr.bf16.mxu0 0
        %1762 = vmatpush1.bf16.msra.mxu0 0
        %1763 = vmatprep.subr.bf16.mxu0 0
        %1764 = vmatpush1.bf16.msra.mxu0 0
        %1765 = vmatprep.subr.bf16.mxu0 0
        %1766 = vmatpush1.bf16.msra.mxu0 0
        %1767 = vmatprep.subr.bf16.mxu0 0
        %1768 = vmatpush1.bf16.msra.mxu0 0
        %1769 = vmatprep.subr.bf16.mxu0 0
        %1770 = vmatpush1.bf16.msra.mxu0 0
        %1771 = vmatprep.subr.bf16.mxu0 0
        %1772 = vmatpush1.bf16.msra.mxu0 0
        %1773 = vmatprep.subr.bf16.mxu0 0
        %1774 = vmatpush1.bf16.msra.mxu0 0
        %1775 = vmatprep.subr.bf16.mxu0 0
        %1776 = vmatpush1.bf16.msra.mxu0 0
        %1777 = vmatprep.subr.bf16.mxu0 0
        %1778 = vmatpush1.bf16.msra.mxu0 0
        %1779 = vmatprep.subr.bf16.mxu0 0
        %1780 = vmatpush1.bf16.msra.mxu0 0
        %1781 = vmatprep.subr.bf16.mxu0 0
        %1782 = vmatpush1.bf16.msra.mxu0 0
        %1783 = vmatprep.subr.bf16.mxu0 0
        %1784 = vmatpush1.bf16.msra.mxu0 0
        %1785 = vmatprep.subr.bf16.mxu0 0
        %1786 = vmatpush1.bf16.msra.mxu0 0
        %1787 = vmatprep.subr.bf16.mxu0 0
        %1788 = vmatpush1.bf16.msra.mxu0 0
        %1789 = vmatprep.mubr.bf16.mxu0 0
        %1790 = vmatmul.mubr.bf16.gmra.mrb[0].mxu0 %v1712
        %v1791 = vpop.f32.mrb[0].mxu0
        %v1792 = vadd.f32 %v1679, %v1791
        %v1793 = vpop.f32.mrb[0].mxu0
        %v1794 = vadd.f32 %v1681, %v1793
        %v1795 = vpop.f32.mrb[0].mxu0
        %v1796 = vadd.f32 %v1683, %v1795
        %v1797 = vpop.f32.mrb[0].mxu0
        %v1798 = vadd.f32 %v1685, %v1797
        %1799 = vdwg.mxu0
        %s1800 = scalar_lea.vmem %s4, 16
        %v1801 = vld [vmem:[%s1800] sm:$0xf]
        %v1802 = vld [vmem:[%s1800 + $0x4] sm:$0xf]
        %v1805 = vunpack.c.l.b16 %v1801
        %v1806 = vunpack.c.l.b16 %v1802
        %v1807 = vpack.c.b16 %v1806, %v1805
        %1808 = vrot.lane.b32.xlu0 %v1558, 97
        %v1809 = vpop.permute.xlu0 %1808
        %1810 = vrot.lane.b32.xlu0 %v1559, 97
        %v1811 = vpop.permute.xlu0 %1810
        %1812 = vrot.lane.b32.xlu0 %v1560, 97
        %v1813 = vpop.permute.xlu0 %1812
        %1814 = vrot.lane.b32.xlu0 %v1561, 97
        %v1815 = vpop.permute.xlu0 %1814
        %1816 = vrot.lane.b32.xlu0 %v1562, 97
        %v1817 = vpop.permute.xlu0 %1816
        %vm1818 = vcmask 793600
        %v1819 = vsel %vm1818, %v1809, %v1811
        %v1820 = vsel %vm1818, %v1811, %v1813
        %v1821 = vsel %vm1818, %v1813, %v1815
        %v1822 = vsel %vm1818, %v1815, %v1817
        %v1828 = vsel %vm1597, %v1807, 0
        %1830 = vmatprep.subr.bf16.mxu0 %v1820
        %1831 = vmatpush1.bf16.msra.mxu0 %v1819
        %1832 = vmatprep.subr.bf16.mxu0 0
        %1833 = vmatpush1.bf16.msra.mxu0 0
        %1834 = vmatprep.subr.bf16.mxu0 0
        %1835 = vmatpush1.bf16.msra.mxu0 0
        %1836 = vmatprep.subr.bf16.mxu0 0
        %1837 = vmatpush1.bf16.msra.mxu0 0
        %1838 = vmatprep.subr.bf16.mxu0 0
        %1839 = vmatpush1.bf16.msra.mxu0 0
        %1840 = vmatprep.subr.bf16.mxu0 0
        %1841 = vmatpush1.bf16.msra.mxu0 0
        %1842 = vmatprep.subr.bf16.mxu0 0
        %1843 = vmatpush1.bf16.msra.mxu0 0
        %1844 = vmatprep.subr.bf16.mxu0 0
        %1845 = vmatpush1.bf16.msra.mxu0 0
        %1846 = vmatprep.subr.bf16.mxu0 0
        %1847 = vmatpush1.bf16.msra.mxu0 0
        %1848 = vmatprep.subr.bf16.mxu0 0
        %1849 = vmatpush1.bf16.msra.mxu0 0
        %1850 = vmatprep.subr.bf16.mxu0 0
        %1851 = vmatpush1.bf16.msra.mxu0 0
        %1852 = vmatprep.subr.bf16.mxu0 0
        %1853 = vmatpush1.bf16.msra.mxu0 0
        %1854 = vmatprep.subr.bf16.mxu0 0
        %1855 = vmatpush1.bf16.msra.mxu0 0
        %1856 = vmatprep.subr.bf16.mxu0 0
        %1857 = vmatpush1.bf16.msra.mxu0 0
        %1858 = vmatprep.subr.bf16.mxu0 0
        %1859 = vmatpush1.bf16.msra.mxu0 0
        %1860 = vmatprep.subr.bf16.mxu0 0
        %1861 = vmatpush1.bf16.msra.mxu0 0
        %1862 = vmatprep.mubr.bf16.mxu0 0
        %1863 = vmatmul.mubr.bf16.gmra.mrb[0].mxu0 %v1828
        %v1864 = vpop.f32.mrb[0].mxu0
        %v1865 = vadd.f32 0.0, %v1864
        %v1866 = vpop.f32.mrb[0].mxu0
        %v1867 = vadd.f32 0.0, %v1866
        %v1868 = vpop.f32.mrb[0].mxu0
        %v1869 = vadd.f32 0.0, %v1868
        %v1870 = vpop.f32.mrb[0].mxu0
        %v1871 = vadd.f32 0.0, %v1870
        %1872 = vdwg.mxu0
        %1873 = vmatprep.subr.bf16.mxu0 %v1822
        %1874 = vmatpush1.bf16.msra.mxu0 %v1821
        %1875 = vmatprep.subr.bf16.mxu0 0
        %1876 = vmatpush1.bf16.msra.mxu0 0
        %1877 = vmatprep.subr.bf16.mxu0 0
        %1878 = vmatpush1.bf16.msra.mxu0 0
        %1879 = vmatprep.subr.bf16.mxu0 0
        %1880 = vmatpush1.bf16.msra.mxu0 0
        %1881 = vmatprep.subr.bf16.mxu0 0
        %1882 = vmatpush1.bf16.msra.mxu0 0
        %1883 = vmatprep.subr.bf16.mxu0 0
        %1884 = vmatpush1.bf16.msra.mxu0 0
        %1885 = vmatprep.subr.bf16.mxu0 0
        %1886 = vmatpush1.bf16.msra.mxu0 0
        %1887 = vmatprep.subr.bf16.mxu0 0
        %1888 = vmatpush1.bf16.msra.mxu0 0
        %1889 = vmatprep.subr.bf16.mxu0 0
        %1890 = vmatpush1.bf16.msra.mxu0 0
        %1891 = vmatprep.subr.bf16.mxu0 0
        %1892 = vmatpush1.bf16.msra.mxu0 0
        %1893 = vmatprep.subr.bf16.mxu0 0
        %1894 = vmatpush1.bf16.msra.mxu0 0
        %1895 = vmatprep.subr.bf16.mxu0 0
        %1896 = vmatpush1.bf16.msra.mxu0 0
        %1897 = vmatprep.subr.bf16.mxu0 0
        %1898 = vmatpush1.bf16.msra.mxu0 0
        %1899 = vmatprep.subr.bf16.mxu0 0
        %1900 = vmatpush1.bf16.msra.mxu0 0
        %1901 = vmatprep.subr.bf16.mxu0 0
        %1902 = vmatpush1.bf16.msra.mxu0 0
        %1903 = vmatprep.subr.bf16.mxu0 0
        %1904 = vmatpush1.bf16.msra.mxu0 0
        %1905 = vmatprep.mubr.bf16.mxu0 0
        %1906 = vmatmul.mubr.bf16.gmra.mrb[0].mxu0 %v1828
        %v1907 = vpop.f32.mrb[0].mxu0
        %v1908 = vadd.f32 0.0, %v1907
        %v1909 = vpop.f32.mrb[0].mxu0
        %v1910 = vadd.f32 0.0, %v1909
        %v1911 = vpop.f32.mrb[0].mxu0
        %v1912 = vadd.f32 0.0, %v1911
        %v1913 = vpop.f32.mrb[0].mxu0
        %v1914 = vadd.f32 0.0, %v1913
        %1915 = vdwg.mxu0
        %v1916 = vadd.f32 %v1749, %v1865
        %v1917 = vadd.f32 %v1751, %v1867
        %v1918 = vadd.f32 %v1792, %v1908
        %v1919 = vadd.f32 %v1794, %v1910
        %v1920 = vadd.f32 %v1753, %v1869
        %v1921 = vadd.f32 %v1755, %v1871
        %v1922 = vadd.f32 %v1796, %v1912
        %v1923 = vadd.f32 %v1798, %v1914
        %s1924 = scalar_lea.vmem %s4, 24
        %v1925 = vld [vmem:[%s1924] sm:$0xf]
        %v1926 = vld [vmem:[%s1924 + $0x4] sm:$0xf]
        %v1929 = vunpack.c.l.b16 %v1925
        %v1930 = vunpack.c.l.b16 %v1926
        %v1931 = vpack.c.b16 %v1930, %v1929
        %1932 = vrot.lane.b32.xlu0 %v1558, 84
        %v1933 = vpop.permute.xlu0 %1932
        %1934 = vrot.lane.b32.xlu0 %v1559, 84
        %v1935 = vpop.permute.xlu0 %1934
        %1936 = vrot.lane.b32.xlu0 %v1560, 84
        %v1937 = vpop.permute.xlu0 %1936
        %1938 = vrot.lane.b32.xlu0 %v1561, 84
        %v1939 = vpop.permute.xlu0 %1938
        %1940 = vrot.lane.b32.xlu0 %v1562, 84
        %v1941 = vpop.permute.xlu0 %1940
        %vm1942 = vcmask 687104
        %v1943 = vsel %vm1942, %v1933, %v1935
        %v1944 = vsel %vm1942, %v1935, %v1937
        %v1945 = vsel %vm1942, %v1937, %v1939
        %v1946 = vsel %vm1942, %v1939, %v1941
        %v1952 = vsel %vm1597, %v1931, 0
        %1954 = vmatprep.subr.bf16.mxu0 %v1944
        %1955 = vmatpush1.bf16.msra.mxu0 %v1943
        %1956 = vmatprep.subr.bf16.mxu0 0
        %1957 = vmatpush1.bf16.msra.mxu0 0
        %1958 = vmatprep.subr.bf16.mxu0 0
        %1959 = vmatpush1.bf16.msra.mxu0 0
        %1960 = vmatprep.subr.bf16.mxu0 0
        %1961 = vmatpush1.bf16.msra.mxu0 0
        %1962 = vmatprep.subr.bf16.mxu0 0
        %1963 = vmatpush1.bf16.msra.mxu0 0
        %1964 = vmatprep.subr.bf16.mxu0 0
        %1965 = vmatpush1.bf16.msra.mxu0 0
        %1966 = vmatprep.subr.bf16.mxu0 0
        %1967 = vmatpush1.bf16.msra.mxu0 0
        %1968 = vmatprep.subr.bf16.mxu0 0
        %1969 = vmatpush1.bf16.msra.mxu0 0
        %1970 = vmatprep.subr.bf16.mxu0 0
        %1971 = vmatpush1.bf16.msra.mxu0 0
        %1972 = vmatprep.subr.bf16.mxu0 0
        %1973 = vmatpush1.bf16.msra.mxu0 0
        %1974 = vmatprep.subr.bf16.mxu0 0
        %1975 = vmatpush1.bf16.msra.mxu0 0
        %1976 = vmatprep.subr.bf16.mxu0 0
        %1977 = vmatpush1.bf16.msra.mxu0 0
        %1978 = vmatprep.subr.bf16.mxu0 0
        %1979 = vmatpush1.bf16.msra.mxu0 0
        %1980 = vmatprep.subr.bf16.mxu0 0
        %1981 = vmatpush1.bf16.msra.mxu0 0
        %1982 = vmatprep.subr.bf16.mxu0 0
        %1983 = vmatpush1.bf16.msra.mxu0 0
        %1984 = vmatprep.subr.bf16.mxu0 0
        %1985 = vmatpush1.bf16.msra.mxu0 0
        %1986 = vmatprep.mubr.bf16.mxu0 0
        %1987 = vmatmul.mubr.bf16.gmra.mrb[0].mxu0 %v1952
        %v1988 = vpop.f32.mrb[0].mxu0
        %v1989 = vadd.f32 0.0, %v1988
        %v1990 = vpop.f32.mrb[0].mxu0
        %v1991 = vadd.f32 0.0, %v1990
        %v1992 = vpop.f32.mrb[0].mxu0
        %v1993 = vadd.f32 0.0, %v1992
        %v1994 = vpop.f32.mrb[0].mxu0
        %v1995 = vadd.f32 0.0, %v1994
        %1996 = vdwg.mxu0
        %1997 = vmatprep.subr.bf16.mxu0 %v1946
        %1998 = vmatpush1.bf16.msra.mxu0 %v1945
        %1999 = vmatprep.subr.bf16.mxu0 0
        %2000 = vmatpush1.bf16.msra.mxu0 0
        %2001 = vmatprep.subr.bf16.mxu0 0
        %2002 = vmatpush1.bf16.msra.mxu0 0
        %2003 = vmatprep.subr.bf16.mxu0 0
        %2004 = vmatpush1.bf16.msra.mxu0 0
        %2005 = vmatprep.subr.bf16.mxu0 0
        %2006 = vmatpush1.bf16.msra.mxu0 0
        %2007 = vmatprep.subr.bf16.mxu0 0
        %2008 = vmatpush1.bf16.msra.mxu0 0
        %2009 = vmatprep.subr.bf16.mxu0 0
        %2010 = vmatpush1.bf16.msra.mxu0 0
        %2011 = vmatprep.subr.bf16.mxu0 0
        %2012 = vmatpush1.bf16.msra.mxu0 0
        %2013 = vmatprep.subr.bf16.mxu0 0
        %2014 = vmatpush1.bf16.msra.mxu0 0
        %2015 = vmatprep.subr.bf16.mxu0 0
        %2016 = vmatpush1.bf16.msra.mxu0 0
        %2017 = vmatprep.subr.bf16.mxu0 0
        %2018 = vmatpush1.bf16.msra.mxu0 0
        %2019 = vmatprep.subr.bf16.mxu0 0
        %2020 = vmatpush1.bf16.msra.mxu0 0
        %2021 = vmatprep.subr.bf16.mxu0 0
        %2022 = vmatpush1.bf16.msra.mxu0 0
        %2023 = vmatprep.subr.bf16.mxu0 0
        %2024 = vmatpush1.bf16.msra.mxu0 0
        %2025 = vmatprep.subr.bf16.mxu0 0
        %2026 = vmatpush1.bf16.msra.mxu0 0
        %2027 = vmatprep.subr.bf16.mxu0 0
        %2028 = vmatpush1.bf16.msra.mxu0 0
        %2029 = vmatprep.mubr.bf16.mxu0 0
        %2030 = vmatmul.mubr.bf16.gmra.mrb[0].mxu0 %v1952
        %v2031 = vpop.f32.mrb[0].mxu0
        %v2032 = vadd.f32 0.0, %v2031
        %v2033 = vpop.f32.mrb[0].mxu0
        %v2034 = vadd.f32 0.0, %v2033
        %v2035 = vpop.f32.mrb[0].mxu0
        %v2036 = vadd.f32 0.0, %v2035
        %v2037 = vpop.f32.mrb[0].mxu0
        %v2038 = vadd.f32 0.0, %v2037
        %2039 = vdwg.mxu0
        %v2040 = vadd.f32 %v1916, %v1989
        %v2041 = vadd.f32 %v1917, %v1991
        %v2042 = vadd.f32 %v1918, %v2032
        %v2043 = vadd.f32 %v1919, %v2034
        %v2044 = vadd.f32 %v1920, %v1993
        %v2045 = vadd.f32 %v1921, %v1995
        %v2046 = vadd.f32 %v1922, %v2036
        %v2047 = vadd.f32 %v1923, %v2038
        %s2048 = scalar_lea.vmem %s4, 32
        %v2049 = vld [vmem:[%s2048] sm:$0xf]
        %v2050 = vld [vmem:[%s2048 + $0x4] sm:$0xf]
        %v2053 = vunpack.c.l.b16 %v2049
        %v2054 = vunpack.c.l.b16 %v2050
        %v2055 = vpack.c.b16 %v2054, %v2053
        %2056 = vrot.lane.b32.xlu0 %v1558, 83
        %v2057 = vpop.permute.xlu0 %2056
        %2058 = vrot.lane.b32.xlu0 %v1559, 83
        %v2059 = vpop.permute.xlu0 %2058
        %2060 = vrot.lane.b32.xlu0 %v1560, 83
        %v2061 = vpop.permute.xlu0 %2060
        %2062 = vrot.lane.b32.xlu0 %v1561, 83
        %v2063 = vpop.permute.xlu0 %2062
        %2064 = vrot.lane.b32.xlu0 %v1562, 83
        %v2065 = vpop.permute.xlu0 %2064
        %vm2066 = vcmask 678912
        %v2067 = vsel %vm2066, %v2057, %v2059
        %v2068 = vsel %vm2066, %v2059, %v2061
        %v2069 = vsel %vm2066, %v2061, %v2063
        %v2070 = vsel %vm2066, %v2063, %v2065
        %v2076 = vsel %vm1597, %v2055, 0
        %2078 = vmatprep.subr.bf16.mxu0 %v2068
        %2079 = vmatpush1.bf16.msra.mxu0 %v2067
        %2080 = vmatprep.subr.bf16.mxu0 0
        %2081 = vmatpush1.bf16.msra.mxu0 0
        %2082 = vmatprep.subr.bf16.mxu0 0
        %2083 = vmatpush1.bf16.msra.mxu0 0
        %2084 = vmatprep.subr.bf16.mxu0 0
        %2085 = vmatpush1.bf16.msra.mxu0 0
        %2086 = vmatprep.subr.bf16.mxu0 0
        %2087 = vmatpush1.bf16.msra.mxu0 0
        %2088 = vmatprep.subr.bf16.mxu0 0
        %2089 = vmatpush1.bf16.msra.mxu0 0
        %2090 = vmatprep.subr.bf16.mxu0 0
        %2091 = vmatpush1.bf16.msra.mxu0 0
        %2092 = vmatprep.subr.bf16.mxu0 0
        %2093 = vmatpush1.bf16.msra.mxu0 0
        %2094 = vmatprep.subr.bf16.mxu0 0
        %2095 = vmatpush1.bf16.msra.mxu0 0
        %2096 = vmatprep.subr.bf16.mxu0 0
        %2097 = vmatpush1.bf16.msra.mxu0 0
        %2098 = vmatprep.subr.bf16.mxu0 0
        %2099 = vmatpush1.bf16.msra.mxu0 0
        %2100 = vmatprep.subr.bf16.mxu0 0
        %2101 = vmatpush1.bf16.msra.mxu0 0
        %2102 = vmatprep.subr.bf16.mxu0 0
        %2103 = vmatpush1.bf16.msra.mxu0 0
        %2104 = vmatprep.subr.bf16.mxu0 0
        %2105 = vmatpush1.bf16.msra.mxu0 0
        %2106 = vmatprep.subr.bf16.mxu0 0
        %2107 = vmatpush1.bf16.msra.mxu0 0
        %2108 = vmatprep.subr.bf16.mxu0 0
        %2109 = vmatpush1.bf16.msra.mxu0 0
        %2110 = vmatprep.mubr.bf16.mxu0 0
        %2111 = vmatmul.mubr.bf16.gmra.mrb[0].mxu0 %v2076
        %v2112 = vpop.f32.mrb[0].mxu0
        %v2113 = vadd.f32 0.0, %v2112
        %v2114 = vpop.f32.mrb[0].mxu0
        %v2115 = vadd.f32 0.0, %v2114
        %v2116 = vpop.f32.mrb[0].mxu0
        %v2117 = vadd.f32 0.0, %v2116
        %v2118 = vpop.f32.mrb[0].mxu0
        %v2119 = vadd.f32 0.0, %v2118
        %2120 = vdwg.mxu0
        %2121 = vmatprep.subr.bf16.mxu0 %v2070
        %2122 = vmatpush1.bf16.msra.mxu0 %v2069
        %2123 = vmatprep.subr.bf16.mxu0 0
        %2124 = vmatpush1.bf16.msra.mxu0 0
        %2125 = vmatprep.subr.bf16.mxu0 0
        %2126 = vmatpush1.bf16.msra.mxu0 0
        %2127 = vmatprep.subr.bf16.mxu0 0
        %2128 = vmatpush1.bf16.msra.mxu0 0
        %2129 = vmatprep.subr.bf16.mxu0 0
        %2130 = vmatpush1.bf16.msra.mxu0 0
        %2131 = vmatprep.subr.bf16.mxu0 0
        %2132 = vmatpush1.bf16.msra.mxu0 0
        %2133 = vmatprep.subr.bf16.mxu0 0
        %2134 = vmatpush1.bf16.msra.mxu0 0
        %2135 = vmatprep.subr.bf16.mxu0 0
        %2136 = vmatpush1.bf16.msra.mxu0 0
        %2137 = vmatprep.subr.bf16.mxu0 0
        %2138 = vmatpush1.bf16.msra.mxu0 0
        %2139 = vmatprep.subr.bf16.mxu0 0
        %2140 = vmatpush1.bf16.msra.mxu0 0
        %2141 = vmatprep.subr.bf16.mxu0 0
        %2142 = vmatpush1.bf16.msra.mxu0 0
        %2143 = vmatprep.subr.bf16.mxu0 0
        %2144 = vmatpush1.bf16.msra.mxu0 0
        %2145 = vmatprep.subr.bf16.mxu0 0
        %2146 = vmatpush1.bf16.msra.mxu0 0
        %2147 = vmatprep.subr.bf16.mxu0 0
        %2148 = vmatpush1.bf16.msra.mxu0 0
        %2149 = vmatprep.subr.bf16.mxu0 0
        %2150 = vmatpush1.bf16.msra.mxu0 0
        %2151 = vmatprep.subr.bf16.mxu0 0
        %2152 = vmatpush1.bf16.msra.mxu0 0
        %2153 = vmatprep.mubr.bf16.mxu0 0
        %2154 = vmatmul.mubr.bf16.gmra.mrb[0].mxu0 %v2076
        %v2155 = vpop.f32.mrb[0].mxu0
        %v2156 = vadd.f32 0.0, %v2155
        %v2157 = vpop.f32.mrb[0].mxu0
        %v2158 = vadd.f32 0.0, %v2157
        %v2159 = vpop.f32.mrb[0].mxu0
        %v2160 = vadd.f32 0.0, %v2159
        %v2161 = vpop.f32.mrb[0].mxu0
        %v2162 = vadd.f32 0.0, %v2161
        %2163 = vdwg.mxu0
        %v2164 = vadd.f32 %v2040, %v2113
        %v2165 = vadd.f32 %v2041, %v2115
        %v2166 = vadd.f32 %v2042, %v2156
        %v2167 = vadd.f32 %v2043, %v2158
        %v2168 = vadd.f32 %v2044, %v2117
        %v2169 = vadd.f32 %v2045, %v2119
        %v2170 = vadd.f32 %v2046, %v2160
        %v2171 = vadd.f32 %v2047, %v2162
        %s2172 = scalar_lea.vmem %s4, 40
        %v2173 = vld [vmem:[%s2172] sm:$0xf]
        %v2174 = vld [vmem:[%s2172 + $0x4] sm:$0xf]
        %v2177 = vunpack.c.l.b16 %v2173
        %v2178 = vunpack.c.l.b16 %v2174
        %v2179 = vpack.c.b16 %v2178, %v2177
        %2180 = vrot.lane.b32.xlu0 %v1558, 82
        %v2181 = vpop.permute.xlu0 %2180
        %2182 = vrot.lane.b32.xlu0 %v1559, 82
        %v2183 = vpop.permute.xlu0 %2182
        %2184 = vrot.lane.b32.xlu0 %v1560, 82
        %v2185 = vpop.permute.xlu0 %2184
        %2186 = vrot.lane.b32.xlu0 %v1561, 82
        %v2187 = vpop.permute.xlu0 %2186
        %2188 = vrot.lane.b32.xlu0 %v1562, 82
        %v2189 = vpop.permute.xlu0 %2188
        %vm2190 = vcmask 670720
        %v2191 = vsel %vm2190, %v2181, %v2183
        %v2192 = vsel %vm2190, %v2183, %v2185
        %v2193 = vsel %vm2190, %v2185, %v2187
        %v2194 = vsel %vm2190, %v2187, %v2189
        %v2200 = vsel %vm1597, %v2179, 0
        %2202 = vmatprep.subr.bf16.mxu0 %v2192
        %2203 = vmatpush1.bf16.msra.mxu0 %v2191
        %2204 = vmatprep.subr.bf16.mxu0 0
        %2205 = vmatpush1.bf16.msra.mxu0 0
        %2206 = vmatprep.subr.bf16.mxu0 0
        %2207 = vmatpush1.bf16.msra.mxu0 0
        %2208 = vmatprep.subr.bf16.mxu0 0
        %2209 = vmatpush1.bf16.msra.mxu0 0
        %2210 = vmatprep.subr.bf16.mxu0 0
        %2211 = vmatpush1.bf16.msra.mxu0 0
        %2212 = vmatprep.subr.bf16.mxu0 0
        %2213 = vmatpush1.bf16.msra.mxu0 0
        %2214 = vmatprep.subr.bf16.mxu0 0
        %2215 = vmatpush1.bf16.msra.mxu0 0
        %2216 = vmatprep.subr.bf16.mxu0 0
        %2217 = vmatpush1.bf16.msra.mxu0 0
        %2218 = vmatprep.subr.bf16.mxu0 0
        %2219 = vmatpush1.bf16.msra.mxu0 0
        %2220 = vmatprep.subr.bf16.mxu0 0
        %2221 = vmatpush1.bf16.msra.mxu0 0
        %2222 = vmatprep.subr.bf16.mxu0 0
        %2223 = vmatpush1.bf16.msra.mxu0 0
        %2224 = vmatprep.subr.bf16.mxu0 0
        %2225 = vmatpush1.bf16.msra.mxu0 0
        %2226 = vmatprep.subr.bf16.mxu0 0
        %2227 = vmatpush1.bf16.msra.mxu0 0
        %2228 = vmatprep.subr.bf16.mxu0 0
        %2229 = vmatpush1.bf16.msra.mxu0 0
        %2230 = vmatprep.subr.bf16.mxu0 0
        %2231 = vmatpush1.bf16.msra.mxu0 0
        %2232 = vmatprep.subr.bf16.mxu0 0
        %2233 = vmatpush1.bf16.msra.mxu0 0
        %2234 = vmatprep.mubr.bf16.mxu0 0
        %2235 = vmatmul.mubr.bf16.gmra.mrb[0].mxu0 %v2200
        %v2236 = vpop.f32.mrb[0].mxu0
        %v2237 = vadd.f32 0.0, %v2236
        %v2238 = vpop.f32.mrb[0].mxu0
        %v2239 = vadd.f32 0.0, %v2238
        %v2240 = vpop.f32.mrb[0].mxu0
        %v2241 = vadd.f32 0.0, %v2240
        %v2242 = vpop.f32.mrb[0].mxu0
        %v2243 = vadd.f32 0.0, %v2242
        %2244 = vdwg.mxu0
        %2245 = vmatprep.subr.bf16.mxu0 %v2194
        %2246 = vmatpush1.bf16.msra.mxu0 %v2193
        %2247 = vmatprep.subr.bf16.mxu0 0
        %2248 = vmatpush1.bf16.msra.mxu0 0
        %2249 = vmatprep.subr.bf16.mxu0 0
        %2250 = vmatpush1.bf16.msra.mxu0 0
        %2251 = vmatprep.subr.bf16.mxu0 0
        %2252 = vmatpush1.bf16.msra.mxu0 0
        %2253 = vmatprep.subr.bf16.mxu0 0
        %2254 = vmatpush1.bf16.msra.mxu0 0
        %2255 = vmatprep.subr.bf16.mxu0 0
        %2256 = vmatpush1.bf16.msra.mxu0 0
        %2257 = vmatprep.subr.bf16.mxu0 0
        %2258 = vmatpush1.bf16.msra.mxu0 0
        %2259 = vmatprep.subr.bf16.mxu0 0
        %2260 = vmatpush1.bf16.msra.mxu0 0
        %2261 = vmatprep.subr.bf16.mxu0 0
        %2262 = vmatpush1.bf16.msra.mxu0 0
        %2263 = vmatprep.subr.bf16.mxu0 0
        %2264 = vmatpush1.bf16.msra.mxu0 0
        %2265 = vmatprep.subr.bf16.mxu0 0
        %2266 = vmatpush1.bf16.msra.mxu0 0
        %2267 = vmatprep.subr.bf16.mxu0 0
        %2268 = vmatpush1.bf16.msra.mxu0 0
        %2269 = vmatprep.subr.bf16.mxu0 0
        %2270 = vmatpush1.bf16.msra.mxu0 0
        %2271 = vmatprep.subr.bf16.mxu0 0
        %2272 = vmatpush1.bf16.msra.mxu0 0
        %2273 = vmatprep.subr.bf16.mxu0 0
        %2274 = vmatpush1.bf16.msra.mxu0 0
        %2275 = vmatprep.subr.bf16.mxu0 0
        %2276 = vmatpush1.bf16.msra.mxu0 0
        %2277 = vmatprep.mubr.bf16.mxu0 0
        %2278 = vmatmul.mubr.bf16.gmra.mrb[0].mxu0 %v2200
        %v2279 = vpop.f32.mrb[0].mxu0
        %v2280 = vadd.f32 0.0, %v2279
        %v2281 = vpop.f32.mrb[0].mxu0
        %v2282 = vadd.f32 0.0, %v2281
        %v2283 = vpop.f32.mrb[0].mxu0
        %v2284 = vadd.f32 0.0, %v2283
        %v2285 = vpop.f32.mrb[0].mxu0
        %v2286 = vadd.f32 0.0, %v2285
        %2287 = vdwg.mxu0
        %v2288 = vadd.f32 %v2164, %v2237
        %v2289 = vadd.f32 %v2165, %v2239
        %v2290 = vadd.f32 %v2166, %v2280
        %v2291 = vadd.f32 %v2167, %v2282
        %v2292 = vadd.f32 %v2168, %v2241
        %v2293 = vadd.f32 %v2169, %v2243
        %v2294 = vadd.f32 %v2170, %v2284
        %v2295 = vadd.f32 %v2171, %v2286
        %s2296 = scalar_lea.vmem %s4, 48
        %v2297 = vld [vmem:[%s2296] sm:$0xf]
        %v2298 = vld [vmem:[%s2296 + $0x4] sm:$0xf]
        %v2301 = vunpack.c.l.b16 %v2297
        %v2302 = vunpack.c.l.b16 %v2298
        %v2303 = vpack.c.b16 %v2302, %v2301
        %2304 = vrot.lane.b32.xlu0 %v1558, 69
        %v2305 = vpop.permute.xlu0 %2304
        %2306 = vrot.lane.b32.xlu0 %v1559, 69
        %v2307 = vpop.permute.xlu0 %2306
        %2308 = vrot.lane.b32.xlu0 %v1560, 69
        %v2309 = vpop.permute.xlu0 %2308
        %2310 = vrot.lane.b32.xlu0 %v1561, 69
        %v2311 = vpop.permute.xlu0 %2310
        %2312 = vrot.lane.b32.xlu0 %v1562, 69
        %v2313 = vpop.permute.xlu0 %2312
        %vm2314 = vcmask 564224
        %v2315 = vsel %vm2314, %v2305, %v2307
        %v2316 = vsel %vm2314, %v2307, %v2309
        %v2317 = vsel %vm2314, %v2309, %v2311
        %v2318 = vsel %vm2314, %v2311, %v2313
        %v2324 = vsel %vm1597, %v2303, 0
        %2326 = vmatprep.subr.bf16.mxu0 %v2316
        %2327 = vmatpush1.bf16.msra.mxu0 %v2315
        %2328 = vmatprep.subr.bf16.mxu0 0
        %2329 = vmatpush1.bf16.msra.mxu0 0
        %2330 = vmatprep.subr.bf16.mxu0 0
        %2331 = vmatpush1.bf16.msra.mxu0 0
        %2332 = vmatprep.subr.bf16.mxu0 0
        %2333 = vmatpush1.bf16.msra.mxu0 0
        %2334 = vmatprep.subr.bf16.mxu0 0
        %2335 = vmatpush1.bf16.msra.mxu0 0
        %2336 = vmatprep.subr.bf16.mxu0 0
        %2337 = vmatpush1.bf16.msra.mxu0 0
        %2338 = vmatprep.subr.bf16.mxu0 0
        %2339 = vmatpush1.bf16.msra.mxu0 0
        %2340 = vmatprep.subr.bf16.mxu0 0
        %2341 = vmatpush1.bf16.msra.mxu0 0
        %2342 = vmatprep.subr.bf16.mxu0 0
        %2343 = vmatpush1.bf16.msra.mxu0 0
        %2344 = vmatprep.subr.bf16.mxu0 0
        %2345 = vmatpush1.bf16.msra.mxu0 0
        %2346 = vmatprep.subr.bf16.mxu0 0
        %2347 = vmatpush1.bf16.msra.mxu0 0
        %2348 = vmatprep.subr.bf16.mxu0 0
        %2349 = vmatpush1.bf16.msra.mxu0 0
        %2350 = vmatprep.subr.bf16.mxu0 0
        %2351 = vmatpush1.bf16.msra.mxu0 0
        %2352 = vmatprep.subr.bf16.mxu0 0
        %2353 = vmatpush1.bf16.msra.mxu0 0
        %2354 = vmatprep.subr.bf16.mxu0 0
        %2355 = vmatpush1.bf16.msra.mxu0 0
        %2356 = vmatprep.subr.bf16.mxu0 0
        %2357 = vmatpush1.bf16.msra.mxu0 0
        %2358 = vmatprep.mubr.bf16.mxu0 0
        %2359 = vmatmul.mubr.bf16.gmra.mrb[0].mxu0 %v2324
        %v2360 = vpop.f32.mrb[0].mxu0
        %v2361 = vadd.f32 0.0, %v2360
        %v2362 = vpop.f32.mrb[0].mxu0
        %v2363 = vadd.f32 0.0, %v2362
        %v2364 = vpop.f32.mrb[0].mxu0
        %v2365 = vadd.f32 0.0, %v2364
        %v2366 = vpop.f32.mrb[0].mxu0
        %v2367 = vadd.f32 0.0, %v2366
        %2368 = vdwg.mxu0
        %2369 = vmatprep.subr.bf16.mxu0 %v2318
        %2370 = vmatpush1.bf16.msra.mxu0 %v2317
        %2371 = vmatprep.subr.bf16.mxu0 0
        %2372 = vmatpush1.bf16.msra.mxu0 0
        %2373 = vmatprep.subr.bf16.mxu0 0
        %2374 = vmatpush1.bf16.msra.mxu0 0
        %2375 = vmatprep.subr.bf16.mxu0 0
        %2376 = vmatpush1.bf16.msra.mxu0 0
        %2377 = vmatprep.subr.bf16.mxu0 0
        %2378 = vmatpush1.bf16.msra.mxu0 0
        %2379 = vmatprep.subr.bf16.mxu0 0
        %2380 = vmatpush1.bf16.msra.mxu0 0
        %2381 = vmatprep.subr.bf16.mxu0 0
        %2382 = vmatpush1.bf16.msra.mxu0 0
        %2383 = vmatprep.subr.bf16.mxu0 0
        %2384 = vmatpush1.bf16.msra.mxu0 0
        %2385 = vmatprep.subr.bf16.mxu0 0
        %2386 = vmatpush1.bf16.msra.mxu0 0
        %2387 = vmatprep.subr.bf16.mxu0 0
        %2388 = vmatpush1.bf16.msra.mxu0 0
        %2389 = vmatprep.subr.bf16.mxu0 0
        %2390 = vmatpush1.bf16.msra.mxu0 0
        %2391 = vmatprep.subr.bf16.mxu0 0
        %2392 = vmatpush1.bf16.msra.mxu0 0
        %2393 = vmatprep.subr.bf16.mxu0 0
        %2394 = vmatpush1.bf16.msra.mxu0 0
        %2395 = vmatprep.subr.bf16.mxu0 0
        %2396 = vmatpush1.bf16.msra.mxu0 0
        %2397 = vmatprep.subr.bf16.mxu0 0
        %2398 = vmatpush1.bf16.msra.mxu0 0
        %2399 = vmatprep.subr.bf16.mxu0 0
        %2400 = vmatpush1.bf16.msra.mxu0 0
        %2401 = vmatprep.mubr.bf16.mxu0 0
        %2402 = vmatmul.mubr.bf16.gmra.mrb[0].mxu0 %v2324
        %v2403 = vpop.f32.mrb[0].mxu0
        %v2404 = vadd.f32 0.0, %v2403
        %v2405 = vpop.f32.mrb[0].mxu0
        %v2406 = vadd.f32 0.0, %v2405
        %v2407 = vpop.f32.mrb[0].mxu0
        %v2408 = vadd.f32 0.0, %v2407
        %v2409 = vpop.f32.mrb[0].mxu0
        %v2410 = vadd.f32 0.0, %v2409
        %2411 = vdwg.mxu0
        %v2412 = vadd.f32 %v2288, %v2361
        %v2413 = vadd.f32 %v2289, %v2363
        %v2414 = vadd.f32 %v2290, %v2404
        %v2415 = vadd.f32 %v2291, %v2406
        %v2416 = vadd.f32 %v2292, %v2365
        %v2417 = vadd.f32 %v2293, %v2367
        %v2418 = vadd.f32 %v2294, %v2408
        %v2419 = vadd.f32 %v2295, %v2410
        %s2420 = scalar_lea.vmem %s4, 56
        %v2421 = vld [vmem:[%s2420] sm:$0xf]
        %v2422 = vld [vmem:[%s2420 + $0x4] sm:$0xf]
        %v2425 = vunpack.c.l.b16 %v2421
        %v2426 = vunpack.c.l.b16 %v2422
        %v2427 = vpack.c.b16 %v2426, %v2425
        %2428 = vrot.lane.b32.xlu0 %v1558, 68
        %v2429 = vpop.permute.xlu0 %2428
        %2430 = vrot.lane.b32.xlu0 %v1559, 68
        %v2431 = vpop.permute.xlu0 %2430
        %2432 = vrot.lane.b32.xlu0 %v1560, 68
        %v2433 = vpop.permute.xlu0 %2432
        %2434 = vrot.lane.b32.xlu0 %v1561, 68
        %v2435 = vpop.permute.xlu0 %2434
        %2436 = vrot.lane.b32.xlu0 %v1562, 68
        %v2437 = vpop.permute.xlu0 %2436
        %vm2438 = vcmask 556032
        %v2439 = vsel %vm2438, %v2429, %v2431
        %v2440 = vsel %vm2438, %v2431, %v2433
        %v2441 = vsel %vm2438, %v2433, %v2435
        %v2442 = vsel %vm2438, %v2435, %v2437
        %v2448 = vsel %vm1597, %v2427, 0
        %2450 = vmatprep.subr.bf16.mxu0 %v2440
        %2451 = vmatpush1.bf16.msra.mxu0 %v2439
        %2452 = vmatprep.subr.bf16.mxu0 0
        %2453 = vmatpush1.bf16.msra.mxu0 0
        %2454 = vmatprep.subr.bf16.mxu0 0
        %2455 = vmatpush1.bf16.msra.mxu0 0
        %2456 = vmatprep.subr.bf16.mxu0 0
        %2457 = vmatpush1.bf16.msra.mxu0 0
        %2458 = vmatprep.subr.bf16.mxu0 0
        %2459 = vmatpush1.bf16.msra.mxu0 0
        %2460 = vmatprep.subr.bf16.mxu0 0
        %2461 = vmatpush1.bf16.msra.mxu0 0
        %2462 = vmatprep.subr.bf16.mxu0 0
        %2463 = vmatpush1.bf16.msra.mxu0 0
        %2464 = vmatprep.subr.bf16.mxu0 0
        %2465 = vmatpush1.bf16.msra.mxu0 0
        %2466 = vmatprep.subr.bf16.mxu0 0
        %2467 = vmatpush1.bf16.msra.mxu0 0
        %2468 = vmatprep.subr.bf16.mxu0 0
        %2469 = vmatpush1.bf16.msra.mxu0 0
        %2470 = vmatprep.subr.bf16.mxu0 0
        %2471 = vmatpush1.bf16.msra.mxu0 0
        %2472 = vmatprep.subr.bf16.mxu0 0
        %2473 = vmatpush1.bf16.msra.mxu0 0
        %2474 = vmatprep.subr.bf16.mxu0 0
        %2475 = vmatpush1.bf16.msra.mxu0 0
        %2476 = vmatprep.subr.bf16.mxu0 0
        %2477 = vmatpush1.bf16.msra.mxu0 0
        %2478 = vmatprep.subr.bf16.mxu0 0
        %2479 = vmatpush1.bf16.msra.mxu0 0
        %2480 = vmatprep.subr.bf16.mxu0 0
        %2481 = vmatpush1.bf16.msra.mxu0 0
        %2482 = vmatprep.mubr.bf16.mxu0 0
        %2483 = vmatmul.mubr.bf16.gmra.mrb[0].mxu0 %v2448
        %v2484 = vpop.f32.mrb[0].mxu0
        %v2485 = vadd.f32 0.0, %v2484
        %v2486 = vpop.f32.mrb[0].mxu0
        %v2487 = vadd.f32 0.0, %v2486
        %v2488 = vpop.f32.mrb[0].mxu0
        %v2489 = vadd.f32 0.0, %v2488
        %v2490 = vpop.f32.mrb[0].mxu0
        %v2491 = vadd.f32 0.0, %v2490
        %2492 = vdwg.mxu0
        %2493 = vmatprep.subr.bf16.mxu0 %v2442
        %2494 = vmatpush1.bf16.msra.mxu0 %v2441
        %2495 = vmatprep.subr.bf16.mxu0 0
        %2496 = vmatpush1.bf16.msra.mxu0 0
        %2497 = vmatprep.subr.bf16.mxu0 0
        %2498 = vmatpush1.bf16.msra.mxu0 0
        %2499 = vmatprep.subr.bf16.mxu0 0
        %2500 = vmatpush1.bf16.msra.mxu0 0
        %2501 = vmatprep.subr.bf16.mxu0 0
        %2502 = vmatpush1.bf16.msra.mxu0 0
        %2503 = vmatprep.subr.bf16.mxu0 0
        %2504 = vmatpush1.bf16.msra.mxu0 0
        %2505 = vmatprep.subr.bf16.mxu0 0
        %2506 = vmatpush1.bf16.msra.mxu0 0
        %2507 = vmatprep.subr.bf16.mxu0 0
        %2508 = vmatpush1.bf16.msra.mxu0 0
        %2509 = vmatprep.subr.bf16.mxu0 0
        %2510 = vmatpush1.bf16.msra.mxu0 0
        %2511 = vmatprep.subr.bf16.mxu0 0
        %2512 = vmatpush1.bf16.msra.mxu0 0
        %2513 = vmatprep.subr.bf16.mxu0 0
        %2514 = vmatpush1.bf16.msra.mxu0 0
        %2515 = vmatprep.subr.bf16.mxu0 0
        %2516 = vmatpush1.bf16.msra.mxu0 0
        %2517 = vmatprep.subr.bf16.mxu0 0
        %2518 = vmatpush1.bf16.msra.mxu0 0
        %2519 = vmatprep.subr.bf16.mxu0 0
        %2520 = vmatpush1.bf16.msra.mxu0 0
        %2521 = vmatprep.subr.bf16.mxu0 0
        %2522 = vmatpush1.bf16.msra.mxu0 0
        %2523 = vmatprep.subr.bf16.mxu0 0
        %2524 = vmatpush1.bf16.msra.mxu0 0
        %2525 = vmatprep.mubr.bf16.mxu0 0
        %2526 = vmatmul.mubr.bf16.gmra.mrb[0].mxu0 %v2448
        %v2527 = vpop.f32.mrb[0].mxu0
        %v2528 = vadd.f32 0.0, %v2527
        %v2529 = vpop.f32.mrb[0].mxu0
        %v2530 = vadd.f32 0.0, %v2529
        %v2531 = vpop.f32.mrb[0].mxu0
        %v2532 = vadd.f32 0.0, %v2531
        %v2533 = vpop.f32.mrb[0].mxu0
        %v2534 = vadd.f32 0.0, %v2533
        %2535 = vdwg.mxu0
        %v2536 = vadd.f32 %v2412, %v2485
        %v2537 = vadd.f32 %v2413, %v2487
        %v2538 = vadd.f32 %v2414, %v2528
        %v2539 = vadd.f32 %v2415, %v2530
        %v2540 = vadd.f32 %v2416, %v2489
        %v2541 = vadd.f32 %v2417, %v2491
        %v2542 = vadd.f32 %v2418, %v2532
        %v2543 = vadd.f32 %v2419, %v2534
        %s2544 = scalar_lea.vmem %s4, 64
        %v2545 = vld [vmem:[%s2544] sm:$0xf]
        %v2546 = vld [vmem:[%s2544 + $0x4] sm:$0xf]
        %v2549 = vunpack.c.l.b16 %v2545
        %v2550 = vunpack.c.l.b16 %v2546
        %v2551 = vpack.c.b16 %v2550, %v2549
        %2552 = vrot.lane.b32.xlu0 %v1558, 67
        %v2553 = vpop.permute.xlu0 %2552
        %2554 = vrot.lane.b32.xlu0 %v1559, 67
        %v2555 = vpop.permute.xlu0 %2554
        %2556 = vrot.lane.b32.xlu0 %v1560, 67
        %v2557 = vpop.permute.xlu0 %2556
        %2558 = vrot.lane.b32.xlu0 %v1561, 67
        %v2559 = vpop.permute.xlu0 %2558
        %2560 = vrot.lane.b32.xlu0 %v1562, 67
        %v2561 = vpop.permute.xlu0 %2560
        %vm2562 = vcmask 547840
        %v2563 = vsel %vm2562, %v2553, %v2555
        %v2564 = vsel %vm2562, %v2555, %v2557
        %v2565 = vsel %vm2562, %v2557, %v2559
        %v2566 = vsel %vm2562, %v2559, %v2561
        %v2572 = vsel %vm1597, %v2551, 0
        %2574 = vmatprep.subr.bf16.mxu0 %v2564
        %2575 = vmatpush1.bf16.msra.mxu0 %v2563
        %2576 = vmatprep.subr.bf16.mxu0 0
        %2577 = vmatpush1.bf16.msra.mxu0 0
        %2578 = vmatprep.subr.bf16.mxu0 0
        %2579 = vmatpush1.bf16.msra.mxu0 0
        %2580 = vmatprep.subr.bf16.mxu0 0
        %2581 = vmatpush1.bf16.msra.mxu0 0
        %2582 = vmatprep.subr.bf16.mxu0 0
        %2583 = vmatpush1.bf16.msra.mxu0 0
        %2584 = vmatprep.subr.bf16.mxu0 0
        %2585 = vmatpush1.bf16.msra.mxu0 0
        %2586 = vmatprep.subr.bf16.mxu0 0
        %2587 = vmatpush1.bf16.msra.mxu0 0
        %2588 = vmatprep.subr.bf16.mxu0 0
        %2589 = vmatpush1.bf16.msra.mxu0 0
        %2590 = vmatprep.subr.bf16.mxu0 0
        %2591 = vmatpush1.bf16.msra.mxu0 0
        %2592 = vmatprep.subr.bf16.mxu0 0
        %2593 = vmatpush1.bf16.msra.mxu0 0
        %2594 = vmatprep.subr.bf16.mxu0 0
        %2595 = vmatpush1.bf16.msra.mxu0 0
        %2596 = vmatprep.subr.bf16.mxu0 0
        %2597 = vmatpush1.bf16.msra.mxu0 0
        %2598 = vmatprep.subr.bf16.mxu0 0
        %2599 = vmatpush1.bf16.msra.mxu0 0
        %2600 = vmatprep.subr.bf16.mxu0 0
        %2601 = vmatpush1.bf16.msra.mxu0 0
        %2602 = vmatprep.subr.bf16.mxu0 0
        %2603 = vmatpush1.bf16.msra.mxu0 0
        %2604 = vmatprep.subr.bf16.mxu0 0
        %2605 = vmatpush1.bf16.msra.mxu0 0
        %2606 = vmatprep.mubr.bf16.mxu0 0
        %2607 = vmatmul.mubr.bf16.gmra.mrb[0].mxu0 %v2572
        %v2608 = vpop.f32.mrb[0].mxu0
        %v2609 = vadd.f32 0.0, %v2608
        %v2610 = vpop.f32.mrb[0].mxu0
        %v2611 = vadd.f32 0.0, %v2610
        %v2612 = vpop.f32.mrb[0].mxu0
        %v2613 = vadd.f32 0.0, %v2612
        %v2614 = vpop.f32.mrb[0].mxu0
        %v2615 = vadd.f32 0.0, %v2614
        %2616 = vdwg.mxu0
        %2617 = vmatprep.subr.bf16.mxu0 %v2566
        %2618 = vmatpush1.bf16.msra.mxu0 %v2565
        %2619 = vmatprep.subr.bf16.mxu0 0
        %2620 = vmatpush1.bf16.msra.mxu0 0
        %2621 = vmatprep.subr.bf16.mxu0 0
        %2622 = vmatpush1.bf16.msra.mxu0 0
        %2623 = vmatprep.subr.bf16.mxu0 0
        %2624 = vmatpush1.bf16.msra.mxu0 0
        %2625 = vmatprep.subr.bf16.mxu0 0
        %2626 = vmatpush1.bf16.msra.mxu0 0
        %2627 = vmatprep.subr.bf16.mxu0 0
        %2628 = vmatpush1.bf16.msra.mxu0 0
        %2629 = vmatprep.subr.bf16.mxu0 0
        %2630 = vmatpush1.bf16.msra.mxu0 0
        %2631 = vmatprep.subr.bf16.mxu0 0
        %2632 = vmatpush1.bf16.msra.mxu0 0
        %2633 = vmatprep.subr.bf16.mxu0 0
        %2634 = vmatpush1.bf16.msra.mxu0 0
        %2635 = vmatprep.subr.bf16.mxu0 0
        %2636 = vmatpush1.bf16.msra.mxu0 0
        %2637 = vmatprep.subr.bf16.mxu0 0
        %2638 = vmatpush1.bf16.msra.mxu0 0
        %2639 = vmatprep.subr.bf16.mxu0 0
        %2640 = vmatpush1.bf16.msra.mxu0 0
        %2641 = vmatprep.subr.bf16.mxu0 0
        %2642 = vmatpush1.bf16.msra.mxu0 0
        %2643 = vmatprep.subr.bf16.mxu0 0
        %2644 = vmatpush1.bf16.msra.mxu0 0
        %2645 = vmatprep.subr.bf16.mxu0 0
        %2646 = vmatpush1.bf16.msra.mxu0 0
        %2647 = vmatprep.subr.bf16.mxu0 0
        %2648 = vmatpush1.bf16.msra.mxu0 0
        %2649 = vmatprep.mubr.bf16.mxu0 0
        %2650 = vmatmul.mubr.bf16.gmra.mrb[0].mxu0 %v2572
        %v2651 = vpop.f32.mrb[0].mxu0
        %v2652 = vadd.f32 0.0, %v2651
        %v2653 = vpop.f32.mrb[0].mxu0
        %v2654 = vadd.f32 0.0, %v2653
        %v2655 = vpop.f32.mrb[0].mxu0
        %v2656 = vadd.f32 0.0, %v2655
        %v2657 = vpop.f32.mrb[0].mxu0
        %v2658 = vadd.f32 0.0, %v2657
        %2659 = vdwg.mxu0
        %v2660 = vadd.f32 %v2536, %v2609
        %v2661 = vadd.f32 %v2537, %v2611
        %v2662 = vadd.f32 %v2538, %v2652
        %v2663 = vadd.f32 %v2539, %v2654
        %v2664 = vadd.f32 %v2540, %v2613
        %v2665 = vadd.f32 %v2541, %v2615
        %v2666 = vadd.f32 %v2542, %v2656
        %v2667 = vadd.f32 %v2543, %v2658
        %v2668 = vld [vmem:[%s5] sm:$0xff]
        %v2669 = vld [vmem:[%s5 + $0x8] sm:$0xff]
        %2671 = vset.pattern.permute.xlu0 0
        %2672 = vperm.xlu0 %2671, %v2668
        %v2673 = vpop.permute.xlu0 %2672
        %2676 = vset.pattern.permute.xlu0 0
        %2677 = vperm.xlu0 %2676, %v2669
        %v2678 = vpop.permute.xlu0 %2677
        %v2680 = vadd.f32 %v2660, %v2673
        %v2681 = vadd.f32 %v2661, %v2673
        %v2682 = vadd.f32 %v2662, %v2673
        %v2683 = vadd.f32 %v2663, %v2673
        %v2684 = vadd.f32 %v2664, %v2678
        %v2685 = vadd.f32 %v2665, %v2678
        %v2686 = vadd.f32 %v2666, %v2678
        %v2687 = vadd.f32 %v2667, %v2678
        %vm2688 = vcmp.ge.f32.partialorder %v2680, 0.0
        %vm2689 = vcmp.ge.f32.partialorder %v2681, 0.0
        %vm2690 = vcmp.ge.f32.partialorder %v2682, 0.0
        %vm2691 = vcmp.ge.f32.partialorder %v2683, 0.0
        %vm2692 = vcmp.ge.f32.partialorder %v2684, 0.0
        %vm2693 = vcmp.ge.f32.partialorder %v2685, 0.0
        %vm2694 = vcmp.ge.f32.partialorder %v2686, 0.0
        %vm2695 = vcmp.ge.f32.partialorder %v2687, 0.0
        %v2696 = vmul.f32 %v2680, 0.2
        %v2697 = vmul.f32 %v2681, 0.2
        %v2698 = vmul.f32 %v2682, 0.2
        %v2699 = vmul.f32 %v2683, 0.2
        %v2700 = vmul.f32 %v2684, 0.2
        %v2701 = vmul.f32 %v2685, 0.2
        %v2702 = vmul.f32 %v2686, 0.2
        %v2703 = vmul.f32 %v2687, 0.2
        %v2704 = vsel %vm2688, %v2680, %v2696
        %v2705 = vsel %vm2689, %v2681, %v2697
        %v2706 = vsel %vm2690, %v2682, %v2698
        %v2707 = vsel %vm2691, %v2683, %v2699
        %v2708 = vsel %vm2692, %v2684, %v2700
        %v2709 = vsel %vm2693, %v2685, %v2701
        %v2710 = vsel %vm2694, %v2686, %v2702
        %v2711 = vsel %vm2695, %v2687, %v2703
        %v2712 = vmul.f32 %v2704, %v1492
        %v2713 = vmul.f32 %v2705, %v1496
        %v2714 = vmul.f32 %v2706, %v1500
        %v2715 = vmul.f32 %v2707, %v1504
        %v2716 = vmul.f32 %v2708, %v1492
        %v2717 = vmul.f32 %v2709, %v1496
        %v2718 = vmul.f32 %v2710, %v1500
        %v2719 = vmul.f32 %v2711, %v1504
        %2720 = vst [vmem:[%s497] sm:$0xff] %v2712
        %2721 = vst [vmem:[%s497 + $0x8] sm:$0xff] %v2713
        %2722 = vst [vmem:[%s497 + $0x10] sm:$0xff] %v2714
        %2723 = vst.msk [vmem:[%s497 + $0x18] sm:$0xff] %vm1520, %v2715
        %2724 = vst [vmem:[%s497 + $0x20] sm:$0xff] %v2716
        %2725 = vst [vmem:[%s497 + $0x28] sm:$0xff] %v2717
        %2726 = vst [vmem:[%s497 + $0x30] sm:$0xff] %v2718
        %2727 = vst.msk [vmem:[%s497 + $0x38] sm:$0xff] %vm1520, %v2719
        %v2728 = vpack.c.bf16 %v2716, %v2712
        %v2729 = vpack.c.bf16 %v2717, %v2713
        %v2730 = vpack.c.bf16 %v2718, %v2714
        %v2731 = vpack.c.bf16 %v2719, %v2715
        %2736 = vrot.lane.b32.xlu0 %v2728, 45
        %v2737 = vpop.permute.xlu0 %2736
        %2738 = vrot.lane.b32.xlu0 %v2729, 45
        %v2739 = vpop.permute.xlu0 %2738
        %2740 = vrot.lane.b32.xlu0 %v2730, 45
        %v2741 = vpop.permute.xlu0 %2740
        %2742 = vrot.lane.b32.xlu0 %v2731, 45
        %v2743 = vpop.permute.xlu0 %2742
        %v2744 = vsel %vm1542, %v2737, %v2739
        %v2745 = vsel %vm1542, %v2739, %v2741
        %v2746 = vsel %vm1542, %v2741, %v2743
        %2752 = vst.msk [vmem:[#allocation3] sm:$0xff] %vm1551, %v2737
        %2753 = vst [vmem:[#allocation3 + $0x8] sm:$0xff] %v2744
        %2754 = vst [vmem:[#allocation3 + $0x10] sm:$0xff] %v2745
        %2755 = vst [vmem:[#allocation3 + $0x18] sm:$0xff] %v2746
        %2756 = vst.msk [vmem:[#allocation3 + $0x20] sm:$0xff] %vm1556, %v2743
        %v2757 = vld [vmem:[#allocation3] sm:$0xff]
        %v2758 = vld [vmem:[#allocation3 + $0x8] sm:$0xff]
        %v2759 = vld [vmem:[#allocation3 + $0x10] sm:$0xff]
        %v2760 = vld [vmem:[#allocation3 + $0x18] sm:$0xff]
        %v2761 = vld [vmem:[%s6] sm:$0xf]
        %v2762 = vld [vmem:[%s6 + $0x4] sm:$0xf]
        %s2763 = scalar_lea.vmem %s6, 8
        %v2764 = vld [vmem:[%s2763] sm:$0xf]
        %v2765 = vld [vmem:[%s2763 + $0x4] sm:$0xf]
        %v2768 = vunpack.c.l.b16 %v2764
        %v2769 = vunpack.c.l.b16 %v2765
        %v2770 = vpack.c.b16 %v2769, %v2768
        %2775 = vrot.lane.b32.xlu0 %v2757, 113
        %v2776 = vpop.permute.xlu0 %2775
        %2777 = vrot.lane.b32.xlu0 %v2758, 113
        %v2778 = vpop.permute.xlu0 %2777
        %2779 = vrot.lane.b32.xlu0 %v2759, 113
        %v2780 = vpop.permute.xlu0 %2779
        %2781 = vrot.lane.b32.xlu0 %v2760, 113
        %v2782 = vpop.permute.xlu0 %2781
        %v2783 = vsel %vm925, %v2776, %v2778
        %v2784 = vsel %vm925, %v2778, %v2780
        %v2785 = vsel %vm925, %v2780, %v2782
        %v2791 = vsel %vm1597, %v2770, 0
        %2793 = vmatprep.subr.bf16.mxu0 %v2784
        %2794 = vmatpush1.bf16.msra.mxu0 %v2783
        %2795 = vmatprep.subr.bf16.mxu0 0
        %2796 = vmatpush1.bf16.msra.mxu0 0
        %2797 = vmatprep.subr.bf16.mxu0 0
        %2798 = vmatpush1.bf16.msra.mxu0 0
        %2799 = vmatprep.subr.bf16.mxu0 0
        %2800 = vmatpush1.bf16.msra.mxu0 0
        %2801 = vmatprep.subr.bf16.mxu0 0
        %2802 = vmatpush1.bf16.msra.mxu0 0
        %2803 = vmatprep.subr.bf16.mxu0 0
        %2804 = vmatpush1.bf16.msra.mxu0 0
        %2805 = vmatprep.subr.bf16.mxu0 0
        %2806 = vmatpush1.bf16.msra.mxu0 0
        %2807 = vmatprep.subr.bf16.mxu0 0
        %2808 = vmatpush1.bf16.msra.mxu0 0
        %2809 = vmatprep.subr.bf16.mxu0 0
        %2810 = vmatpush1.bf16.msra.mxu0 0
        %2811 = vmatprep.subr.bf16.mxu0 0
        %2812 = vmatpush1.bf16.msra.mxu0 0
        %2813 = vmatprep.subr.bf16.mxu0 0
        %2814 = vmatpush1.bf16.msra.mxu0 0
        %2815 = vmatprep.subr.bf16.mxu0 0
        %2816 = vmatpush1.bf16.msra.mxu0 0
        %2817 = vmatprep.subr.bf16.mxu0 0
        %2818 = vmatpush1.bf16.msra.mxu0 0
        %2819 = vmatprep.subr.bf16.mxu0 0
        %2820 = vmatpush1.bf16.msra.mxu0 0
        %2821 = vmatprep.subr.bf16.mxu0 0
        %2822 = vmatpush1.bf16.msra.mxu0 0
        %2823 = vmatprep.subr.bf16.mxu0 0
        %2824 = vmatpush1.bf16.msra.mxu0 0
        %2825 = vmatprep.mubr.bf16.mxu0 0
        %2826 = vmatmul.mubr.bf16.gmra.mrb[0].mxu0 %v2791
        %v2827 = vpop.f32.mrb[0].mxu0
        %v2828 = vadd.f32 0.0, %v2827
        %v2829 = vpop.f32.mrb[0].mxu0
        %v2830 = vadd.f32 0.0, %v2829
        %v2831 = vpop.f32.mrb[0].mxu0
        %v2832 = vadd.f32 0.0, %v2831
        %v2833 = vpop.f32.mrb[0].mxu0
        %v2834 = vadd.f32 0.0, %v2833
        %2835 = vdwg.mxu0
        %2836 = vmatprep.subr.bf16.mxu0 %v2782
        %2837 = vmatpush1.bf16.msra.mxu0 %v2785
        %2838 = vmatprep.subr.bf16.mxu0 0
        %2839 = vmatpush1.bf16.msra.mxu0 0
        %2840 = vmatprep.subr.bf16.mxu0 0
        %2841 = vmatpush1.bf16.msra.mxu0 0
        %2842 = vmatprep.subr.bf16.mxu0 0
        %2843 = vmatpush1.bf16.msra.mxu0 0
        %2844 = vmatprep.subr.bf16.mxu0 0
        %2845 = vmatpush1.bf16.msra.mxu0 0
        %2846 = vmatprep.subr.bf16.mxu0 0
        %2847 = vmatpush1.bf16.msra.mxu0 0
        %2848 = vmatprep.subr.bf16.mxu0 0
        %2849 = vmatpush1.bf16.msra.mxu0 0
        %2850 = vmatprep.subr.bf16.mxu0 0
        %2851 = vmatpush1.bf16.msra.mxu0 0
        %2852 = vmatprep.subr.bf16.mxu0 0
        %2853 = vmatpush1.bf16.msra.mxu0 0
        %2854 = vmatprep.subr.bf16.mxu0 0
        %2855 = vmatpush1.bf16.msra.mxu0 0
        %2856 = vmatprep.subr.bf16.mxu0 0
        %2857 = vmatpush1.bf16.msra.mxu0 0
        %2858 = vmatprep.subr.bf16.mxu0 0
        %2859 = vmatpush1.bf16.msra.mxu0 0
        %2860 = vmatprep.subr.bf16.mxu0 0
        %2861 = vmatpush1.bf16.msra.mxu0 0
        %2862 = vmatprep.subr.bf16.mxu0 0
        %2863 = vmatpush1.bf16.msra.mxu0 0
        %2864 = vmatprep.subr.bf16.mxu0 0
        %2865 = vmatpush1.bf16.msra.mxu0 0
        %2866 = vmatprep.subr.bf16.mxu0 0
        %2867 = vmatpush1.bf16.msra.mxu0 0
        %2868 = vmatprep.mubr.bf16.mxu0 0
        %2869 = vmatmul.mubr.bf16.gmra.mrb[0].mxu0 %v2791
        %v2870 = vpop.f32.mrb[0].mxu0
        %v2871 = vadd.f32 0.0, %v2870
        %v2872 = vpop.f32.mrb[0].mxu0
        %v2873 = vadd.f32 0.0, %v2872
        %v2874 = vpop.f32.mrb[0].mxu0
        %v2875 = vadd.f32 0.0, %v2874
        %v2876 = vpop.f32.mrb[0].mxu0
        %v2877 = vadd.f32 0.0, %v2876
        %2878 = vdwg.mxu0
        %v2881 = vunpack.c.l.b16 %v2761
        %v2882 = vunpack.c.l.b16 %v2762
        %v2883 = vpack.c.b16 %v2882, %v2881
        %2884 = vrot.lane.b32.xlu0 %v2757, 115
        %v2885 = vpop.permute.xlu0 %2884
        %2886 = vrot.lane.b32.xlu0 %v2758, 115
        %v2887 = vpop.permute.xlu0 %2886
        %2888 = vrot.lane.b32.xlu0 %v2759, 115
        %v2889 = vpop.permute.xlu0 %2888
        %2890 = vrot.lane.b32.xlu0 %v2760, 115
        %v2891 = vpop.permute.xlu0 %2890
        %v2892 = vsel %vm555, %v2885, %v2887
        %v2893 = vsel %vm555, %v2887, %v2889
        %v2894 = vsel %vm555, %v2889, %v2891
        %v2900 = vsel %vm1597, %v2883, 0
        %2902 = vmatprep.subr.bf16.mxu0 %v2893
        %2903 = vmatpush1.bf16.msra.mxu0 %v2892
        %2904 = vmatprep.subr.bf16.mxu0 0
        %2905 = vmatpush1.bf16.msra.mxu0 0
        %2906 = vmatprep.subr.bf16.mxu0 0
        %2907 = vmatpush1.bf16.msra.mxu0 0
        %2908 = vmatprep.subr.bf16.mxu0 0
        %2909 = vmatpush1.bf16.msra.mxu0 0
        %2910 = vmatprep.subr.bf16.mxu0 0
        %2911 = vmatpush1.bf16.msra.mxu0 0
        %2912 = vmatprep.subr.bf16.mxu0 0
        %2913 = vmatpush1.bf16.msra.mxu0 0
        %2914 = vmatprep.subr.bf16.mxu0 0
        %2915 = vmatpush1.bf16.msra.mxu0 0
        %2916 = vmatprep.subr.bf16.mxu0 0
        %2917 = vmatpush1.bf16.msra.mxu0 0
        %2918 = vmatprep.subr.bf16.mxu0 0
        %2919 = vmatpush1.bf16.msra.mxu0 0
        %2920 = vmatprep.subr.bf16.mxu0 0
        %2921 = vmatpush1.bf16.msra.mxu0 0
        %2922 = vmatprep.subr.bf16.mxu0 0
        %2923 = vmatpush1.bf16.msra.mxu0 0
        %2924 = vmatprep.subr.bf16.mxu0 0
        %2925 = vmatpush1.bf16.msra.mxu0 0
        %2926 = vmatprep.subr.bf16.mxu0 0
        %2927 = vmatpush1.bf16.msra.mxu0 0
        %2928 = vmatprep.subr.bf16.mxu0 0
        %2929 = vmatpush1.bf16.msra.mxu0 0
        %2930 = vmatprep.subr.bf16.mxu0 0
        %2931 = vmatpush1.bf16.msra.mxu0 0
        %2932 = vmatprep.subr.bf16.mxu0 0
        %2933 = vmatpush1.bf16.msra.mxu0 0
        %2934 = vmatprep.mubr.bf16.mxu0 0
        %2935 = vmatmul.mubr.bf16.gmra.mrb[0].mxu0 %v2900
        %v2936 = vpop.f32.mrb[0].mxu0
        %v2937 = vadd.f32 %v2828, %v2936
        %v2938 = vpop.f32.mrb[0].mxu0
        %v2939 = vadd.f32 %v2830, %v2938
        %v2940 = vpop.f32.mrb[0].mxu0
        %v2941 = vadd.f32 %v2832, %v2940
        %v2942 = vpop.f32.mrb[0].mxu0
        %v2943 = vadd.f32 %v2834, %v2942
        %2944 = vdwg.mxu0
        %2945 = vmatprep.subr.bf16.mxu0 %v2891
        %2946 = vmatpush1.bf16.msra.mxu0 %v2894
        %2947 = vmatprep.subr.bf16.mxu0 0
        %2948 = vmatpush1.bf16.msra.mxu0 0
        %2949 = vmatprep.subr.bf16.mxu0 0
        %2950 = vmatpush1.bf16.msra.mxu0 0
        %2951 = vmatprep.subr.bf16.mxu0 0
        %2952 = vmatpush1.bf16.msra.mxu0 0
        %2953 = vmatprep.subr.bf16.mxu0 0
        %2954 = vmatpush1.bf16.msra.mxu0 0
        %2955 = vmatprep.subr.bf16.mxu0 0
        %2956 = vmatpush1.bf16.msra.mxu0 0
        %2957 = vmatprep.subr.bf16.mxu0 0
        %2958 = vmatpush1.bf16.msra.mxu0 0
        %2959 = vmatprep.subr.bf16.mxu0 0
        %2960 = vmatpush1.bf16.msra.mxu0 0
        %2961 = vmatprep.subr.bf16.mxu0 0
        %2962 = vmatpush1.bf16.msra.mxu0 0
        %2963 = vmatprep.subr.bf16.mxu0 0
        %2964 = vmatpush1.bf16.msra.mxu0 0
        %2965 = vmatprep.subr.bf16.mxu0 0
        %2966 = vmatpush1.bf16.msra.mxu0 0
        %2967 = vmatprep.subr.bf16.mxu0 0
        %2968 = vmatpush1.bf16.msra.mxu0 0
        %2969 = vmatprep.subr.bf16.mxu0 0
        %2970 = vmatpush1.bf16.msra.mxu0 0
        %2971 = vmatprep.subr.bf16.mxu0 0
        %2972 = vmatpush1.bf16.msra.mxu0 0
        %2973 = vmatprep.subr.bf16.mxu0 0
        %2974 = vmatpush1.bf16.msra.mxu0 0
        %2975 = vmatprep.subr.bf16.mxu0 0
        %2976 = vmatpush1.bf16.msra.mxu0 0
        %2977 = vmatprep.mubr.bf16.mxu0 0
        %2978 = vmatmul.mubr.bf16.gmra.mrb[0].mxu0 %v2900
        %v2979 = vpop.f32.mrb[0].mxu0
        %v2980 = vadd.f32 %v2871, %v2979
        %v2981 = vpop.f32.mrb[0].mxu0
        %v2982 = vadd.f32 %v2873, %v2981
        %v2983 = vpop.f32.mrb[0].mxu0
        %v2984 = vadd.f32 %v2875, %v2983
        %v2985 = vpop.f32.mrb[0].mxu0
        %v2986 = vadd.f32 %v2877, %v2985
        %2987 = vdwg.mxu0
        %s2988 = scalar_lea.vmem %s6, 16
        %v2989 = vld [vmem:[%s2988] sm:$0xf]
        %v2990 = vld [vmem:[%s2988 + $0x4] sm:$0xf]
        %v2993 = vunpack.c.l.b16 %v2989
        %v2994 = vunpack.c.l.b16 %v2990
        %v2995 = vpack.c.b16 %v2994, %v2993
        %2996 = vrot.lane.b32.xlu0 %v2757, 111
        %v2997 = vpop.permute.xlu0 %2996
        %2998 = vrot.lane.b32.xlu0 %v2758, 111
        %v2999 = vpop.permute.xlu0 %2998
        %3000 = vrot.lane.b32.xlu0 %v2759, 111
        %v3001 = vpop.permute.xlu0 %3000
        %3002 = vrot.lane.b32.xlu0 %v2760, 111
        %v3003 = vpop.permute.xlu0 %3002
        %v3004 = vsel %vm1183, %v2997, %v2999
        %v3005 = vsel %vm1183, %v2999, %v3001
        %v3006 = vsel %vm1183, %v3001, %v3003
        %v3012 = vsel %vm1597, %v2995, 0
        %3014 = vmatprep.subr.bf16.mxu0 %v3005
        %3015 = vmatpush1.bf16.msra.mxu0 %v3004
        %3016 = vmatprep.subr.bf16.mxu0 0
        %3017 = vmatpush1.bf16.msra.mxu0 0
        %3018 = vmatprep.subr.bf16.mxu0 0
        %3019 = vmatpush1.bf16.msra.mxu0 0
        %3020 = vmatprep.subr.bf16.mxu0 0
        %3021 = vmatpush1.bf16.msra.mxu0 0
        %3022 = vmatprep.subr.bf16.mxu0 0
        %3023 = vmatpush1.bf16.msra.mxu0 0
        %3024 = vmatprep.subr.bf16.mxu0 0
        %3025 = vmatpush1.bf16.msra.mxu0 0
        %3026 = vmatprep.subr.bf16.mxu0 0
        %3027 = vmatpush1.bf16.msra.mxu0 0
        %3028 = vmatprep.subr.bf16.mxu0 0
        %3029 = vmatpush1.bf16.msra.mxu0 0
        %3030 = vmatprep.subr.bf16.mxu0 0
        %3031 = vmatpush1.bf16.msra.mxu0 0
        %3032 = vmatprep.subr.bf16.mxu0 0
        %3033 = vmatpush1.bf16.msra.mxu0 0
        %3034 = vmatprep.subr.bf16.mxu0 0
        %3035 = vmatpush1.bf16.msra.mxu0 0
        %3036 = vmatprep.subr.bf16.mxu0 0
        %3037 = vmatpush1.bf16.msra.mxu0 0
        %3038 = vmatprep.subr.bf16.mxu0 0
        %3039 = vmatpush1.bf16.msra.mxu0 0
        %3040 = vmatprep.subr.bf16.mxu0 0
        %3041 = vmatpush1.bf16.msra.mxu0 0
        %3042 = vmatprep.subr.bf16.mxu0 0
        %3043 = vmatpush1.bf16.msra.mxu0 0
        %3044 = vmatprep.subr.bf16.mxu0 0
        %3045 = vmatpush1.bf16.msra.mxu0 0
        %3046 = vmatprep.mubr.bf16.mxu0 0
        %3047 = vmatmul.mubr.bf16.gmra.mrb[0].mxu0 %v3012
        %v3048 = vpop.f32.mrb[0].mxu0
        %v3049 = vadd.f32 0.0, %v3048
        %v3050 = vpop.f32.mrb[0].mxu0
        %v3051 = vadd.f32 0.0, %v3050
        %v3052 = vpop.f32.mrb[0].mxu0
        %v3053 = vadd.f32 0.0, %v3052
        %v3054 = vpop.f32.mrb[0].mxu0
        %v3055 = vadd.f32 0.0, %v3054
        %3056 = vdwg.mxu0
        %3057 = vmatprep.subr.bf16.mxu0 %v3003
        %3058 = vmatpush1.bf16.msra.mxu0 %v3006
        %3059 = vmatprep.subr.bf16.mxu0 0
        %3060 = vmatpush1.bf16.msra.mxu0 0
        %3061 = vmatprep.subr.bf16.mxu0 0
        %3062 = vmatpush1.bf16.msra.mxu0 0
        %3063 = vmatprep.subr.bf16.mxu0 0
        %3064 = vmatpush1.bf16.msra.mxu0 0
        %3065 = vmatprep.subr.bf16.mxu0 0
        %3066 = vmatpush1.bf16.msra.mxu0 0
        %3067 = vmatprep.subr.bf16.mxu0 0
        %3068 = vmatpush1.bf16.msra.mxu0 0
        %3069 = vmatprep.subr.bf16.mxu0 0
        %3070 = vmatpush1.bf16.msra.mxu0 0
        %3071 = vmatprep.subr.bf16.mxu0 0
        %3072 = vmatpush1.bf16.msra.mxu0 0
        %3073 = vmatprep.subr.bf16.mxu0 0
        %3074 = vmatpush1.bf16.msra.mxu0 0
        %3075 = vmatprep.subr.bf16.mxu0 0
        %3076 = vmatpush1.bf16.msra.mxu0 0
        %3077 = vmatprep.subr.bf16.mxu0 0
        %3078 = vmatpush1.bf16.msra.mxu0 0
        %3079 = vmatprep.subr.bf16.mxu0 0
        %3080 = vmatpush1.bf16.msra.mxu0 0
        %3081 = vmatprep.subr.bf16.mxu0 0
        %3082 = vmatpush1.bf16.msra.mxu0 0
        %3083 = vmatprep.subr.bf16.mxu0 0
        %3084 = vmatpush1.bf16.msra.mxu0 0
        %3085 = vmatprep.subr.bf16.mxu0 0
        %3086 = vmatpush1.bf16.msra.mxu0 0
        %3087 = vmatprep.subr.bf16.mxu0 0
        %3088 = vmatpush1.bf16.msra.mxu0 0
        %3089 = vmatprep.mubr.bf16.mxu0 0
        %3090 = vmatmul.mubr.bf16.gmra.mrb[0].mxu0 %v3012
        %v3091 = vpop.f32.mrb[0].mxu0
        %v3092 = vadd.f32 0.0, %v3091
        %v3093 = vpop.f32.mrb[0].mxu0
        %v3094 = vadd.f32 0.0, %v3093
        %v3095 = vpop.f32.mrb[0].mxu0
        %v3096 = vadd.f32 0.0, %v3095
        %v3097 = vpop.f32.mrb[0].mxu0
        %v3098 = vadd.f32 0.0, %v3097
        %3099 = vdwg.mxu0
        %v3100 = vadd.f32 %v2937, %v3049
        %v3101 = vadd.f32 %v2939, %v3051
        %v3102 = vadd.f32 %v2980, %v3092
        %v3103 = vadd.f32 %v2982, %v3094
        %v3104 = vadd.f32 %v2941, %v3053
        %v3105 = vadd.f32 %v2943, %v3055
        %v3106 = vadd.f32 %v2984, %v3096
        %v3107 = vadd.f32 %v2986, %v3098
        %v3108 = vld [vmem:[#allocation3] sm:$0xff]
        %v3109 = vld [vmem:[#allocation3 + $0x8] sm:$0xff]
        %v3110 = vld [vmem:[#allocation3 + $0x10] sm:$0xff]
        %v3111 = vld [vmem:[#allocation3 + $0x18] sm:$0xff]
        %v3112 = vld [vmem:[#allocation3 + $0x20] sm:$0xff]
        %s3113 = scalar_lea.vmem %s6, 24
        %v3114 = vld [vmem:[%s3113] sm:$0xf]
        %v3115 = vld [vmem:[%s3113 + $0x4] sm:$0xf]
        %v3118 = vunpack.c.l.b16 %v3114
        %v3119 = vunpack.c.l.b16 %v3115
        %v3120 = vpack.c.b16 %v3119, %v3118
        %3126 = vrot.lane.b32.xlu0 %v3108, 85
        %v3127 = vpop.permute.xlu0 %3126
        %3128 = vrot.lane.b32.xlu0 %v3109, 85
        %v3129 = vpop.permute.xlu0 %3128
        %3130 = vrot.lane.b32.xlu0 %v3110, 85
        %v3131 = vpop.permute.xlu0 %3130
        %3132 = vrot.lane.b32.xlu0 %v3111, 85
        %v3133 = vpop.permute.xlu0 %3132
        %3134 = vrot.lane.b32.xlu0 %v3112, 85
        %v3135 = vpop.permute.xlu0 %3134
        %vm3136 = vcmask 695296
        %v3137 = vsel %vm3136, %v3127, %v3129
        %v3138 = vsel %vm3136, %v3129, %v3131
        %v3139 = vsel %vm3136, %v3131, %v3133
        %v3140 = vsel %vm3136, %v3133, %v3135
        %v3146 = vsel %vm1597, %v3120, 0
        %3148 = vmatprep.subr.bf16.mxu0 %v3138
        %3149 = vmatpush1.bf16.msra.mxu0 %v3137
        %3150 = vmatprep.subr.bf16.mxu0 0
        %3151 = vmatpush1.bf16.msra.mxu0 0
        %3152 = vmatprep.subr.bf16.mxu0 0
        %3153 = vmatpush1.bf16.msra.mxu0 0
        %3154 = vmatprep.subr.bf16.mxu0 0
        %3155 = vmatpush1.bf16.msra.mxu0 0
        %3156 = vmatprep.subr.bf16.mxu0 0
        %3157 = vmatpush1.bf16.msra.mxu0 0
        %3158 = vmatprep.subr.bf16.mxu0 0
        %3159 = vmatpush1.bf16.msra.mxu0 0
        %3160 = vmatprep.subr.bf16.mxu0 0
        %3161 = vmatpush1.bf16.msra.mxu0 0
        %3162 = vmatprep.subr.bf16.mxu0 0
        %3163 = vmatpush1.bf16.msra.mxu0 0
        %3164 = vmatprep.subr.bf16.mxu0 0
        %3165 = vmatpush1.bf16.msra.mxu0 0
        %3166 = vmatprep.subr.bf16.mxu0 0
        %3167 = vmatpush1.bf16.msra.mxu0 0
        %3168 = vmatprep.subr.bf16.mxu0 0
        %3169 = vmatpush1.bf16.msra.mxu0 0
        %3170 = vmatprep.subr.bf16.mxu0 0
        %3171 = vmatpush1.bf16.msra.mxu0 0
        %3172 = vmatprep.subr.bf16.mxu0 0
        %3173 = vmatpush1.bf16.msra.mxu0 0
        %3174 = vmatprep.subr.bf16.mxu0 0
        %3175 = vmatpush1.bf16.msra.mxu0 0
        %3176 = vmatprep.subr.bf16.mxu0 0
        %3177 = vmatpush1.bf16.msra.mxu0 0
        %3178 = vmatprep.subr.bf16.mxu0 0
        %3179 = vmatpush1.bf16.msra.mxu0 0
        %3180 = vmatprep.mubr.bf16.mxu0 0
        %3181 = vmatmul.mubr.bf16.gmra.mrb[0].mxu0 %v3146
        %v3182 = vpop.f32.mrb[0].mxu0
        %v3183 = vadd.f32 0.0, %v3182
        %v3184 = vpop.f32.mrb[0].mxu0
        %v3185 = vadd.f32 0.0, %v3184
        %v3186 = vpop.f32.mrb[0].mxu0
        %v3187 = vadd.f32 0.0, %v3186
        %v3188 = vpop.f32.mrb[0].mxu0
        %v3189 = vadd.f32 0.0, %v3188
        %3190 = vdwg.mxu0
        %3191 = vmatprep.subr.bf16.mxu0 %v3140
        %3192 = vmatpush1.bf16.msra.mxu0 %v3139
        %3193 = vmatprep.subr.bf16.mxu0 0
        %3194 = vmatpush1.bf16.msra.mxu0 0
        %3195 = vmatprep.subr.bf16.mxu0 0
        %3196 = vmatpush1.bf16.msra.mxu0 0
        %3197 = vmatprep.subr.bf16.mxu0 0
        %3198 = vmatpush1.bf16.msra.mxu0 0
        %3199 = vmatprep.subr.bf16.mxu0 0
        %3200 = vmatpush1.bf16.msra.mxu0 0
        %3201 = vmatprep.subr.bf16.mxu0 0
        %3202 = vmatpush1.bf16.msra.mxu0 0
        %3203 = vmatprep.subr.bf16.mxu0 0
        %3204 = vmatpush1.bf16.msra.mxu0 0
        %3205 = vmatprep.subr.bf16.mxu0 0
        %3206 = vmatpush1.bf16.msra.mxu0 0
        %3207 = vmatprep.subr.bf16.mxu0 0
        %3208 = vmatpush1.bf16.msra.mxu0 0
        %3209 = vmatprep.subr.bf16.mxu0 0
        %3210 = vmatpush1.bf16.msra.mxu0 0
        %3211 = vmatprep.subr.bf16.mxu0 0
        %3212 = vmatpush1.bf16.msra.mxu0 0
        %3213 = vmatprep.subr.bf16.mxu0 0
        %3214 = vmatpush1.bf16.msra.mxu0 0
        %3215 = vmatprep.subr.bf16.mxu0 0
        %3216 = vmatpush1.bf16.msra.mxu0 0
        %3217 = vmatprep.subr.bf16.mxu0 0
        %3218 = vmatpush1.bf16.msra.mxu0 0
        %3219 = vmatprep.subr.bf16.mxu0 0
        %3220 = vmatpush1.bf16.msra.mxu0 0
        %3221 = vmatprep.subr.bf16.mxu0 0
        %3222 = vmatpush1.bf16.msra.mxu0 0
        %3223 = vmatprep.mubr.bf16.mxu0 0
        %3224 = vmatmul.mubr.bf16.gmra.mrb[0].mxu0 %v3146
        %v3225 = vpop.f32.mrb[0].mxu0
        %v3226 = vadd.f32 0.0, %v3225
        %v3227 = vpop.f32.mrb[0].mxu0
        %v3228 = vadd.f32 0.0, %v3227
        %v3229 = vpop.f32.mrb[0].mxu0
        %v3230 = vadd.f32 0.0, %v3229
        %v3231 = vpop.f32.mrb[0].mxu0
        %v3232 = vadd.f32 0.0, %v3231
        %3233 = vdwg.mxu0
        %v3234 = vadd.f32 %v3100, %v3183
        %v3235 = vadd.f32 %v3101, %v3185
        %v3236 = vadd.f32 %v3102, %v3226
        %v3237 = vadd.f32 %v3103, %v3228
        %v3238 = vadd.f32 %v3104, %v3187
        %v3239 = vadd.f32 %v3105, %v3189
        %v3240 = vadd.f32 %v3106, %v3230
        %v3241 = vadd.f32 %v3107, %v3232
        %s3242 = scalar_lea.vmem %s6, 32
        %v3243 = vld [vmem:[%s3242] sm:$0xf]
        %v3244 = vld [vmem:[%s3242 + $0x4] sm:$0xf]
        %v3247 = vunpack.c.l.b16 %v3243
        %v3248 = vunpack.c.l.b16 %v3244
        %v3249 = vpack.c.b16 %v3248, %v3247
        %3250 = vrot.lane.b32.xlu0 %v3108, 83
        %v3251 = vpop.permute.xlu0 %3250
        %3252 = vrot.lane.b32.xlu0 %v3109, 83
        %v3253 = vpop.permute.xlu0 %3252
        %3254 = vrot.lane.b32.xlu0 %v3110, 83
        %v3255 = vpop.permute.xlu0 %3254
        %3256 = vrot.lane.b32.xlu0 %v3111, 83
        %v3257 = vpop.permute.xlu0 %3256
        %3258 = vrot.lane.b32.xlu0 %v3112, 83
        %v3259 = vpop.permute.xlu0 %3258
        %v3260 = vsel %vm2066, %v3251, %v3253
        %v3261 = vsel %vm2066, %v3253, %v3255
        %v3262 = vsel %vm2066, %v3255, %v3257
        %v3263 = vsel %vm2066, %v3257, %v3259
        %v3269 = vsel %vm1597, %v3249, 0
        %3271 = vmatprep.subr.bf16.mxu0 %v3261
        %3272 = vmatpush1.bf16.msra.mxu0 %v3260
        %3273 = vmatprep.subr.bf16.mxu0 0
        %3274 = vmatpush1.bf16.msra.mxu0 0
        %3275 = vmatprep.subr.bf16.mxu0 0
        %3276 = vmatpush1.bf16.msra.mxu0 0
        %3277 = vmatprep.subr.bf16.mxu0 0
        %3278 = vmatpush1.bf16.msra.mxu0 0
        %3279 = vmatprep.subr.bf16.mxu0 0
        %3280 = vmatpush1.bf16.msra.mxu0 0
        %3281 = vmatprep.subr.bf16.mxu0 0
        %3282 = vmatpush1.bf16.msra.mxu0 0
        %3283 = vmatprep.subr.bf16.mxu0 0
        %3284 = vmatpush1.bf16.msra.mxu0 0
        %3285 = vmatprep.subr.bf16.mxu0 0
        %3286 = vmatpush1.bf16.msra.mxu0 0
        %3287 = vmatprep.subr.bf16.mxu0 0
        %3288 = vmatpush1.bf16.msra.mxu0 0
        %3289 = vmatprep.subr.bf16.mxu0 0
        %3290 = vmatpush1.bf16.msra.mxu0 0
        %3291 = vmatprep.subr.bf16.mxu0 0
        %3292 = vmatpush1.bf16.msra.mxu0 0
        %3293 = vmatprep.subr.bf16.mxu0 0
        %3294 = vmatpush1.bf16.msra.mxu0 0
        %3295 = vmatprep.subr.bf16.mxu0 0
        %3296 = vmatpush1.bf16.msra.mxu0 0
        %3297 = vmatprep.subr.bf16.mxu0 0
        %3298 = vmatpush1.bf16.msra.mxu0 0
        %3299 = vmatprep.subr.bf16.mxu0 0
        %3300 = vmatpush1.bf16.msra.mxu0 0
        %3301 = vmatprep.subr.bf16.mxu0 0
        %3302 = vmatpush1.bf16.msra.mxu0 0
        %3303 = vmatprep.mubr.bf16.mxu0 0
        %3304 = vmatmul.mubr.bf16.gmra.mrb[0].mxu0 %v3269
        %v3305 = vpop.f32.mrb[0].mxu0
        %v3306 = vadd.f32 0.0, %v3305
        %v3307 = vpop.f32.mrb[0].mxu0
        %v3308 = vadd.f32 0.0, %v3307
        %v3309 = vpop.f32.mrb[0].mxu0
        %v3310 = vadd.f32 0.0, %v3309
        %v3311 = vpop.f32.mrb[0].mxu0
        %v3312 = vadd.f32 0.0, %v3311
        %3313 = vdwg.mxu0
        %3314 = vmatprep.subr.bf16.mxu0 %v3263
        %3315 = vmatpush1.bf16.msra.mxu0 %v3262
        %3316 = vmatprep.subr.bf16.mxu0 0
        %3317 = vmatpush1.bf16.msra.mxu0 0
        %3318 = vmatprep.subr.bf16.mxu0 0
        %3319 = vmatpush1.bf16.msra.mxu0 0
        %3320 = vmatprep.subr.bf16.mxu0 0
        %3321 = vmatpush1.bf16.msra.mxu0 0
        %3322 = vmatprep.subr.bf16.mxu0 0
        %3323 = vmatpush1.bf16.msra.mxu0 0
        %3324 = vmatprep.subr.bf16.mxu0 0
        %3325 = vmatpush1.bf16.msra.mxu0 0
        %3326 = vmatprep.subr.bf16.mxu0 0
        %3327 = vmatpush1.bf16.msra.mxu0 0
        %3328 = vmatprep.subr.bf16.mxu0 0
        %3329 = vmatpush1.bf16.msra.mxu0 0
        %3330 = vmatprep.subr.bf16.mxu0 0
        %3331 = vmatpush1.bf16.msra.mxu0 0
        %3332 = vmatprep.subr.bf16.mxu0 0
        %3333 = vmatpush1.bf16.msra.mxu0 0
        %3334 = vmatprep.subr.bf16.mxu0 0
        %3335 = vmatpush1.bf16.msra.mxu0 0
        %3336 = vmatprep.subr.bf16.mxu0 0
        %3337 = vmatpush1.bf16.msra.mxu0 0
        %3338 = vmatprep.subr.bf16.mxu0 0
        %3339 = vmatpush1.bf16.msra.mxu0 0
        %3340 = vmatprep.subr.bf16.mxu0 0
        %3341 = vmatpush1.bf16.msra.mxu0 0
        %3342 = vmatprep.subr.bf16.mxu0 0
        %3343 = vmatpush1.bf16.msra.mxu0 0
        %3344 = vmatprep.subr.bf16.mxu0 0
        %3345 = vmatpush1.bf16.msra.mxu0 0
        %3346 = vmatprep.mubr.bf16.mxu0 0
        %3347 = vmatmul.mubr.bf16.gmra.mrb[0].mxu0 %v3269
        %v3348 = vpop.f32.mrb[0].mxu0
        %v3349 = vadd.f32 0.0, %v3348
        %v3350 = vpop.f32.mrb[0].mxu0
        %v3351 = vadd.f32 0.0, %v3350
        %v3352 = vpop.f32.mrb[0].mxu0
        %v3353 = vadd.f32 0.0, %v3352
        %v3354 = vpop.f32.mrb[0].mxu0
        %v3355 = vadd.f32 0.0, %v3354
        %3356 = vdwg.mxu0
        %v3357 = vadd.f32 %v3234, %v3306
        %v3358 = vadd.f32 %v3235, %v3308
        %v3359 = vadd.f32 %v3236, %v3349
        %v3360 = vadd.f32 %v3237, %v3351
        %v3361 = vadd.f32 %v3238, %v3310
        %v3362 = vadd.f32 %v3239, %v3312
        %v3363 = vadd.f32 %v3240, %v3353
        %v3364 = vadd.f32 %v3241, %v3355
        %s3365 = scalar_lea.vmem %s6, 40
        %v3366 = vld [vmem:[%s3365] sm:$0xf]
        %v3367 = vld [vmem:[%s3365 + $0x4] sm:$0xf]
        %v3370 = vunpack.c.l.b16 %v3366
        %v3371 = vunpack.c.l.b16 %v3367
        %v3372 = vpack.c.b16 %v3371, %v3370
        %3373 = vrot.lane.b32.xlu0 %v3108, 81
        %v3374 = vpop.permute.xlu0 %3373
        %3375 = vrot.lane.b32.xlu0 %v3109, 81
        %v3376 = vpop.permute.xlu0 %3375
        %3377 = vrot.lane.b32.xlu0 %v3110, 81
        %v3378 = vpop.permute.xlu0 %3377
        %3379 = vrot.lane.b32.xlu0 %v3111, 81
        %v3380 = vpop.permute.xlu0 %3379
        %3381 = vrot.lane.b32.xlu0 %v3112, 81
        %v3382 = vpop.permute.xlu0 %3381
        %vm3383 = vcmask 662528
        %v3384 = vsel %vm3383, %v3374, %v3376
        %v3385 = vsel %vm3383, %v3376, %v3378
        %v3386 = vsel %vm3383, %v3378, %v3380
        %v3387 = vsel %vm3383, %v3380, %v3382
        %v3393 = vsel %vm1597, %v3372, 0
        %3395 = vmatprep.subr.bf16.mxu0 %v3385
        %3396 = vmatpush1.bf16.msra.mxu0 %v3384
        %3397 = vmatprep.subr.bf16.mxu0 0
        %3398 = vmatpush1.bf16.msra.mxu0 0
        %3399 = vmatprep.subr.bf16.mxu0 0
        %3400 = vmatpush1.bf16.msra.mxu0 0
        %3401 = vmatprep.subr.bf16.mxu0 0
        %3402 = vmatpush1.bf16.msra.mxu0 0
        %3403 = vmatprep.subr.bf16.mxu0 0
        %3404 = vmatpush1.bf16.msra.mxu0 0
        %3405 = vmatprep.subr.bf16.mxu0 0
        %3406 = vmatpush1.bf16.msra.mxu0 0
        %3407 = vmatprep.subr.bf16.mxu0 0
        %3408 = vmatpush1.bf16.msra.mxu0 0
        %3409 = vmatprep.subr.bf16.mxu0 0
        %3410 = vmatpush1.bf16.msra.mxu0 0
        %3411 = vmatprep.subr.bf16.mxu0 0
        %3412 = vmatpush1.bf16.msra.mxu0 0
        %3413 = vmatprep.subr.bf16.mxu0 0
        %3414 = vmatpush1.bf16.msra.mxu0 0
        %3415 = vmatprep.subr.bf16.mxu0 0
        %3416 = vmatpush1.bf16.msra.mxu0 0
        %3417 = vmatprep.subr.bf16.mxu0 0
        %3418 = vmatpush1.bf16.msra.mxu0 0
        %3419 = vmatprep.subr.bf16.mxu0 0
        %3420 = vmatpush1.bf16.msra.mxu0 0
        %3421 = vmatprep.subr.bf16.mxu0 0
        %3422 = vmatpush1.bf16.msra.mxu0 0
        %3423 = vmatprep.subr.bf16.mxu0 0
        %3424 = vmatpush1.bf16.msra.mxu0 0
        %3425 = vmatprep.subr.bf16.mxu0 0
        %3426 = vmatpush1.bf16.msra.mxu0 0
        %3427 = vmatprep.mubr.bf16.mxu0 0
        %3428 = vmatmul.mubr.bf16.gmra.mrb[0].mxu0 %v3393
        %v3429 = vpop.f32.mrb[0].mxu0
        %v3430 = vadd.f32 0.0, %v3429
        %v3431 = vpop.f32.mrb[0].mxu0
        %v3432 = vadd.f32 0.0, %v3431
        %v3433 = vpop.f32.mrb[0].mxu0
        %v3434 = vadd.f32 0.0, %v3433
        %v3435 = vpop.f32.mrb[0].mxu0
        %v3436 = vadd.f32 0.0, %v3435
        %3437 = vdwg.mxu0
        %3438 = vmatprep.subr.bf16.mxu0 %v3387
        %3439 = vmatpush1.bf16.msra.mxu0 %v3386
        %3440 = vmatprep.subr.bf16.mxu0 0
        %3441 = vmatpush1.bf16.msra.mxu0 0
        %3442 = vmatprep.subr.bf16.mxu0 0
        %3443 = vmatpush1.bf16.msra.mxu0 0
        %3444 = vmatprep.subr.bf16.mxu0 0
        %3445 = vmatpush1.bf16.msra.mxu0 0
        %3446 = vmatprep.subr.bf16.mxu0 0
        %3447 = vmatpush1.bf16.msra.mxu0 0
        %3448 = vmatprep.subr.bf16.mxu0 0
        %3449 = vmatpush1.bf16.msra.mxu0 0
        %3450 = vmatprep.subr.bf16.mxu0 0
        %3451 = vmatpush1.bf16.msra.mxu0 0
        %3452 = vmatprep.subr.bf16.mxu0 0
        %3453 = vmatpush1.bf16.msra.mxu0 0
        %3454 = vmatprep.subr.bf16.mxu0 0
        %3455 = vmatpush1.bf16.msra.mxu0 0
        %3456 = vmatprep.subr.bf16.mxu0 0
        %3457 = vmatpush1.bf16.msra.mxu0 0
        %3458 = vmatprep.subr.bf16.mxu0 0
        %3459 = vmatpush1.bf16.msra.mxu0 0
        %3460 = vmatprep.subr.bf16.mxu0 0
        %3461 = vmatpush1.bf16.msra.mxu0 0
        %3462 = vmatprep.subr.bf16.mxu0 0
        %3463 = vmatpush1.bf16.msra.mxu0 0
        %3464 = vmatprep.subr.bf16.mxu0 0
        %3465 = vmatpush1.bf16.msra.mxu0 0
        %3466 = vmatprep.subr.bf16.mxu0 0
        %3467 = vmatpush1.bf16.msra.mxu0 0
        %3468 = vmatprep.subr.bf16.mxu0 0
        %3469 = vmatpush1.bf16.msra.mxu0 0
        %3470 = vmatprep.mubr.bf16.mxu0 0
        %3471 = vmatmul.mubr.bf16.gmra.mrb[0].mxu0 %v3393
        %v3472 = vpop.f32.mrb[0].mxu0
        %v3473 = vadd.f32 0.0, %v3472
        %v3474 = vpop.f32.mrb[0].mxu0
        %v3475 = vadd.f32 0.0, %v3474
        %v3476 = vpop.f32.mrb[0].mxu0
        %v3477 = vadd.f32 0.0, %v3476
        %v3478 = vpop.f32.mrb[0].mxu0
        %v3479 = vadd.f32 0.0, %v3478
        %3480 = vdwg.mxu0
        %v3481 = vadd.f32 %v3357, %v3430
        %v3482 = vadd.f32 %v3358, %v3432
        %v3483 = vadd.f32 %v3359, %v3473
        %v3484 = vadd.f32 %v3360, %v3475
        %v3485 = vadd.f32 %v3361, %v3434
        %v3486 = vadd.f32 %v3362, %v3436
        %v3487 = vadd.f32 %v3363, %v3477
        %v3488 = vadd.f32 %v3364, %v3479
        %s3489 = scalar_lea.vmem %s6, 48
        %v3490 = vld [vmem:[%s3489] sm:$0xf]
        %v3491 = vld [vmem:[%s3489 + $0x4] sm:$0xf]
        %v3494 = vunpack.c.l.b16 %v3490
        %v3495 = vunpack.c.l.b16 %v3491
        %v3496 = vpack.c.b16 %v3495, %v3494
        %3497 = vrot.lane.b32.xlu0 %v3108, 55
        %v3498 = vpop.permute.xlu0 %3497
        %3499 = vrot.lane.b32.xlu0 %v3109, 55
        %v3500 = vpop.permute.xlu0 %3499
        %3501 = vrot.lane.b32.xlu0 %v3110, 55
        %v3502 = vpop.permute.xlu0 %3501
        %3503 = vrot.lane.b32.xlu0 %v3111, 55
        %v3504 = vpop.permute.xlu0 %3503
        %3505 = vrot.lane.b32.xlu0 %v3112, 55
        %v3506 = vpop.permute.xlu0 %3505
        %vm3507 = vcmask 449536
        %v3508 = vsel %vm3507, %v3498, %v3500
        %v3509 = vsel %vm3507, %v3500, %v3502
        %v3510 = vsel %vm3507, %v3502, %v3504
        %v3511 = vsel %vm3507, %v3504, %v3506
        %v3517 = vsel %vm1597, %v3496, 0
        %3519 = vmatprep.subr.bf16.mxu0 %v3509
        %3520 = vmatpush1.bf16.msra.mxu0 %v3508
        %3521 = vmatprep.subr.bf16.mxu0 0
        %3522 = vmatpush1.bf16.msra.mxu0 0
        %3523 = vmatprep.subr.bf16.mxu0 0
        %3524 = vmatpush1.bf16.msra.mxu0 0
        %3525 = vmatprep.subr.bf16.mxu0 0
        %3526 = vmatpush1.bf16.msra.mxu0 0
        %3527 = vmatprep.subr.bf16.mxu0 0
        %3528 = vmatpush1.bf16.msra.mxu0 0
        %3529 = vmatprep.subr.bf16.mxu0 0
        %3530 = vmatpush1.bf16.msra.mxu0 0
        %3531 = vmatprep.subr.bf16.mxu0 0
        %3532 = vmatpush1.bf16.msra.mxu0 0
        %3533 = vmatprep.subr.bf16.mxu0 0
        %3534 = vmatpush1.bf16.msra.mxu0 0
        %3535 = vmatprep.subr.bf16.mxu0 0
        %3536 = vmatpush1.bf16.msra.mxu0 0
        %3537 = vmatprep.subr.bf16.mxu0 0
        %3538 = vmatpush1.bf16.msra.mxu0 0
        %3539 = vmatprep.subr.bf16.mxu0 0
        %3540 = vmatpush1.bf16.msra.mxu0 0
        %3541 = vmatprep.subr.bf16.mxu0 0
        %3542 = vmatpush1.bf16.msra.mxu0 0
        %3543 = vmatprep.subr.bf16.mxu0 0
        %3544 = vmatpush1.bf16.msra.mxu0 0
        %3545 = vmatprep.subr.bf16.mxu0 0
        %3546 = vmatpush1.bf16.msra.mxu0 0
        %3547 = vmatprep.subr.bf16.mxu0 0
        %3548 = vmatpush1.bf16.msra.mxu0 0
        %3549 = vmatprep.subr.bf16.mxu0 0
        %3550 = vmatpush1.bf16.msra.mxu0 0
        %3551 = vmatprep.mubr.bf16.mxu0 0
        %3552 = vmatmul.mubr.bf16.gmra.mrb[0].mxu0 %v3517
        %v3553 = vpop.f32.mrb[0].mxu0
        %v3554 = vadd.f32 0.0, %v3553
        %v3555 = vpop.f32.mrb[0].mxu0
        %v3556 = vadd.f32 0.0, %v3555
        %v3557 = vpop.f32.mrb[0].mxu0
        %v3558 = vadd.f32 0.0, %v3557
        %v3559 = vpop.f32.mrb[0].mxu0
        %v3560 = vadd.f32 0.0, %v3559
        %3561 = vdwg.mxu0
        %3562 = vmatprep.subr.bf16.mxu0 %v3511
        %3563 = vmatpush1.bf16.msra.mxu0 %v3510
        %3564 = vmatprep.subr.bf16.mxu0 0
        %3565 = vmatpush1.bf16.msra.mxu0 0
        %3566 = vmatprep.subr.bf16.mxu0 0
        %3567 = vmatpush1.bf16.msra.mxu0 0
        %3568 = vmatprep.subr.bf16.mxu0 0
        %3569 = vmatpush1.bf16.msra.mxu0 0
        %3570 = vmatprep.subr.bf16.mxu0 0
        %3571 = vmatpush1.bf16.msra.mxu0 0
        %3572 = vmatprep.subr.bf16.mxu0 0
        %3573 = vmatpush1.bf16.msra.mxu0 0
        %3574 = vmatprep.subr.bf16.mxu0 0
        %3575 = vmatpush1.bf16.msra.mxu0 0
        %3576 = vmatprep.subr.bf16.mxu0 0
        %3577 = vmatpush1.bf16.msra.mxu0 0
        %3578 = vmatprep.subr.bf16.mxu0 0
        %3579 = vmatpush1.bf16.msra.mxu0 0
        %3580 = vmatprep.subr.bf16.mxu0 0
        %3581 = vmatpush1.bf16.msra.mxu0 0
        %3582 = vmatprep.subr.bf16.mxu0 0
        %3583 = vmatpush1.bf16.msra.mxu0 0
        %3584 = vmatprep.subr.bf16.mxu0 0
        %3585 = vmatpush1.bf16.msra.mxu0 0
        %3586 = vmatprep.subr.bf16.mxu0 0
        %3587 = vmatpush1.bf16.msra.mxu0 0
        %3588 = vmatprep.subr.bf16.mxu0 0
        %3589 = vmatpush1.bf16.msra.mxu0 0
        %3590 = vmatprep.subr.bf16.mxu0 0
        %3591 = vmatpush1.bf16.msra.mxu0 0
        %3592 = vmatprep.subr.bf16.mxu0 0
        %3593 = vmatpush1.bf16.msra.mxu0 0
        %3594 = vmatprep.mubr.bf16.mxu0 0
        %3595 = vmatmul.mubr.bf16.gmra.mrb[0].mxu0 %v3517
        %v3596 = vpop.f32.mrb[0].mxu0
        %v3597 = vadd.f32 0.0, %v3596
        %v3598 = vpop.f32.mrb[0].mxu0
        %v3599 = vadd.f32 0.0, %v3598
        %v3600 = vpop.f32.mrb[0].mxu0
        %v3601 = vadd.f32 0.0, %v3600
        %v3602 = vpop.f32.mrb[0].mxu0
        %v3603 = vadd.f32 0.0, %v3602
        %3604 = vdwg.mxu0
        %v3605 = vadd.f32 %v3481, %v3554
        %v3606 = vadd.f32 %v3482, %v3556
        %v3607 = vadd.f32 %v3483, %v3597
        %v3608 = vadd.f32 %v3484, %v3599
        %v3609 = vadd.f32 %v3485, %v3558
        %v3610 = vadd.f32 %v3486, %v3560
        %v3611 = vadd.f32 %v3487, %v3601
        %v3612 = vadd.f32 %v3488, %v3603
        %s3613 = scalar_lea.vmem %s6, 56
        %v3614 = vld [vmem:[%s3613] sm:$0xf]
        %v3615 = vld [vmem:[%s3613 + $0x4] sm:$0xf]
        %v3618 = vunpack.c.l.b16 %v3614
        %v3619 = vunpack.c.l.b16 %v3615
        %v3620 = vpack.c.b16 %v3619, %v3618
        %3621 = vrot.lane.b32.xlu0 %v3108, 53
        %v3622 = vpop.permute.xlu0 %3621
        %3623 = vrot.lane.b32.xlu0 %v3109, 53
        %v3624 = vpop.permute.xlu0 %3623
        %3625 = vrot.lane.b32.xlu0 %v3110, 53
        %v3626 = vpop.permute.xlu0 %3625
        %3627 = vrot.lane.b32.xlu0 %v3111, 53
        %v3628 = vpop.permute.xlu0 %3627
        %3629 = vrot.lane.b32.xlu0 %v3112, 53
        %v3630 = vpop.permute.xlu0 %3629
        %vm3631 = vcmask 433152
        %v3632 = vsel %vm3631, %v3622, %v3624
        %v3633 = vsel %vm3631, %v3624, %v3626
        %v3634 = vsel %vm3631, %v3626, %v3628
        %v3635 = vsel %vm3631, %v3628, %v3630
        %v3641 = vsel %vm1597, %v3620, 0
        %3643 = vmatprep.subr.bf16.mxu0 %v3633
        %3644 = vmatpush1.bf16.msra.mxu0 %v3632
        %3645 = vmatprep.subr.bf16.mxu0 0
        %3646 = vmatpush1.bf16.msra.mxu0 0
        %3647 = vmatprep.subr.bf16.mxu0 0
        %3648 = vmatpush1.bf16.msra.mxu0 0
        %3649 = vmatprep.subr.bf16.mxu0 0
        %3650 = vmatpush1.bf16.msra.mxu0 0
        %3651 = vmatprep.subr.bf16.mxu0 0
        %3652 = vmatpush1.bf16.msra.mxu0 0
        %3653 = vmatprep.subr.bf16.mxu0 0
        %3654 = vmatpush1.bf16.msra.mxu0 0
        %3655 = vmatprep.subr.bf16.mxu0 0
        %3656 = vmatpush1.bf16.msra.mxu0 0
        %3657 = vmatprep.subr.bf16.mxu0 0
        %3658 = vmatpush1.bf16.msra.mxu0 0
        %3659 = vmatprep.subr.bf16.mxu0 0
        %3660 = vmatpush1.bf16.msra.mxu0 0
        %3661 = vmatprep.subr.bf16.mxu0 0
        %3662 = vmatpush1.bf16.msra.mxu0 0
        %3663 = vmatprep.subr.bf16.mxu0 0
        %3664 = vmatpush1.bf16.msra.mxu0 0
        %3665 = vmatprep.subr.bf16.mxu0 0
        %3666 = vmatpush1.bf16.msra.mxu0 0
        %3667 = vmatprep.subr.bf16.mxu0 0
        %3668 = vmatpush1.bf16.msra.mxu0 0
        %3669 = vmatprep.subr.bf16.mxu0 0
        %3670 = vmatpush1.bf16.msra.mxu0 0
        %3671 = vmatprep.subr.bf16.mxu0 0
        %3672 = vmatpush1.bf16.msra.mxu0 0
        %3673 = vmatprep.subr.bf16.mxu0 0
        %3674 = vmatpush1.bf16.msra.mxu0 0
        %3675 = vmatprep.mubr.bf16.mxu0 0
        %3676 = vmatmul.mubr.bf16.gmra.mrb[0].mxu0 %v3641
        %v3677 = vpop.f32.mrb[0].mxu0
        %v3678 = vadd.f32 0.0, %v3677
        %v3679 = vpop.f32.mrb[0].mxu0
        %v3680 = vadd.f32 0.0, %v3679
        %v3681 = vpop.f32.mrb[0].mxu0
        %v3682 = vadd.f32 0.0, %v3681
        %v3683 = vpop.f32.mrb[0].mxu0
        %v3684 = vadd.f32 0.0, %v3683
        %3685 = vdwg.mxu0
        %3686 = vmatprep.subr.bf16.mxu0 %v3635
        %3687 = vmatpush1.bf16.msra.mxu0 %v3634
        %3688 = vmatprep.subr.bf16.mxu0 0
        %3689 = vmatpush1.bf16.msra.mxu0 0
        %3690 = vmatprep.subr.bf16.mxu0 0
        %3691 = vmatpush1.bf16.msra.mxu0 0
        %3692 = vmatprep.subr.bf16.mxu0 0
        %3693 = vmatpush1.bf16.msra.mxu0 0
        %3694 = vmatprep.subr.bf16.mxu0 0
        %3695 = vmatpush1.bf16.msra.mxu0 0
        %3696 = vmatprep.subr.bf16.mxu0 0
        %3697 = vmatpush1.bf16.msra.mxu0 0
        %3698 = vmatprep.subr.bf16.mxu0 0
        %3699 = vmatpush1.bf16.msra.mxu0 0
        %3700 = vmatprep.subr.bf16.mxu0 0
        %3701 = vmatpush1.bf16.msra.mxu0 0
        %3702 = vmatprep.subr.bf16.mxu0 0
        %3703 = vmatpush1.bf16.msra.mxu0 0
        %3704 = vmatprep.subr.bf16.mxu0 0
        %3705 = vmatpush1.bf16.msra.mxu0 0
        %3706 = vmatprep.subr.bf16.mxu0 0
        %3707 = vmatpush1.bf16.msra.mxu0 0
        %3708 = vmatprep.subr.bf16.mxu0 0
        %3709 = vmatpush1.bf16.msra.mxu0 0
        %3710 = vmatprep.subr.bf16.mxu0 0
        %3711 = vmatpush1.bf16.msra.mxu0 0
        %3712 = vmatprep.subr.bf16.mxu0 0
        %3713 = vmatpush1.bf16.msra.mxu0 0
        %3714 = vmatprep.subr.bf16.mxu0 0
        %3715 = vmatpush1.bf16.msra.mxu0 0
        %3716 = vmatprep.subr.bf16.mxu0 0
        %3717 = vmatpush1.bf16.msra.mxu0 0
        %3718 = vmatprep.mubr.bf16.mxu0 0
        %3719 = vmatmul.mubr.bf16.gmra.mrb[0].mxu0 %v3641
        %v3720 = vpop.f32.mrb[0].mxu0
        %v3721 = vadd.f32 0.0, %v3720
        %v3722 = vpop.f32.mrb[0].mxu0
        %v3723 = vadd.f32 0.0, %v3722
        %v3724 = vpop.f32.mrb[0].mxu0
        %v3725 = vadd.f32 0.0, %v3724
        %v3726 = vpop.f32.mrb[0].mxu0
        %v3727 = vadd.f32 0.0, %v3726
        %3728 = vdwg.mxu0
        %v3729 = vadd.f32 %v3605, %v3678
        %v3730 = vadd.f32 %v3606, %v3680
        %v3731 = vadd.f32 %v3607, %v3721
        %v3732 = vadd.f32 %v3608, %v3723
        %v3733 = vadd.f32 %v3609, %v3682
        %v3734 = vadd.f32 %v3610, %v3684
        %v3735 = vadd.f32 %v3611, %v3725
        %v3736 = vadd.f32 %v3612, %v3727
        %s3737 = scalar_lea.vmem %s6, 64
        %v3738 = vld [vmem:[%s3737] sm:$0xf]
        %v3739 = vld [vmem:[%s3737 + $0x4] sm:$0xf]
        %v3742 = vunpack.c.l.b16 %v3738
        %v3743 = vunpack.c.l.b16 %v3739
        %v3744 = vpack.c.b16 %v3743, %v3742
        %3745 = vrot.lane.b32.xlu0 %v3108, 51
        %v3746 = vpop.permute.xlu0 %3745
        %3747 = vrot.lane.b32.xlu0 %v3109, 51
        %v3748 = vpop.permute.xlu0 %3747
        %3749 = vrot.lane.b32.xlu0 %v3110, 51
        %v3750 = vpop.permute.xlu0 %3749
        %3751 = vrot.lane.b32.xlu0 %v3111, 51
        %v3752 = vpop.permute.xlu0 %3751
        %3753 = vrot.lane.b32.xlu0 %v3112, 51
        %v3754 = vpop.permute.xlu0 %3753
        %vm3755 = vcmask 416768
        %v3756 = vsel %vm3755, %v3746, %v3748
        %v3757 = vsel %vm3755, %v3748, %v3750
        %v3758 = vsel %vm3755, %v3750, %v3752
        %v3759 = vsel %vm3755, %v3752, %v3754
        %v3765 = vsel %vm1597, %v3744, 0
        %3767 = vmatprep.subr.bf16.mxu0 %v3757
        %3768 = vmatpush1.bf16.msra.mxu0 %v3756
        %3769 = vmatprep.subr.bf16.mxu0 0
        %3770 = vmatpush1.bf16.msra.mxu0 0
        %3771 = vmatprep.subr.bf16.mxu0 0
        %3772 = vmatpush1.bf16.msra.mxu0 0
        %3773 = vmatprep.subr.bf16.mxu0 0
        %3774 = vmatpush1.bf16.msra.mxu0 0
        %3775 = vmatprep.subr.bf16.mxu0 0
        %3776 = vmatpush1.bf16.msra.mxu0 0
        %3777 = vmatprep.subr.bf16.mxu0 0
        %3778 = vmatpush1.bf16.msra.mxu0 0
        %3779 = vmatprep.subr.bf16.mxu0 0
        %3780 = vmatpush1.bf16.msra.mxu0 0
        %3781 = vmatprep.subr.bf16.mxu0 0
        %3782 = vmatpush1.bf16.msra.mxu0 0
        %3783 = vmatprep.subr.bf16.mxu0 0
        %3784 = vmatpush1.bf16.msra.mxu0 0
        %3785 = vmatprep.subr.bf16.mxu0 0
        %3786 = vmatpush1.bf16.msra.mxu0 0
        %3787 = vmatprep.subr.bf16.mxu0 0
        %3788 = vmatpush1.bf16.msra.mxu0 0
        %3789 = vmatprep.subr.bf16.mxu0 0
        %3790 = vmatpush1.bf16.msra.mxu0 0
        %3791 = vmatprep.subr.bf16.mxu0 0
        %3792 = vmatpush1.bf16.msra.mxu0 0
        %3793 = vmatprep.subr.bf16.mxu0 0
        %3794 = vmatpush1.bf16.msra.mxu0 0
        %3795 = vmatprep.subr.bf16.mxu0 0
        %3796 = vmatpush1.bf16.msra.mxu0 0
        %3797 = vmatprep.subr.bf16.mxu0 0
        %3798 = vmatpush1.bf16.msra.mxu0 0
        %3799 = vmatprep.mubr.bf16.mxu0 0
        %3800 = vmatmul.mubr.bf16.gmra.mrb[0].mxu0 %v3765
        %v3801 = vpop.f32.mrb[0].mxu0
        %v3802 = vadd.f32 0.0, %v3801
        %v3803 = vpop.f32.mrb[0].mxu0
        %v3804 = vadd.f32 0.0, %v3803
        %v3805 = vpop.f32.mrb[0].mxu0
        %v3806 = vadd.f32 0.0, %v3805
        %v3807 = vpop.f32.mrb[0].mxu0
        %v3808 = vadd.f32 0.0, %v3807
        %3809 = vdwg.mxu0
        %3810 = vmatprep.subr.bf16.mxu0 %v3759
        %3811 = vmatpush1.bf16.msra.mxu0 %v3758
        %3812 = vmatprep.subr.bf16.mxu0 0
        %3813 = vmatpush1.bf16.msra.mxu0 0
        %3814 = vmatprep.subr.bf16.mxu0 0
        %3815 = vmatpush1.bf16.msra.mxu0 0
        %3816 = vmatprep.subr.bf16.mxu0 0
        %3817 = vmatpush1.bf16.msra.mxu0 0
        %3818 = vmatprep.subr.bf16.mxu0 0
        %3819 = vmatpush1.bf16.msra.mxu0 0
        %3820 = vmatprep.subr.bf16.mxu0 0
        %3821 = vmatpush1.bf16.msra.mxu0 0
        %3822 = vmatprep.subr.bf16.mxu0 0
        %3823 = vmatpush1.bf16.msra.mxu0 0
        %3824 = vmatprep.subr.bf16.mxu0 0
        %3825 = vmatpush1.bf16.msra.mxu0 0
        %3826 = vmatprep.subr.bf16.mxu0 0
        %3827 = vmatpush1.bf16.msra.mxu0 0
        %3828 = vmatprep.subr.bf16.mxu0 0
        %3829 = vmatpush1.bf16.msra.mxu0 0
        %3830 = vmatprep.subr.bf16.mxu0 0
        %3831 = vmatpush1.bf16.msra.mxu0 0
        %3832 = vmatprep.subr.bf16.mxu0 0
        %3833 = vmatpush1.bf16.msra.mxu0 0
        %3834 = vmatprep.subr.bf16.mxu0 0
        %3835 = vmatpush1.bf16.msra.mxu0 0
        %3836 = vmatprep.subr.bf16.mxu0 0
        %3837 = vmatpush1.bf16.msra.mxu0 0
        %3838 = vmatprep.subr.bf16.mxu0 0
        %3839 = vmatpush1.bf16.msra.mxu0 0
        %3840 = vmatprep.subr.bf16.mxu0 0
        %3841 = vmatpush1.bf16.msra.mxu0 0
        %3842 = vmatprep.mubr.bf16.mxu0 0
        %3843 = vmatmul.mubr.bf16.gmra.mrb[0].mxu0 %v3765
        %v3844 = vpop.f32.mrb[0].mxu0
        %v3845 = vadd.f32 0.0, %v3844
        %v3846 = vpop.f32.mrb[0].mxu0
        %v3847 = vadd.f32 0.0, %v3846
        %v3848 = vpop.f32.mrb[0].mxu0
        %v3849 = vadd.f32 0.0, %v3848
        %v3850 = vpop.f32.mrb[0].mxu0
        %v3851 = vadd.f32 0.0, %v3850
        %3852 = vdwg.mxu0
        %v3853 = vadd.f32 %v3729, %v3802
        %v3854 = vadd.f32 %v3730, %v3804
        %v3855 = vadd.f32 %v3731, %v3845
        %v3856 = vadd.f32 %v3732, %v3847
        %v3857 = vadd.f32 %v3733, %v3806
        %v3858 = vadd.f32 %v3734, %v3808
        %v3859 = vadd.f32 %v3735, %v3849
        %v3860 = vadd.f32 %v3736, %v3851
        %v3861 = vld [vmem:[%s7] sm:$0xff]
        %v3862 = vld [vmem:[%s7 + $0x8] sm:$0xff]
        %3864 = vset.pattern.permute.xlu0 0
        %3865 = vperm.xlu0 %3864, %v3861
        %v3866 = vpop.permute.xlu0 %3865
        %3869 = vset.pattern.permute.xlu0 0
        %3870 = vperm.xlu0 %3869, %v3862
        %v3871 = vpop.permute.xlu0 %3870
        %v3873 = vadd.f32 %v3853, %v3866
        %v3874 = vadd.f32 %v3854, %v3866
        %v3875 = vadd.f32 %v3855, %v3866
        %v3876 = vadd.f32 %v3856, %v3866
        %v3877 = vadd.f32 %v3857, %v3871
        %v3878 = vadd.f32 %v3858, %v3871
        %v3879 = vadd.f32 %v3859, %v3871
        %v3880 = vadd.f32 %v3860, %v3871
        %vm3881 = vcmp.ge.f32.partialorder %v3873, 0.0
        %vm3882 = vcmp.ge.f32.partialorder %v3874, 0.0
        %vm3883 = vcmp.ge.f32.partialorder %v3875, 0.0
        %vm3884 = vcmp.ge.f32.partialorder %v3876, 0.0
        %vm3885 = vcmp.ge.f32.partialorder %v3877, 0.0
        %vm3886 = vcmp.ge.f32.partialorder %v3878, 0.0
        %vm3887 = vcmp.ge.f32.partialorder %v3879, 0.0
        %vm3888 = vcmp.ge.f32.partialorder %v3880, 0.0
        %v3889 = vmul.f32 %v3873, 0.2
        %v3890 = vmul.f32 %v3874, 0.2
        %v3891 = vmul.f32 %v3875, 0.2
        %v3892 = vmul.f32 %v3876, 0.2
        %v3893 = vmul.f32 %v3877, 0.2
        %v3894 = vmul.f32 %v3878, 0.2
        %v3895 = vmul.f32 %v3879, 0.2
        %v3896 = vmul.f32 %v3880, 0.2
        %v3897 = vsel %vm3881, %v3873, %v3889
        %v3898 = vsel %vm3882, %v3874, %v3890
        %v3899 = vsel %vm3883, %v3875, %v3891
        %v3900 = vsel %vm3884, %v3876, %v3892
        %v3901 = vsel %vm3885, %v3877, %v3893
        %v3902 = vsel %vm3886, %v3878, %v3894
        %v3903 = vsel %vm3887, %v3879, %v3895
        %v3904 = vsel %vm3888, %v3880, %v3896
        %v3905 = vmul.f32 %v3897, %v1492
        %v3906 = vmul.f32 %v3898, %v1496
        %v3907 = vmul.f32 %v3899, %v1500
        %v3908 = vmul.f32 %v3900, %v1504
        %v3909 = vmul.f32 %v3901, %v1492
        %v3910 = vmul.f32 %v3902, %v1496
        %v3911 = vmul.f32 %v3903, %v1500
        %v3912 = vmul.f32 %v3904, %v1504
        %3913 = vst [vmem:[%s504] sm:$0xff] %v3905
        %3914 = vst [vmem:[%s504 + $0x8] sm:$0xff] %v3906
        %3915 = vst [vmem:[%s504 + $0x10] sm:$0xff] %v3907
        %3916 = vst.msk [vmem:[%s504 + $0x18] sm:$0xff] %vm1520, %v3908
        %3917 = vst [vmem:[%s504 + $0x20] sm:$0xff] %v3909
        %3918 = vst [vmem:[%s504 + $0x28] sm:$0xff] %v3910
        %3919 = vst [vmem:[%s504 + $0x30] sm:$0xff] %v3911
        %3920 = vst.msk [vmem:[%s504 + $0x38] sm:$0xff] %vm1520, %v3912
        %v3921 = vpack.c.bf16 %v3909, %v3905
        %v3922 = vpack.c.bf16 %v3910, %v3906
        %v3923 = vpack.c.bf16 %v3911, %v3907
        %v3924 = vpack.c.bf16 %v3912, %v3908
        %3929 = vrot.lane.b32.xlu0 %v3921, 45
        %v3930 = vpop.permute.xlu0 %3929
        %3931 = vrot.lane.b32.xlu0 %v3922, 45
        %v3932 = vpop.permute.xlu0 %3931
        %3933 = vrot.lane.b32.xlu0 %v3923, 45
        %v3934 = vpop.permute.xlu0 %3933
        %3935 = vrot.lane.b32.xlu0 %v3924, 45
        %v3936 = vpop.permute.xlu0 %3935
        %v3937 = vsel %vm1542, %v3930, %v3932
        %v3938 = vsel %vm1542, %v3932, %v3934
        %v3939 = vsel %vm1542, %v3934, %v3936
        %3945 = vst.msk [vmem:[#allocation2] sm:$0xff] %vm1551, %v3930
        %3946 = vst [vmem:[#allocation2 + $0x8] sm:$0xff] %v3937
        %3947 = vst [vmem:[#allocation2 + $0x10] sm:$0xff] %v3938
        %3948 = vst [vmem:[#allocation2 + $0x18] sm:$0xff] %v3939
        %3949 = vst.msk [vmem:[#allocation2 + $0x20] sm:$0xff] %vm1556, %v3936
        %v3950 = vld [vmem:[#allocation2] sm:$0xff]
        %v3951 = vld [vmem:[#allocation2 + $0x8] sm:$0xff]
        %v3952 = vld [vmem:[#allocation2 + $0x10] sm:$0xff]
        %v3953 = vld [vmem:[#allocation2 + $0x18] sm:$0xff]
        %v3954 = vld [vmem:[#allocation2 + $0x20] sm:$0xff]
        %v3955 = vld [vmem:[#allocation9] sm:$0xf]
        %s3956 = scalar_lea.vmem [#allocation9], 4
        %v3957 = vld [vmem:[%s3956] sm:$0xf]
        %3963 = vrot.lane.b32.xlu0 %v3950, 98
        %v3964 = vpop.permute.xlu0 %3963
        %3965 = vrot.lane.b32.xlu0 %v3951, 98
        %v3966 = vpop.permute.xlu0 %3965
        %3967 = vrot.lane.b32.xlu0 %v3952, 98
        %v3968 = vpop.permute.xlu0 %3967
        %3969 = vrot.lane.b32.xlu0 %v3953, 98
        %v3970 = vpop.permute.xlu0 %3969
        %3971 = vrot.lane.b32.xlu0 %v3954, 98
        %v3972 = vpop.permute.xlu0 %3971
        %v3973 = vsel %vm1588, %v3964, %v3966
        %v3974 = vsel %vm1588, %v3966, %v3968
        %v3975 = vsel %vm1588, %v3968, %v3970
        %v3976 = vsel %vm1588, %v3970, %v3972
        %v3982 = vsel %vm1597, %v3957, 0
        %3984 = vmatprep.subr.bf16.mxu0 %v3974
        %3985 = vmatpush1.bf16.msra.mxu0 %v3973
        %3986 = vmatprep.subr.bf16.mxu0 0
        %3987 = vmatpush1.bf16.msra.mxu0 0
        %3988 = vmatprep.subr.bf16.mxu0 0
        %3989 = vmatpush1.bf16.msra.mxu0 0
        %3990 = vmatprep.subr.bf16.mxu0 0
        %3991 = vmatpush1.bf16.msra.mxu0 0
        %3992 = vmatprep.subr.bf16.mxu0 0
        %3993 = vmatpush1.bf16.msra.mxu0 0
        %3994 = vmatprep.subr.bf16.mxu0 0
        %3995 = vmatpush1.bf16.msra.mxu0 0
        %3996 = vmatprep.subr.bf16.mxu0 0
        %3997 = vmatpush1.bf16.msra.mxu0 0
        %3998 = vmatprep.subr.bf16.mxu0 0
        %3999 = vmatpush1.bf16.msra.mxu0 0
        %4000 = vmatprep.subr.bf16.mxu0 0
        %4001 = vmatpush1.bf16.msra.mxu0 0
        %4002 = vmatprep.subr.bf16.mxu0 0
        %4003 = vmatpush1.bf16.msra.mxu0 0
        %4004 = vmatprep.subr.bf16.mxu0 0
        %4005 = vmatpush1.bf16.msra.mxu0 0
        %4006 = vmatprep.subr.bf16.mxu0 0
        %4007 = vmatpush1.bf16.msra.mxu0 0
        %4008 = vmatprep.subr.bf16.mxu0 0
        %4009 = vmatpush1.bf16.msra.mxu0 0
        %4010 = vmatprep.subr.bf16.mxu0 0
        %4011 = vmatpush1.bf16.msra.mxu0 0
        %4012 = vmatprep.subr.bf16.mxu0 0
        %4013 = vmatpush1.bf16.msra.mxu0 0
        %4014 = vmatprep.subr.bf16.mxu0 0
        %4015 = vmatpush1.bf16.msra.mxu0 0
        %4016 = vmatprep.mubr.bf16.mxu0 0
        %4017 = vmatmul.mubr.bf16.gmra.mrb[0].mxu0 %v3982
        %v4018 = vpop.f32.mrb[0].mxu0
        %v4019 = vadd.f32 0.0, %v4018
        %v4020 = vpop.f32.mrb[0].mxu0
        %v4021 = vadd.f32 0.0, %v4020
        %v4022 = vpop.f32.mrb[0].mxu0
        %v4023 = vpop.f32.mrb[0].mxu0
        %4024 = vdwg.mxu0
        %4025 = vmatprep.subr.bf16.mxu0 %v3976
        %4026 = vmatpush1.bf16.msra.mxu0 %v3975
        %4027 = vmatprep.subr.bf16.mxu0 0
        %4028 = vmatpush1.bf16.msra.mxu0 0
        %4029 = vmatprep.subr.bf16.mxu0 0
        %4030 = vmatpush1.bf16.msra.mxu0 0
        %4031 = vmatprep.subr.bf16.mxu0 0
        %4032 = vmatpush1.bf16.msra.mxu0 0
        %4033 = vmatprep.subr.bf16.mxu0 0
        %4034 = vmatpush1.bf16.msra.mxu0 0
        %4035 = vmatprep.subr.bf16.mxu0 0
        %4036 = vmatpush1.bf16.msra.mxu0 0
        %4037 = vmatprep.subr.bf16.mxu0 0
        %4038 = vmatpush1.bf16.msra.mxu0 0
        %4039 = vmatprep.subr.bf16.mxu0 0
        %4040 = vmatpush1.bf16.msra.mxu0 0
        %4041 = vmatprep.subr.bf16.mxu0 0
        %4042 = vmatpush1.bf16.msra.mxu0 0
        %4043 = vmatprep.subr.bf16.mxu0 0
        %4044 = vmatpush1.bf16.msra.mxu0 0
        %4045 = vmatprep.subr.bf16.mxu0 0
        %4046 = vmatpush1.bf16.msra.mxu0 0
        %4047 = vmatprep.subr.bf16.mxu0 0
        %4048 = vmatpush1.bf16.msra.mxu0 0
        %4049 = vmatprep.subr.bf16.mxu0 0
        %4050 = vmatpush1.bf16.msra.mxu0 0
        %4051 = vmatprep.subr.bf16.mxu0 0
        %4052 = vmatpush1.bf16.msra.mxu0 0
        %4053 = vmatprep.subr.bf16.mxu0 0
        %4054 = vmatpush1.bf16.msra.mxu0 0
        %4055 = vmatprep.subr.bf16.mxu0 0
        %4056 = vmatpush1.bf16.msra.mxu0 0
        %4057 = vmatprep.mubr.bf16.mxu0 0
        %4058 = vmatmul.mubr.bf16.gmra.mrb[0].mxu0 %v3982
        %v4059 = vpop.f32.mrb[0].mxu0
        %v4060 = vadd.f32 0.0, %v4059
        %v4061 = vpop.f32.mrb[0].mxu0
        %v4062 = vadd.f32 0.0, %v4061
        %v4063 = vpop.f32.mrb[0].mxu0
        %v4064 = vpop.f32.mrb[0].mxu0
        %4065 = vdwg.mxu0
        %4066 = vrot.lane.b32.xlu0 %v3950, 99
        %v4067 = vpop.permute.xlu0 %4066
        %4068 = vrot.lane.b32.xlu0 %v3951, 99
        %v4069 = vpop.permute.xlu0 %4068
        %4070 = vrot.lane.b32.xlu0 %v3952, 99
        %v4071 = vpop.permute.xlu0 %4070
        %4072 = vrot.lane.b32.xlu0 %v3953, 99
        %v4073 = vpop.permute.xlu0 %4072
        %4074 = vrot.lane.b32.xlu0 %v3954, 99
        %v4075 = vpop.permute.xlu0 %4074
        %v4076 = vsel %vm1702, %v4067, %v4069
        %v4077 = vsel %vm1702, %v4069, %v4071
        %v4078 = vsel %vm1702, %v4071, %v4073
        %v4079 = vsel %vm1702, %v4073, %v4075
        %v4085 = vsel %vm1597, %v3955, 0
        %4087 = vmatprep.subr.bf16.mxu0 %v4077
        %4088 = vmatpush1.bf16.msra.mxu0 %v4076
        %4089 = vmatprep.subr.bf16.mxu0 0
        %4090 = vmatpush1.bf16.msra.mxu0 0
        %4091 = vmatprep.subr.bf16.mxu0 0
        %4092 = vmatpush1.bf16.msra.mxu0 0
        %4093 = vmatprep.subr.bf16.mxu0 0
        %4094 = vmatpush1.bf16.msra.mxu0 0
        %4095 = vmatprep.subr.bf16.mxu0 0
        %4096 = vmatpush1.bf16.msra.mxu0 0
        %4097 = vmatprep.subr.bf16.mxu0 0
        %4098 = vmatpush1.bf16.msra.mxu0 0
        %4099 = vmatprep.subr.bf16.mxu0 0
        %4100 = vmatpush1.bf16.msra.mxu0 0
        %4101 = vmatprep.subr.bf16.mxu0 0
        %4102 = vmatpush1.bf16.msra.mxu0 0
        %4103 = vmatprep.subr.bf16.mxu0 0
        %4104 = vmatpush1.bf16.msra.mxu0 0
        %4105 = vmatprep.subr.bf16.mxu0 0
        %4106 = vmatpush1.bf16.msra.mxu0 0
        %4107 = vmatprep.subr.bf16.mxu0 0
        %4108 = vmatpush1.bf16.msra.mxu0 0
        %4109 = vmatprep.subr.bf16.mxu0 0
        %4110 = vmatpush1.bf16.msra.mxu0 0
        %4111 = vmatprep.subr.bf16.mxu0 0
        %4112 = vmatpush1.bf16.msra.mxu0 0
        %4113 = vmatprep.subr.bf16.mxu0 0
        %4114 = vmatpush1.bf16.msra.mxu0 0
        %4115 = vmatprep.subr.bf16.mxu0 0
        %4116 = vmatpush1.bf16.msra.mxu0 0
        %4117 = vmatprep.subr.bf16.mxu0 0
        %4118 = vmatpush1.bf16.msra.mxu0 0
        %4119 = vmatprep.mubr.bf16.mxu0 0
        %4120 = vmatmul.mubr.bf16.gmra.mrb[0].mxu0 %v4085
        %v4121 = vpop.f32.mrb[0].mxu0
        %v4122 = vadd.f32 %v4019, %v4121
        %v4123 = vpop.f32.mrb[0].mxu0
        %v4124 = vadd.f32 %v4021, %v4123
        %v4125 = vpop.f32.mrb[0].mxu0
        %v4126 = vpop.f32.mrb[0].mxu0
        %4127 = vdwg.mxu0
        %4128 = vmatprep.subr.bf16.mxu0 %v4079
        %4129 = vmatpush1.bf16.msra.mxu0 %v4078
        %4130 = vmatprep.subr.bf16.mxu0 0
        %4131 = vmatpush1.bf16.msra.mxu0 0
        %4132 = vmatprep.subr.bf16.mxu0 0
        %4133 = vmatpush1.bf16.msra.mxu0 0
        %4134 = vmatprep.subr.bf16.mxu0 0
        %4135 = vmatpush1.bf16.msra.mxu0 0
        %4136 = vmatprep.subr.bf16.mxu0 0
        %4137 = vmatpush1.bf16.msra.mxu0 0
        %4138 = vmatprep.subr.bf16.mxu0 0
        %4139 = vmatpush1.bf16.msra.mxu0 0
        %4140 = vmatprep.subr.bf16.mxu0 0
        %4141 = vmatpush1.bf16.msra.mxu0 0
        %4142 = vmatprep.subr.bf16.mxu0 0
        %4143 = vmatpush1.bf16.msra.mxu0 0
        %4144 = vmatprep.subr.bf16.mxu0 0
        %4145 = vmatpush1.bf16.msra.mxu0 0
        %4146 = vmatprep.subr.bf16.mxu0 0
        %4147 = vmatpush1.bf16.msra.mxu0 0
        %4148 = vmatprep.subr.bf16.mxu0 0
        %4149 = vmatpush1.bf16.msra.mxu0 0
        %4150 = vmatprep.subr.bf16.mxu0 0
        %4151 = vmatpush1.bf16.msra.mxu0 0
        %4152 = vmatprep.subr.bf16.mxu0 0
        %4153 = vmatpush1.bf16.msra.mxu0 0
        %4154 = vmatprep.subr.bf16.mxu0 0
        %4155 = vmatpush1.bf16.msra.mxu0 0
        %4156 = vmatprep.subr.bf16.mxu0 0
        %4157 = vmatpush1.bf16.msra.mxu0 0
        %4158 = vmatprep.subr.bf16.mxu0 0
        %4159 = vmatpush1.bf16.msra.mxu0 0
        %4160 = vmatprep.mubr.bf16.mxu0 0
        %4161 = vmatmul.mubr.bf16.gmra.mrb[0].mxu0 %v4085
        %v4162 = vpop.f32.mrb[0].mxu0
        %v4163 = vadd.f32 %v4060, %v4162
        %v4164 = vpop.f32.mrb[0].mxu0
        %v4165 = vadd.f32 %v4062, %v4164
        %v4166 = vpop.f32.mrb[0].mxu0
        %v4167 = vpop.f32.mrb[0].mxu0
        %4168 = vdwg.mxu0
        %s4169 = scalar_lea.vmem [#allocation9], 8
        %v4170 = vld [vmem:[%s4169] sm:$0xf]
        %4171 = vrot.lane.b32.xlu0 %v3950, 97
        %v4172 = vpop.permute.xlu0 %4171
        %4173 = vrot.lane.b32.xlu0 %v3951, 97
        %v4174 = vpop.permute.xlu0 %4173
        %4175 = vrot.lane.b32.xlu0 %v3952, 97
        %v4176 = vpop.permute.xlu0 %4175
        %4177 = vrot.lane.b32.xlu0 %v3953, 97
        %v4178 = vpop.permute.xlu0 %4177
        %4179 = vrot.lane.b32.xlu0 %v3954, 97
        %v4180 = vpop.permute.xlu0 %4179
        %v4181 = vsel %vm1818, %v4172, %v4174
        %v4182 = vsel %vm1818, %v4174, %v4176
        %v4183 = vsel %vm1818, %v4176, %v4178
        %v4184 = vsel %vm1818, %v4178, %v4180
        %v4190 = vsel %vm1597, %v4170, 0
        %4192 = vmatprep.subr.bf16.mxu0 %v4182
        %4193 = vmatpush1.bf16.msra.mxu0 %v4181
        %4194 = vmatprep.subr.bf16.mxu0 0
        %4195 = vmatpush1.bf16.msra.mxu0 0
        %4196 = vmatprep.subr.bf16.mxu0 0
        %4197 = vmatpush1.bf16.msra.mxu0 0
        %4198 = vmatprep.subr.bf16.mxu0 0
        %4199 = vmatpush1.bf16.msra.mxu0 0
        %4200 = vmatprep.subr.bf16.mxu0 0
        %4201 = vmatpush1.bf16.msra.mxu0 0
        %4202 = vmatprep.subr.bf16.mxu0 0
        %4203 = vmatpush1.bf16.msra.mxu0 0
        %4204 = vmatprep.subr.bf16.mxu0 0
        %4205 = vmatpush1.bf16.msra.mxu0 0
        %4206 = vmatprep.subr.bf16.mxu0 0
        %4207 = vmatpush1.bf16.msra.mxu0 0
        %4208 = vmatprep.subr.bf16.mxu0 0
        %4209 = vmatpush1.bf16.msra.mxu0 0
        %4210 = vmatprep.subr.bf16.mxu0 0
        %4211 = vmatpush1.bf16.msra.mxu0 0
        %4212 = vmatprep.subr.bf16.mxu0 0
        %4213 = vmatpush1.bf16.msra.mxu0 0
        %4214 = vmatprep.subr.bf16.mxu0 0
        %4215 = vmatpush1.bf16.msra.mxu0 0
        %4216 = vmatprep.subr.bf16.mxu0 0
        %4217 = vmatpush1.bf16.msra.mxu0 0
        %4218 = vmatprep.subr.bf16.mxu0 0
        %4219 = vmatpush1.bf16.msra.mxu0 0
        %4220 = vmatprep.subr.bf16.mxu0 0
        %4221 = vmatpush1.bf16.msra.mxu0 0
        %4222 = vmatprep.subr.bf16.mxu0 0
        %4223 = vmatpush1.bf16.msra.mxu0 0
        %4224 = vmatprep.mubr.bf16.mxu0 0
        %4225 = vmatmul.mubr.bf16.gmra.mrb[0].mxu0 %v4190
        %v4226 = vpop.f32.mrb[0].mxu0
        %v4227 = vadd.f32 0.0, %v4226
        %v4228 = vpop.f32.mrb[0].mxu0
        %v4229 = vadd.f32 0.0, %v4228
        %v4230 = vpop.f32.mrb[0].mxu0
        %v4231 = vpop.f32.mrb[0].mxu0
        %4232 = vdwg.mxu0
        %4233 = vmatprep.subr.bf16.mxu0 %v4184
        %4234 = vmatpush1.bf16.msra.mxu0 %v4183
        %4235 = vmatprep.subr.bf16.mxu0 0
        %4236 = vmatpush1.bf16.msra.mxu0 0
        %4237 = vmatprep.subr.bf16.mxu0 0
        %4238 = vmatpush1.bf16.msra.mxu0 0
        %4239 = vmatprep.subr.bf16.mxu0 0
        %4240 = vmatpush1.bf16.msra.mxu0 0
        %4241 = vmatprep.subr.bf16.mxu0 0
        %4242 = vmatpush1.bf16.msra.mxu0 0
        %4243 = vmatprep.subr.bf16.mxu0 0
        %4244 = vmatpush1.bf16.msra.mxu0 0
        %4245 = vmatprep.subr.bf16.mxu0 0
        %4246 = vmatpush1.bf16.msra.mxu0 0
        %4247 = vmatprep.subr.bf16.mxu0 0
        %4248 = vmatpush1.bf16.msra.mxu0 0
        %4249 = vmatprep.subr.bf16.mxu0 0
        %4250 = vmatpush1.bf16.msra.mxu0 0
        %4251 = vmatprep.subr.bf16.mxu0 0
        %4252 = vmatpush1.bf16.msra.mxu0 0
        %4253 = vmatprep.subr.bf16.mxu0 0
        %4254 = vmatpush1.bf16.msra.mxu0 0
        %4255 = vmatprep.subr.bf16.mxu0 0
        %4256 = vmatpush1.bf16.msra.mxu0 0
        %4257 = vmatprep.subr.bf16.mxu0 0
        %4258 = vmatpush1.bf16.msra.mxu0 0
        %4259 = vmatprep.subr.bf16.mxu0 0
        %4260 = vmatpush1.bf16.msra.mxu0 0
        %4261 = vmatprep.subr.bf16.mxu0 0
        %4262 = vmatpush1.bf16.msra.mxu0 0
        %4263 = vmatprep.subr.bf16.mxu0 0
        %4264 = vmatpush1.bf16.msra.mxu0 0
        %4265 = vmatprep.mubr.bf16.mxu0 0
        %4266 = vmatmul.mubr.bf16.gmra.mrb[0].mxu0 %v4190
        %v4267 = vpop.f32.mrb[0].mxu0
        %v4268 = vadd.f32 0.0, %v4267
        %v4269 = vpop.f32.mrb[0].mxu0
        %v4270 = vadd.f32 0.0, %v4269
        %v4271 = vpop.f32.mrb[0].mxu0
        %v4272 = vpop.f32.mrb[0].mxu0
        %4273 = vdwg.mxu0
        %v4274 = vadd.f32 %v4122, %v4227
        %v4275 = vadd.f32 %v4124, %v4229
        %v4276 = vadd.f32 %v4163, %v4268
        %v4277 = vadd.f32 %v4165, %v4270
        %s4278 = scalar_lea.vmem [#allocation9], 12
        %v4279 = vld [vmem:[%s4278] sm:$0xf]
        %4280 = vrot.lane.b32.xlu0 %v3950, 84
        %v4281 = vpop.permute.xlu0 %4280
        %4282 = vrot.lane.b32.xlu0 %v3951, 84
        %v4283 = vpop.permute.xlu0 %4282
        %4284 = vrot.lane.b32.xlu0 %v3952, 84
        %v4285 = vpop.permute.xlu0 %4284
        %4286 = vrot.lane.b32.xlu0 %v3953, 84
        %v4287 = vpop.permute.xlu0 %4286
        %4288 = vrot.lane.b32.xlu0 %v3954, 84
        %v4289 = vpop.permute.xlu0 %4288
        %v4290 = vsel %vm1942, %v4281, %v4283
        %v4291 = vsel %vm1942, %v4283, %v4285
        %v4292 = vsel %vm1942, %v4285, %v4287
        %v4293 = vsel %vm1942, %v4287, %v4289
        %v4299 = vsel %vm1597, %v4279, 0
        %4301 = vmatprep.subr.bf16.mxu0 %v4291
        %4302 = vmatpush1.bf16.msra.mxu0 %v4290
        %4303 = vmatprep.subr.bf16.mxu0 0
        %4304 = vmatpush1.bf16.msra.mxu0 0
        %4305 = vmatprep.subr.bf16.mxu0 0
        %4306 = vmatpush1.bf16.msra.mxu0 0
        %4307 = vmatprep.subr.bf16.mxu0 0
        %4308 = vmatpush1.bf16.msra.mxu0 0
        %4309 = vmatprep.subr.bf16.mxu0 0
        %4310 = vmatpush1.bf16.msra.mxu0 0
        %4311 = vmatprep.subr.bf16.mxu0 0
        %4312 = vmatpush1.bf16.msra.mxu0 0
        %4313 = vmatprep.subr.bf16.mxu0 0
        %4314 = vmatpush1.bf16.msra.mxu0 0
        %4315 = vmatprep.subr.bf16.mxu0 0
        %4316 = vmatpush1.bf16.msra.mxu0 0
        %4317 = vmatprep.subr.bf16.mxu0 0
        %4318 = vmatpush1.bf16.msra.mxu0 0
        %4319 = vmatprep.subr.bf16.mxu0 0
        %4320 = vmatpush1.bf16.msra.mxu0 0
        %4321 = vmatprep.subr.bf16.mxu0 0
        %4322 = vmatpush1.bf16.msra.mxu0 0
        %4323 = vmatprep.subr.bf16.mxu0 0
        %4324 = vmatpush1.bf16.msra.mxu0 0
        %4325 = vmatprep.subr.bf16.mxu0 0
        %4326 = vmatpush1.bf16.msra.mxu0 0
        %4327 = vmatprep.subr.bf16.mxu0 0
        %4328 = vmatpush1.bf16.msra.mxu0 0
        %4329 = vmatprep.subr.bf16.mxu0 0
        %4330 = vmatpush1.bf16.msra.mxu0 0
        %4331 = vmatprep.subr.bf16.mxu0 0
        %4332 = vmatpush1.bf16.msra.mxu0 0
        %4333 = vmatprep.mubr.bf16.mxu0 0
        %4334 = vmatmul.mubr.bf16.gmra.mrb[0].mxu0 %v4299
        %v4335 = vpop.f32.mrb[0].mxu0
        %v4336 = vadd.f32 0.0, %v4335
        %v4337 = vpop.f32.mrb[0].mxu0
        %v4338 = vadd.f32 0.0, %v4337
        %v4339 = vpop.f32.mrb[0].mxu0
        %v4340 = vpop.f32.mrb[0].mxu0
        %4341 = vdwg.mxu0
        %4342 = vmatprep.subr.bf16.mxu0 %v4293
        %4343 = vmatpush1.bf16.msra.mxu0 %v4292
        %4344 = vmatprep.subr.bf16.mxu0 0
        %4345 = vmatpush1.bf16.msra.mxu0 0
        %4346 = vmatprep.subr.bf16.mxu0 0
        %4347 = vmatpush1.bf16.msra.mxu0 0
        %4348 = vmatprep.subr.bf16.mxu0 0
        %4349 = vmatpush1.bf16.msra.mxu0 0
        %4350 = vmatprep.subr.bf16.mxu0 0
        %4351 = vmatpush1.bf16.msra.mxu0 0
        %4352 = vmatprep.subr.bf16.mxu0 0
        %4353 = vmatpush1.bf16.msra.mxu0 0
        %4354 = vmatprep.subr.bf16.mxu0 0
        %4355 = vmatpush1.bf16.msra.mxu0 0
        %4356 = vmatprep.subr.bf16.mxu0 0
        %4357 = vmatpush1.bf16.msra.mxu0 0
        %4358 = vmatprep.subr.bf16.mxu0 0
        %4359 = vmatpush1.bf16.msra.mxu0 0
        %4360 = vmatprep.subr.bf16.mxu0 0
        %4361 = vmatpush1.bf16.msra.mxu0 0
        %4362 = vmatprep.subr.bf16.mxu0 0
        %4363 = vmatpush1.bf16.msra.mxu0 0
        %4364 = vmatprep.subr.bf16.mxu0 0
        %4365 = vmatpush1.bf16.msra.mxu0 0
        %4366 = vmatprep.subr.bf16.mxu0 0
        %4367 = vmatpush1.bf16.msra.mxu0 0
        %4368 = vmatprep.subr.bf16.mxu0 0
        %4369 = vmatpush1.bf16.msra.mxu0 0
        %4370 = vmatprep.subr.bf16.mxu0 0
        %4371 = vmatpush1.bf16.msra.mxu0 0
        %4372 = vmatprep.subr.bf16.mxu0 0
        %4373 = vmatpush1.bf16.msra.mxu0 0
        %4374 = vmatprep.mubr.bf16.mxu0 0
        %4375 = vmatmul.mubr.bf16.gmra.mrb[0].mxu0 %v4299
        %v4376 = vpop.f32.mrb[0].mxu0
        %v4377 = vadd.f32 0.0, %v4376
        %v4378 = vpop.f32.mrb[0].mxu0
        %v4379 = vadd.f32 0.0, %v4378
        %v4380 = vpop.f32.mrb[0].mxu0
        %v4381 = vpop.f32.mrb[0].mxu0
        %4382 = vdwg.mxu0
        %v4383 = vadd.f32 %v4274, %v4336
        %v4384 = vadd.f32 %v4275, %v4338
        %v4385 = vadd.f32 %v4276, %v4377
        %v4386 = vadd.f32 %v4277, %v4379
        %s4387 = scalar_lea.vmem [#allocation9], 16
        %v4388 = vld [vmem:[%s4387] sm:$0xf]
        %4389 = vrot.lane.b32.xlu0 %v3950, 83
        %v4390 = vpop.permute.xlu0 %4389
        %4391 = vrot.lane.b32.xlu0 %v3951, 83
        %v4392 = vpop.permute.xlu0 %4391
        %4393 = vrot.lane.b32.xlu0 %v3952, 83
        %v4394 = vpop.permute.xlu0 %4393
        %4395 = vrot.lane.b32.xlu0 %v3953, 83
        %v4396 = vpop.permute.xlu0 %4395
        %4397 = vrot.lane.b32.xlu0 %v3954, 83
        %v4398 = vpop.permute.xlu0 %4397
        %v4399 = vsel %vm2066, %v4390, %v4392
        %v4400 = vsel %vm2066, %v4392, %v4394
        %v4401 = vsel %vm2066, %v4394, %v4396
        %v4402 = vsel %vm2066, %v4396, %v4398
        %v4408 = vsel %vm1597, %v4388, 0
        %4410 = vmatprep.subr.bf16.mxu0 %v4400
        %4411 = vmatpush1.bf16.msra.mxu0 %v4399
        %4412 = vmatprep.subr.bf16.mxu0 0
        %4413 = vmatpush1.bf16.msra.mxu0 0
        %4414 = vmatprep.subr.bf16.mxu0 0
        %4415 = vmatpush1.bf16.msra.mxu0 0
        %4416 = vmatprep.subr.bf16.mxu0 0
        %4417 = vmatpush1.bf16.msra.mxu0 0
        %4418 = vmatprep.subr.bf16.mxu0 0
        %4419 = vmatpush1.bf16.msra.mxu0 0
        %4420 = vmatprep.subr.bf16.mxu0 0
        %4421 = vmatpush1.bf16.msra.mxu0 0
        %4422 = vmatprep.subr.bf16.mxu0 0
        %4423 = vmatpush1.bf16.msra.mxu0 0
        %4424 = vmatprep.subr.bf16.mxu0 0
        %4425 = vmatpush1.bf16.msra.mxu0 0
        %4426 = vmatprep.subr.bf16.mxu0 0
        %4427 = vmatpush1.bf16.msra.mxu0 0
        %4428 = vmatprep.subr.bf16.mxu0 0
        %4429 = vmatpush1.bf16.msra.mxu0 0
        %4430 = vmatprep.subr.bf16.mxu0 0
        %4431 = vmatpush1.bf16.msra.mxu0 0
        %4432 = vmatprep.subr.bf16.mxu0 0
        %4433 = vmatpush1.bf16.msra.mxu0 0
        %4434 = vmatprep.subr.bf16.mxu0 0
        %4435 = vmatpush1.bf16.msra.mxu0 0
        %4436 = vmatprep.subr.bf16.mxu0 0
        %4437 = vmatpush1.bf16.msra.mxu0 0
        %4438 = vmatprep.subr.bf16.mxu0 0
        %4439 = vmatpush1.bf16.msra.mxu0 0
        %4440 = vmatprep.subr.bf16.mxu0 0
        %4441 = vmatpush1.bf16.msra.mxu0 0
        %4442 = vmatprep.mubr.bf16.mxu0 0
        %4443 = vmatmul.mubr.bf16.gmra.mrb[0].mxu0 %v4408
        %v4444 = vpop.f32.mrb[0].mxu0
        %v4445 = vadd.f32 0.0, %v4444
        %v4446 = vpop.f32.mrb[0].mxu0
        %v4447 = vadd.f32 0.0, %v4446
        %v4448 = vpop.f32.mrb[0].mxu0
        %v4449 = vpop.f32.mrb[0].mxu0
        %4450 = vdwg.mxu0
        %4451 = vmatprep.subr.bf16.mxu0 %v4402
        %4452 = vmatpush1.bf16.msra.mxu0 %v4401
        %4453 = vmatprep.subr.bf16.mxu0 0
        %4454 = vmatpush1.bf16.msra.mxu0 0
        %4455 = vmatprep.subr.bf16.mxu0 0
        %4456 = vmatpush1.bf16.msra.mxu0 0
        %4457 = vmatprep.subr.bf16.mxu0 0
        %4458 = vmatpush1.bf16.msra.mxu0 0
        %4459 = vmatprep.subr.bf16.mxu0 0
        %4460 = vmatpush1.bf16.msra.mxu0 0
        %4461 = vmatprep.subr.bf16.mxu0 0
        %4462 = vmatpush1.bf16.msra.mxu0 0
        %4463 = vmatprep.subr.bf16.mxu0 0
        %4464 = vmatpush1.bf16.msra.mxu0 0
        %4465 = vmatprep.subr.bf16.mxu0 0
        %4466 = vmatpush1.bf16.msra.mxu0 0
        %4467 = vmatprep.subr.bf16.mxu0 0
        %4468 = vmatpush1.bf16.msra.mxu0 0
        %4469 = vmatprep.subr.bf16.mxu0 0
        %4470 = vmatpush1.bf16.msra.mxu0 0
        %4471 = vmatprep.subr.bf16.mxu0 0
        %4472 = vmatpush1.bf16.msra.mxu0 0
        %4473 = vmatprep.subr.bf16.mxu0 0
        %4474 = vmatpush1.bf16.msra.mxu0 0
        %4475 = vmatprep.subr.bf16.mxu0 0
        %4476 = vmatpush1.bf16.msra.mxu0 0
        %4477 = vmatprep.subr.bf16.mxu0 0
        %4478 = vmatpush1.bf16.msra.mxu0 0
        %4479 = vmatprep.subr.bf16.mxu0 0
        %4480 = vmatpush1.bf16.msra.mxu0 0
        %4481 = vmatprep.subr.bf16.mxu0 0
        %4482 = vmatpush1.bf16.msra.mxu0 0
        %4483 = vmatprep.mubr.bf16.mxu0 0
        %4484 = vmatmul.mubr.bf16.gmra.mrb[0].mxu0 %v4408
        %v4485 = vpop.f32.mrb[0].mxu0
        %v4486 = vadd.f32 0.0, %v4485
        %v4487 = vpop.f32.mrb[0].mxu0
        %v4488 = vadd.f32 0.0, %v4487
        %v4489 = vpop.f32.mrb[0].mxu0
        %v4490 = vpop.f32.mrb[0].mxu0
        %4491 = vdwg.mxu0
        %v4492 = vadd.f32 %v4383, %v4445
        %v4493 = vadd.f32 %v4384, %v4447
        %v4494 = vadd.f32 %v4385, %v4486
        %v4495 = vadd.f32 %v4386, %v4488
        %s4496 = scalar_lea.vmem [#allocation9], 20
        %v4497 = vld [vmem:[%s4496] sm:$0xf]
        %4498 = vrot.lane.b32.xlu0 %v3950, 82
        %v4499 = vpop.permute.xlu0 %4498
        %4500 = vrot.lane.b32.xlu0 %v3951, 82
        %v4501 = vpop.permute.xlu0 %4500
        %4502 = vrot.lane.b32.xlu0 %v3952, 82
        %v4503 = vpop.permute.xlu0 %4502
        %4504 = vrot.lane.b32.xlu0 %v3953, 82
        %v4505 = vpop.permute.xlu0 %4504
        %4506 = vrot.lane.b32.xlu0 %v3954, 82
        %v4507 = vpop.permute.xlu0 %4506
        %v4508 = vsel %vm2190, %v4499, %v4501
        %v4509 = vsel %vm2190, %v4501, %v4503
        %v4510 = vsel %vm2190, %v4503, %v4505
        %v4511 = vsel %vm2190, %v4505, %v4507
        %v4517 = vsel %vm1597, %v4497, 0
        %4519 = vmatprep.subr.bf16.mxu0 %v4509
        %4520 = vmatpush1.bf16.msra.mxu0 %v4508
        %4521 = vmatprep.subr.bf16.mxu0 0
        %4522 = vmatpush1.bf16.msra.mxu0 0
        %4523 = vmatprep.subr.bf16.mxu0 0
        %4524 = vmatpush1.bf16.msra.mxu0 0
        %4525 = vmatprep.subr.bf16.mxu0 0
        %4526 = vmatpush1.bf16.msra.mxu0 0
        %4527 = vmatprep.subr.bf16.mxu0 0
        %4528 = vmatpush1.bf16.msra.mxu0 0
        %4529 = vmatprep.subr.bf16.mxu0 0
        %4530 = vmatpush1.bf16.msra.mxu0 0
        %4531 = vmatprep.subr.bf16.mxu0 0
        %4532 = vmatpush1.bf16.msra.mxu0 0
        %4533 = vmatprep.subr.bf16.mxu0 0
        %4534 = vmatpush1.bf16.msra.mxu0 0
        %4535 = vmatprep.subr.bf16.mxu0 0
        %4536 = vmatpush1.bf16.msra.mxu0 0
        %4537 = vmatprep.subr.bf16.mxu0 0
        %4538 = vmatpush1.bf16.msra.mxu0 0
        %4539 = vmatprep.subr.bf16.mxu0 0
        %4540 = vmatpush1.bf16.msra.mxu0 0
        %4541 = vmatprep.subr.bf16.mxu0 0
        %4542 = vmatpush1.bf16.msra.mxu0 0
        %4543 = vmatprep.subr.bf16.mxu0 0
        %4544 = vmatpush1.bf16.msra.mxu0 0
        %4545 = vmatprep.subr.bf16.mxu0 0
        %4546 = vmatpush1.bf16.msra.mxu0 0
        %4547 = vmatprep.subr.bf16.mxu0 0
        %4548 = vmatpush1.bf16.msra.mxu0 0
        %4549 = vmatprep.subr.bf16.mxu0 0
        %4550 = vmatpush1.bf16.msra.mxu0 0
        %4551 = vmatprep.mubr.bf16.mxu0 0
        %4552 = vmatmul.mubr.bf16.gmra.mrb[0].mxu0 %v4517
        %v4553 = vpop.f32.mrb[0].mxu0
        %v4554 = vadd.f32 0.0, %v4553
        %v4555 = vpop.f32.mrb[0].mxu0
        %v4556 = vadd.f32 0.0, %v4555
        %v4557 = vpop.f32.mrb[0].mxu0
        %v4558 = vpop.f32.mrb[0].mxu0
        %4559 = vdwg.mxu0
        %4560 = vmatprep.subr.bf16.mxu0 %v4511
        %4561 = vmatpush1.bf16.msra.mxu0 %v4510
        %4562 = vmatprep.subr.bf16.mxu0 0
        %4563 = vmatpush1.bf16.msra.mxu0 0
        %4564 = vmatprep.subr.bf16.mxu0 0
        %4565 = vmatpush1.bf16.msra.mxu0 0
        %4566 = vmatprep.subr.bf16.mxu0 0
        %4567 = vmatpush1.bf16.msra.mxu0 0
        %4568 = vmatprep.subr.bf16.mxu0 0
        %4569 = vmatpush1.bf16.msra.mxu0 0
        %4570 = vmatprep.subr.bf16.mxu0 0
        %4571 = vmatpush1.bf16.msra.mxu0 0
        %4572 = vmatprep.subr.bf16.mxu0 0
        %4573 = vmatpush1.bf16.msra.mxu0 0
        %4574 = vmatprep.subr.bf16.mxu0 0
        %4575 = vmatpush1.bf16.msra.mxu0 0
        %4576 = vmatprep.subr.bf16.mxu0 0
        %4577 = vmatpush1.bf16.msra.mxu0 0
        %4578 = vmatprep.subr.bf16.mxu0 0
        %4579 = vmatpush1.bf16.msra.mxu0 0
        %4580 = vmatprep.subr.bf16.mxu0 0
        %4581 = vmatpush1.bf16.msra.mxu0 0
        %4582 = vmatprep.subr.bf16.mxu0 0
        %4583 = vmatpush1.bf16.msra.mxu0 0
        %4584 = vmatprep.subr.bf16.mxu0 0
        %4585 = vmatpush1.bf16.msra.mxu0 0
        %4586 = vmatprep.subr.bf16.mxu0 0
        %4587 = vmatpush1.bf16.msra.mxu0 0
        %4588 = vmatprep.subr.bf16.mxu0 0
        %4589 = vmatpush1.bf16.msra.mxu0 0
        %4590 = vmatprep.subr.bf16.mxu0 0
        %4591 = vmatpush1.bf16.msra.mxu0 0
        %4592 = vmatprep.mubr.bf16.mxu0 0
        %4593 = vmatmul.mubr.bf16.gmra.mrb[0].mxu0 %v4517
        %v4594 = vpop.f32.mrb[0].mxu0
        %v4595 = vadd.f32 0.0, %v4594
        %v4596 = vpop.f32.mrb[0].mxu0
        %v4597 = vadd.f32 0.0, %v4596
        %v4598 = vpop.f32.mrb[0].mxu0
        %v4599 = vpop.f32.mrb[0].mxu0
        %4600 = vdwg.mxu0
        %v4601 = vadd.f32 %v4492, %v4554
        %v4602 = vadd.f32 %v4493, %v4556
        %v4603 = vadd.f32 %v4494, %v4595
        %v4604 = vadd.f32 %v4495, %v4597
        %s4605 = scalar_lea.vmem [#allocation9], 24
        %v4606 = vld [vmem:[%s4605] sm:$0xf]
        %4607 = vrot.lane.b32.xlu0 %v3950, 69
        %v4608 = vpop.permute.xlu0 %4607
        %4609 = vrot.lane.b32.xlu0 %v3951, 69
        %v4610 = vpop.permute.xlu0 %4609
        %4611 = vrot.lane.b32.xlu0 %v3952, 69
        %v4612 = vpop.permute.xlu0 %4611
        %4613 = vrot.lane.b32.xlu0 %v3953, 69
        %v4614 = vpop.permute.xlu0 %4613
        %4615 = vrot.lane.b32.xlu0 %v3954, 69
        %v4616 = vpop.permute.xlu0 %4615
        %v4617 = vsel %vm2314, %v4608, %v4610
        %v4618 = vsel %vm2314, %v4610, %v4612
        %v4619 = vsel %vm2314, %v4612, %v4614
        %v4620 = vsel %vm2314, %v4614, %v4616
        %v4626 = vsel %vm1597, %v4606, 0
        %4628 = vmatprep.subr.bf16.mxu0 %v4618
        %4629 = vmatpush1.bf16.msra.mxu0 %v4617
        %4630 = vmatprep.subr.bf16.mxu0 0
        %4631 = vmatpush1.bf16.msra.mxu0 0
        %4632 = vmatprep.subr.bf16.mxu0 0
        %4633 = vmatpush1.bf16.msra.mxu0 0
        %4634 = vmatprep.subr.bf16.mxu0 0
        %4635 = vmatpush1.bf16.msra.mxu0 0
        %4636 = vmatprep.subr.bf16.mxu0 0
        %4637 = vmatpush1.bf16.msra.mxu0 0
        %4638 = vmatprep.subr.bf16.mxu0 0
        %4639 = vmatpush1.bf16.msra.mxu0 0
        %4640 = vmatprep.subr.bf16.mxu0 0
        %4641 = vmatpush1.bf16.msra.mxu0 0
        %4642 = vmatprep.subr.bf16.mxu0 0
        %4643 = vmatpush1.bf16.msra.mxu0 0
        %4644 = vmatprep.subr.bf16.mxu0 0
        %4645 = vmatpush1.bf16.msra.mxu0 0
        %4646 = vmatprep.subr.bf16.mxu0 0
        %4647 = vmatpush1.bf16.msra.mxu0 0
        %4648 = vmatprep.subr.bf16.mxu0 0
        %4649 = vmatpush1.bf16.msra.mxu0 0
        %4650 = vmatprep.subr.bf16.mxu0 0
        %4651 = vmatpush1.bf16.msra.mxu0 0
        %4652 = vmatprep.subr.bf16.mxu0 0
        %4653 = vmatpush1.bf16.msra.mxu0 0
        %4654 = vmatprep.subr.bf16.mxu0 0
        %4655 = vmatpush1.bf16.msra.mxu0 0
        %4656 = vmatprep.subr.bf16.mxu0 0
        %4657 = vmatpush1.bf16.msra.mxu0 0
        %4658 = vmatprep.subr.bf16.mxu0 0
        %4659 = vmatpush1.bf16.msra.mxu0 0
        %4660 = vmatprep.mubr.bf16.mxu0 0
        %4661 = vmatmul.mubr.bf16.gmra.mrb[0].mxu0 %v4626
        %v4662 = vpop.f32.mrb[0].mxu0
        %v4663 = vadd.f32 0.0, %v4662
        %v4664 = vpop.f32.mrb[0].mxu0
        %v4665 = vadd.f32 0.0, %v4664
        %v4666 = vpop.f32.mrb[0].mxu0
        %v4667 = vpop.f32.mrb[0].mxu0
        %4668 = vdwg.mxu0
        %4669 = vmatprep.subr.bf16.mxu0 %v4620
        %4670 = vmatpush1.bf16.msra.mxu0 %v4619
        %4671 = vmatprep.subr.bf16.mxu0 0
        %4672 = vmatpush1.bf16.msra.mxu0 0
        %4673 = vmatprep.subr.bf16.mxu0 0
        %4674 = vmatpush1.bf16.msra.mxu0 0
        %4675 = vmatprep.subr.bf16.mxu0 0
        %4676 = vmatpush1.bf16.msra.mxu0 0
        %4677 = vmatprep.subr.bf16.mxu0 0
        %4678 = vmatpush1.bf16.msra.mxu0 0
        %4679 = vmatprep.subr.bf16.mxu0 0
        %4680 = vmatpush1.bf16.msra.mxu0 0
        %4681 = vmatprep.subr.bf16.mxu0 0
        %4682 = vmatpush1.bf16.msra.mxu0 0
        %4683 = vmatprep.subr.bf16.mxu0 0
        %4684 = vmatpush1.bf16.msra.mxu0 0
        %4685 = vmatprep.subr.bf16.mxu0 0
        %4686 = vmatpush1.bf16.msra.mxu0 0
        %4687 = vmatprep.subr.bf16.mxu0 0
        %4688 = vmatpush1.bf16.msra.mxu0 0
        %4689 = vmatprep.subr.bf16.mxu0 0
        %4690 = vmatpush1.bf16.msra.mxu0 0
        %4691 = vmatprep.subr.bf16.mxu0 0
        %4692 = vmatpush1.bf16.msra.mxu0 0
        %4693 = vmatprep.subr.bf16.mxu0 0
        %4694 = vmatpush1.bf16.msra.mxu0 0
        %4695 = vmatprep.subr.bf16.mxu0 0
        %4696 = vmatpush1.bf16.msra.mxu0 0
        %4697 = vmatprep.subr.bf16.mxu0 0
        %4698 = vmatpush1.bf16.msra.mxu0 0
        %4699 = vmatprep.subr.bf16.mxu0 0
        %4700 = vmatpush1.bf16.msra.mxu0 0
        %4701 = vmatprep.mubr.bf16.mxu0 0
        %4702 = vmatmul.mubr.bf16.gmra.mrb[0].mxu0 %v4626
        %v4703 = vpop.f32.mrb[0].mxu0
        %v4704 = vadd.f32 0.0, %v4703
        %v4705 = vpop.f32.mrb[0].mxu0
        %v4706 = vadd.f32 0.0, %v4705
        %v4707 = vpop.f32.mrb[0].mxu0
        %v4708 = vpop.f32.mrb[0].mxu0
        %4709 = vdwg.mxu0
        %v4710 = vadd.f32 %v4601, %v4663
        %v4711 = vadd.f32 %v4602, %v4665
        %v4712 = vadd.f32 %v4603, %v4704
        %v4713 = vadd.f32 %v4604, %v4706
        %s4714 = scalar_lea.vmem [#allocation9], 28
        %v4715 = vld [vmem:[%s4714] sm:$0xf]
        %4716 = vrot.lane.b32.xlu0 %v3950, 68
        %v4717 = vpop.permute.xlu0 %4716
        %4718 = vrot.lane.b32.xlu0 %v3951, 68
        %v4719 = vpop.permute.xlu0 %4718
        %4720 = vrot.lane.b32.xlu0 %v3952, 68
        %v4721 = vpop.permute.xlu0 %4720
        %4722 = vrot.lane.b32.xlu0 %v3953, 68
        %v4723 = vpop.permute.xlu0 %4722
        %4724 = vrot.lane.b32.xlu0 %v3954, 68
        %v4725 = vpop.permute.xlu0 %4724
        %v4726 = vsel %vm2438, %v4717, %v4719
        %v4727 = vsel %vm2438, %v4719, %v4721
        %v4728 = vsel %vm2438, %v4721, %v4723
        %v4729 = vsel %vm2438, %v4723, %v4725
        %v4735 = vsel %vm1597, %v4715, 0
        %4737 = vmatprep.subr.bf16.mxu0 %v4727
        %4738 = vmatpush1.bf16.msra.mxu0 %v4726
        %4739 = vmatprep.subr.bf16.mxu0 0
        %4740 = vmatpush1.bf16.msra.mxu0 0
        %4741 = vmatprep.subr.bf16.mxu0 0
        %4742 = vmatpush1.bf16.msra.mxu0 0
        %4743 = vmatprep.subr.bf16.mxu0 0
        %4744 = vmatpush1.bf16.msra.mxu0 0
        %4745 = vmatprep.subr.bf16.mxu0 0
        %4746 = vmatpush1.bf16.msra.mxu0 0
        %4747 = vmatprep.subr.bf16.mxu0 0
        %4748 = vmatpush1.bf16.msra.mxu0 0
        %4749 = vmatprep.subr.bf16.mxu0 0
        %4750 = vmatpush1.bf16.msra.mxu0 0
        %4751 = vmatprep.subr.bf16.mxu0 0
        %4752 = vmatpush1.bf16.msra.mxu0 0
        %4753 = vmatprep.subr.bf16.mxu0 0
        %4754 = vmatpush1.bf16.msra.mxu0 0
        %4755 = vmatprep.subr.bf16.mxu0 0
        %4756 = vmatpush1.bf16.msra.mxu0 0
        %4757 = vmatprep.subr.bf16.mxu0 0
        %4758 = vmatpush1.bf16.msra.mxu0 0
        %4759 = vmatprep.subr.bf16.mxu0 0
        %4760 = vmatpush1.bf16.msra.mxu0 0
        %4761 = vmatprep.subr.bf16.mxu0 0
        %4762 = vmatpush1.bf16.msra.mxu0 0
        %4763 = vmatprep.subr.bf16.mxu0 0
        %4764 = vmatpush1.bf16.msra.mxu0 0
        %4765 = vmatprep.subr.bf16.mxu0 0
        %4766 = vmatpush1.bf16.msra.mxu0 0
        %4767 = vmatprep.subr.bf16.mxu0 0
        %4768 = vmatpush1.bf16.msra.mxu0 0
        %4769 = vmatprep.mubr.bf16.mxu0 0
        %4770 = vmatmul.mubr.bf16.gmra.mrb[0].mxu0 %v4735
        %v4771 = vpop.f32.mrb[0].mxu0
        %v4772 = vadd.f32 0.0, %v4771
        %v4773 = vpop.f32.mrb[0].mxu0
        %v4774 = vadd.f32 0.0, %v4773
        %v4775 = vpop.f32.mrb[0].mxu0
        %v4776 = vpop.f32.mrb[0].mxu0
        %4777 = vdwg.mxu0
        %4778 = vmatprep.subr.bf16.mxu0 %v4729
        %4779 = vmatpush1.bf16.msra.mxu0 %v4728
        %4780 = vmatprep.subr.bf16.mxu0 0
        %4781 = vmatpush1.bf16.msra.mxu0 0
        %4782 = vmatprep.subr.bf16.mxu0 0
        %4783 = vmatpush1.bf16.msra.mxu0 0
        %4784 = vmatprep.subr.bf16.mxu0 0
        %4785 = vmatpush1.bf16.msra.mxu0 0
        %4786 = vmatprep.subr.bf16.mxu0 0
        %4787 = vmatpush1.bf16.msra.mxu0 0
        %4788 = vmatprep.subr.bf16.mxu0 0
        %4789 = vmatpush1.bf16.msra.mxu0 0
        %4790 = vmatprep.subr.bf16.mxu0 0
        %4791 = vmatpush1.bf16.msra.mxu0 0
        %4792 = vmatprep.subr.bf16.mxu0 0
        %4793 = vmatpush1.bf16.msra.mxu0 0
        %4794 = vmatprep.subr.bf16.mxu0 0
        %4795 = vmatpush1.bf16.msra.mxu0 0
        %4796 = vmatprep.subr.bf16.mxu0 0
        %4797 = vmatpush1.bf16.msra.mxu0 0
        %4798 = vmatprep.subr.bf16.mxu0 0
        %4799 = vmatpush1.bf16.msra.mxu0 0
        %4800 = vmatprep.subr.bf16.mxu0 0
        %4801 = vmatpush1.bf16.msra.mxu0 0
        %4802 = vmatprep.subr.bf16.mxu0 0
        %4803 = vmatpush1.bf16.msra.mxu0 0
        %4804 = vmatprep.subr.bf16.mxu0 0
        %4805 = vmatpush1.bf16.msra.mxu0 0
        %4806 = vmatprep.subr.bf16.mxu0 0
        %4807 = vmatpush1.bf16.msra.mxu0 0
        %4808 = vmatprep.subr.bf16.mxu0 0
        %4809 = vmatpush1.bf16.msra.mxu0 0
        %4810 = vmatprep.mubr.bf16.mxu0 0
        %4811 = vmatmul.mubr.bf16.gmra.mrb[0].mxu0 %v4735
        %v4812 = vpop.f32.mrb[0].mxu0
        %v4813 = vadd.f32 0.0, %v4812
        %v4814 = vpop.f32.mrb[0].mxu0
        %v4815 = vadd.f32 0.0, %v4814
        %v4816 = vpop.f32.mrb[0].mxu0
        %v4817 = vpop.f32.mrb[0].mxu0
        %4818 = vdwg.mxu0
        %v4819 = vadd.f32 %v4710, %v4772
        %v4820 = vadd.f32 %v4711, %v4774
        %v4821 = vadd.f32 %v4712, %v4813
        %v4822 = vadd.f32 %v4713, %v4815
        %s4823 = scalar_lea.vmem [#allocation9], 32
        %v4824 = vld [vmem:[%s4823] sm:$0xf]
        %4825 = vrot.lane.b32.xlu0 %v3950, 67
        %v4826 = vpop.permute.xlu0 %4825
        %4827 = vrot.lane.b32.xlu0 %v3951, 67
        %v4828 = vpop.permute.xlu0 %4827
        %4829 = vrot.lane.b32.xlu0 %v3952, 67
        %v4830 = vpop.permute.xlu0 %4829
        %4831 = vrot.lane.b32.xlu0 %v3953, 67
        %v4832 = vpop.permute.xlu0 %4831
        %4833 = vrot.lane.b32.xlu0 %v3954, 67
        %v4834 = vpop.permute.xlu0 %4833
        %v4835 = vsel %vm2562, %v4826, %v4828
        %v4836 = vsel %vm2562, %v4828, %v4830
        %v4837 = vsel %vm2562, %v4830, %v4832
        %v4838 = vsel %vm2562, %v4832, %v4834
        %v4844 = vsel %vm1597, %v4824, 0
        %4846 = vmatprep.subr.bf16.mxu0 %v4836
        %4847 = vmatpush1.bf16.msra.mxu0 %v4835
        %4848 = vmatprep.subr.bf16.mxu0 0
        %4849 = vmatpush1.bf16.msra.mxu0 0
        %4850 = vmatprep.subr.bf16.mxu0 0
        %4851 = vmatpush1.bf16.msra.mxu0 0
        %4852 = vmatprep.subr.bf16.mxu0 0
        %4853 = vmatpush1.bf16.msra.mxu0 0
        %4854 = vmatprep.subr.bf16.mxu0 0
        %4855 = vmatpush1.bf16.msra.mxu0 0
        %4856 = vmatprep.subr.bf16.mxu0 0
        %4857 = vmatpush1.bf16.msra.mxu0 0
        %4858 = vmatprep.subr.bf16.mxu0 0
        %4859 = vmatpush1.bf16.msra.mxu0 0
        %4860 = vmatprep.subr.bf16.mxu0 0
        %4861 = vmatpush1.bf16.msra.mxu0 0
        %4862 = vmatprep.subr.bf16.mxu0 0
        %4863 = vmatpush1.bf16.msra.mxu0 0
        %4864 = vmatprep.subr.bf16.mxu0 0
        %4865 = vmatpush1.bf16.msra.mxu0 0
        %4866 = vmatprep.subr.bf16.mxu0 0
        %4867 = vmatpush1.bf16.msra.mxu0 0
        %4868 = vmatprep.subr.bf16.mxu0 0
        %4869 = vmatpush1.bf16.msra.mxu0 0
        %4870 = vmatprep.subr.bf16.mxu0 0
        %4871 = vmatpush1.bf16.msra.mxu0 0
        %4872 = vmatprep.subr.bf16.mxu0 0
        %4873 = vmatpush1.bf16.msra.mxu0 0
        %4874 = vmatprep.subr.bf16.mxu0 0
        %4875 = vmatpush1.bf16.msra.mxu0 0
        %4876 = vmatprep.subr.bf16.mxu0 0
        %4877 = vmatpush1.bf16.msra.mxu0 0
        %4878 = vmatprep.mubr.bf16.mxu0 0
        %4879 = vmatmul.mubr.bf16.gmra.mrb[0].mxu0 %v4844
        %v4880 = vpop.f32.mrb[0].mxu0
        %v4881 = vadd.f32 0.0, %v4880
        %v4882 = vpop.f32.mrb[0].mxu0
        %v4883 = vadd.f32 0.0, %v4882
        %v4884 = vpop.f32.mrb[0].mxu0
        %v4885 = vpop.f32.mrb[0].mxu0
        %4886 = vdwg.mxu0
        %4887 = vmatprep.subr.bf16.mxu0 %v4838
        %4888 = vmatpush1.bf16.msra.mxu0 %v4837
        %4889 = vmatprep.subr.bf16.mxu0 0
        %4890 = vmatpush1.bf16.msra.mxu0 0
        %4891 = vmatprep.subr.bf16.mxu0 0
        %4892 = vmatpush1.bf16.msra.mxu0 0
        %4893 = vmatprep.subr.bf16.mxu0 0
        %4894 = vmatpush1.bf16.msra.mxu0 0
        %4895 = vmatprep.subr.bf16.mxu0 0
        %4896 = vmatpush1.bf16.msra.mxu0 0
        %4897 = vmatprep.subr.bf16.mxu0 0
        %4898 = vmatpush1.bf16.msra.mxu0 0
        %4899 = vmatprep.subr.bf16.mxu0 0
        %4900 = vmatpush1.bf16.msra.mxu0 0
        %4901 = vmatprep.subr.bf16.mxu0 0
        %4902 = vmatpush1.bf16.msra.mxu0 0
        %4903 = vmatprep.subr.bf16.mxu0 0
        %4904 = vmatpush1.bf16.msra.mxu0 0
        %4905 = vmatprep.subr.bf16.mxu0 0
        %4906 = vmatpush1.bf16.msra.mxu0 0
        %4907 = vmatprep.subr.bf16.mxu0 0
        %4908 = vmatpush1.bf16.msra.mxu0 0
        %4909 = vmatprep.subr.bf16.mxu0 0
        %4910 = vmatpush1.bf16.msra.mxu0 0
        %4911 = vmatprep.subr.bf16.mxu0 0
        %4912 = vmatpush1.bf16.msra.mxu0 0
        %4913 = vmatprep.subr.bf16.mxu0 0
        %4914 = vmatpush1.bf16.msra.mxu0 0
        %4915 = vmatprep.subr.bf16.mxu0 0
        %4916 = vmatpush1.bf16.msra.mxu0 0
        %4917 = vmatprep.subr.bf16.mxu0 0
        %4918 = vmatpush1.bf16.msra.mxu0 0
        %4919 = vmatprep.mubr.bf16.mxu0 0
        %4920 = vmatmul.mubr.bf16.gmra.mrb[0].mxu0 %v4844
        %v4921 = vpop.f32.mrb[0].mxu0
        %v4922 = vadd.f32 0.0, %v4921
        %v4923 = vpop.f32.mrb[0].mxu0
        %v4924 = vadd.f32 0.0, %v4923
        %v4925 = vpop.f32.mrb[0].mxu0
        %v4926 = vpop.f32.mrb[0].mxu0
        %4927 = vdwg.mxu0
        %v4928 = vadd.f32 %v4819, %v4881
        %v4929 = vadd.f32 %v4820, %v4883
        %v4930 = vadd.f32 %v4821, %v4922
        %v4931 = vadd.f32 %v4822, %v4924
        %v4932 = vld [vmem:[%s9] sm:$0xff]
        %4934 = vset.pattern.permute.xlu0 0
        %4935 = vperm.xlu0 %4934, %v4932
        %v4936 = vpop.permute.xlu0 %4935
        %v4938 = vadd.f32 %v4928, %v4936
        %v4939 = vadd.f32 %v4929, %v4936
        %v4940 = vadd.f32 %v4930, %v4936
        %v4941 = vadd.f32 %v4931, %v4936
        %v4942 = vmul.f32 %v4938, %v1492
        %v4943 = vmul.f32 %v4939, %v1496
        %v4944 = vmul.f32 %v4940, %v1500
        %v4945 = vmul.f32 %v4941, %v1504
        %4946 = vst [vmem:[%s511] sm:$0xff] %v4942
        %4947 = vst [vmem:[%s511 + $0x8] sm:$0xff] %v4943
        %4948 = vst [vmem:[%s511 + $0x10] sm:$0xff] %v4944
        %4949 = vst.msk [vmem:[%s511 + $0x18] sm:$0xff] %vm1520, %v4945
        %s4950 = sand.u32 %s261, 1
        %s4951 = scalar_lea.sflag [#allocation6], %s4950
        %s4952 = sand.u32 %s261, 1
        %s4953 = smul.addr %s4952, 64
        %s4954 = scalar_lea.vmem [#allocation10], %s4953
        %s4955 = sand.u32 %s38, 1
        %s4956 = scalar_lea.sflag [#allocation12], %s4955
        %s4957 = sand.u32 %s287, 1
        %s4958 = smul.addr %s4957, 64
        %s4959 = scalar_lea.vmem [#allocation11], %s4958
        %s4960 = sand.u32 %s38, 1
        %s4961 = scalar_lea.sflag [#allocation12], %s4960
        %s4962 = sand.u32 %s313, 1
        %s4963 = smul.addr %s4962, 64
        %s4964 = scalar_lea.vmem [#allocation13], %s4963
        %s4965 = sand.u32 %s339, 1
        %s4966 = scalar_lea.sflag [#allocation15], %s4965
        %s4967 = sand.u32 %s339, 1
        %s4968 = smul.addr %s4967, 32
        %s4969 = scalar_lea.vmem [#allocation14], %s4968
        // Predicated region
        $region73: #{tpu_custom_call.1} parent=59 // pred_check
          %p4970 = pneg %p271
        $region74: #{tpu_custom_call.1} parent=59 // pred_check_branch
          %4972 = sbr.rel (%p4970) target = $region76
        $region75: #{tpu_custom_call.1} parent=59 // pred_region
          %s4974 = ssub.s32 1024, 1024
          %4975 = vsyncadd %s4951, %s4974
          %s4976 = smul.addr %s38, 8
          %s4977 = smul.addr %s4976, 128
          %s4978 = scalar_lea.hbm %s10, %s4977
          %s4979 = sshll.u32 %s4954, 4
          %s4980 = int_to_ptr.vmem [resolvable:$true] %s4979
          %4985 = dma.vmem_to_hbm [thread:$0]  %s4980, 1024, %s4978, %s4951, 512, 512, 32
        $region76: #{tpu_custom_call.1} parent=59 // pred_fallthru
          _
        // Predicated region
        $region77: #{tpu_custom_call.1} parent=59 // pred_check
          %p4986 = pneg %p297
        $region78: #{tpu_custom_call.1} parent=59 // pred_check_branch
          %4988 = sbr.rel (%p4986) target = $region80
        $region79: #{tpu_custom_call.1} parent=59 // pred_region
          %s4990 = ssub.s32 1024, 1024
          %4991 = vsyncadd %s4956, %s4990
          %s4992 = smul.addr %s38, 8
          %s4993 = smul.addr %s4992, 128
          %s4994 = scalar_lea.hbm %s11, %s4993
          %s4995 = sshll.u32 %s4959, 4
          %s4996 = int_to_ptr.vmem [resolvable:$true] %s4995
          %5001 = dma.vmem_to_hbm [thread:$0]  %s4996, 1024, %s4994, %s4956, 512, 512, 32
        $region80: #{tpu_custom_call.1} parent=59 // pred_fallthru
          _
        // Predicated region
        $region81: #{tpu_custom_call.1} parent=59 // pred_check
          %p5002 = pneg %p323
        $region82: #{tpu_custom_call.1} parent=59 // pred_check_branch
          %5004 = sbr.rel (%p5002) target = $region84
        $region83: #{tpu_custom_call.1} parent=59 // pred_region
          %s5006 = ssub.s32 1024, 1024
          %5007 = vsyncadd %s4961, %s5006
          %s5008 = smul.addr %s38, 8
          %s5009 = smul.addr %s5008, 128
          %s5010 = scalar_lea.hbm %s12, %s5009
          %s5011 = sshll.u32 %s4964, 4
          %s5012 = int_to_ptr.vmem [resolvable:$true] %s5011
          %5017 = dma.vmem_to_hbm [thread:$0]  %s5012, 1024, %s5010, %s4961, 512, 512, 32
        $region84: #{tpu_custom_call.1} parent=59 // pred_fallthru
          _
        // Predicated region
        $region85: #{tpu_custom_call.1} parent=59 // pred_check
          %p5018 = pneg %p349
        $region86: #{tpu_custom_call.1} parent=59 // pred_check_branch
          %5020 = sbr.rel (%p5018) target = $region88
        $region87: #{tpu_custom_call.1} parent=59 // pred_region
          %s5022 = ssub.s32 512, 512
          %5023 = vsyncadd %s4966, %s5022
          %s5024 = smul.addr %s38, 4
          %s5025 = smul.addr %s5024, 128
          %s5026 = scalar_lea.hbm %s13, %s5025
          %s5028 = sshll.u32 %s4969, 4
          %s5029 = int_to_ptr.vmem [resolvable:$true] %s5028
          %5031 = dma.vmem_to_hbm [thread:$0]  %s5029, 512, %s5026, %s4966
        $region88: #{tpu_custom_call.1} parent=59 // pred_fallthru
          _
      $region60: #{tpu_custom_call.1} parent=5 // pred_fallthru
        _
      %p5032 = scmp.le.s32.totalorder 2, %s33
      // Predicated region
      $region89: #{tpu_custom_call.1} parent=5 // pred_check
        %p5033 = pneg %p5032
      $region90: #{tpu_custom_call.1} parent=5 // pred_check_branch
        %5035 = sbr.rel (%p5033) target = $region92
      $region91: #{tpu_custom_call.1} parent=5 // pred_region
        %s5036 = ssub.s32 %s33, 2
        // Predicated region
        $region93: #{tpu_custom_call.1} parent=91 // pred_check
          %p5037 = pneg %p277
        $region94: #{tpu_custom_call.1} parent=91 // pred_check_branch
          %5039 = sbr.rel (%p5037) target = $region96
        $region95: #{tpu_custom_call.1} parent=91 // pred_region
          %s5040 = sand.u32 %s262, 1
          %s5041 = scalar_lea.sflag [#allocation6], %s5040
          %s5042 = sand.u32 %s262, 1
          %s5043 = smul.addr %s5042, 64
          %s5044 = scalar_lea.vmem [#allocation10], %s5043
          %5045 = dma.done %s5041, 1024
        $region96: #{tpu_custom_call.1} parent=91 // pred_fallthru
          _
        // Predicated region
        $region97: #{tpu_custom_call.1} parent=91 // pred_check
          %p5046 = pneg %p303
        $region98: #{tpu_custom_call.1} parent=91 // pred_check_branch
          %5048 = sbr.rel (%p5046) target = $region100
        $region99: #{tpu_custom_call.1} parent=91 // pred_region
          %s5049 = sand.u32 %s39, 1
          %s5050 = scalar_lea.sflag [#allocation12], %s5049
          %s5051 = sand.u32 %s288, 1
          %s5052 = smul.addr %s5051, 64
          %s5053 = scalar_lea.vmem [#allocation11], %s5052
          %5054 = dma.done %s5050, 1024
        $region100: #{tpu_custom_call.1} parent=91 // pred_fallthru
          _
        // Predicated region
        $region101: #{tpu_custom_call.1} parent=91 // pred_check
          %p5055 = pneg %p329
        $region102: #{tpu_custom_call.1} parent=91 // pred_check_branch
          %5057 = sbr.rel (%p5055) target = $region104
        $region103: #{tpu_custom_call.1} parent=91 // pred_region
          %s5058 = sand.u32 %s39, 1
          %s5059 = scalar_lea.sflag [#allocation12], %s5058
          %s5060 = sand.u32 %s314, 1
          %s5061 = smul.addr %s5060, 64
          %s5062 = scalar_lea.vmem [#allocation13], %s5061
          %5063 = dma.done %s5059, 1024
        $region104: #{tpu_custom_call.1} parent=91 // pred_fallthru
          _
        // Predicated region
        $region105: #{tpu_custom_call.1} parent=91 // pred_check
          %p5064 = pneg %p355
        $region106: #{tpu_custom_call.1} parent=91 // pred_check_branch
          %5066 = sbr.rel (%p5064) target = $region108
        $region107: #{tpu_custom_call.1} parent=91 // pred_region
          %s5067 = sand.u32 %s340, 1
          %s5068 = scalar_lea.sflag [#allocation15], %s5067
          %s5069 = sand.u32 %s340, 1
          %s5070 = smul.addr %s5069, 32
          %s5071 = scalar_lea.vmem [#allocation14], %s5070
          %5072 = dma.done %s5068, 512
        $region108: #{tpu_custom_call.1} parent=91 // pred_fallthru
          _
      $region92: #{tpu_custom_call.1} parent=5 // pred_fallthru
        _
    $region6: #{tpu_custom_call.1} parent=1 // loop_footer
      %s37 = sadd.s32 1, %s33
    $region7: #{tpu_custom_call.1} parent=1 // loop_footer_branch
      %32 = sbr.rel target = $region3
    $region8: #{tpu_custom_call.1} parent=1 // loop_exit
      _
    %5073 = vsyncpa [#allocation5], 1
    %s5074 = scalar_lea.sflag [#allocation5], 1
    %5075 = vsyncpa %s5074, 1
    %5076 = vsyncpa [#allocation8], 1
    %5077 = vsyncpa [#allocation6], 1
    %s5078 = scalar_lea.sflag [#allocation6], 1
    %5079 = vsyncpa %s5078, 1
    %5080 = vsyncpa [#allocation12], 1
    %s5081 = scalar_lea.sflag [#allocation12], 1
    %5082 = vsyncpa %s5081, 1
    %5083 = vsyncpa [#allocation15], 1
    %s5084 = scalar_lea.sflag [#allocation15], 1
    %5085 = vsyncpa %s5084, 1

</llo_original>
